<compile_context>
chip_gen: v7x
topology: tpu7x:2x2x1
jax: 0.10.0
libtpu: 0.0.40
codegen_flags: <defaults>
</compile_context>

<pallas_src>
import functools

import jax
import jax.numpy as jnp
from jax.experimental import pallas as pl
from jax.experimental.pallas import tpu as pltpu

LANE = 128  # vreg lane width; pad narrow output channels up to this.


# ----------------------------------------------------------------------------
# Pallas kernels
# ----------------------------------------------------------------------------
def _conv_kernel(p_ref, w_ref, b_ref, o_ref):
    """One sample's im2col matmul: relu(p @ w + b).

    p_ref: (1, M, K) bf16   w_ref: (K, N) bf16 (VMEM-resident)
    b_ref: (1, N) f32       o_ref: (1, M, N) bf16
    """
    acc = jnp.dot(p_ref[0], w_ref[...], preferred_element_type=jnp.float32)
    acc = jnp.maximum(acc + b_ref[...], 0.0)
    o_ref[0] = acc.astype(o_ref.dtype)


def _fc_kernel(x_ref, w1_ref, b1_ref, w2_ref, b2_ref, o_ref):
    """Fused fc1 + ReLU + fc2 for one batch tile; h stays in VMEM/registers.

    x_ref: (bt, 2592) bf16
    w1_ref: (2592, 256) bf16   b1_ref: (1, 256) f32
    w2_ref: (256, 128) bf16    b2_ref: (1, 128) f32   (padded, lane-dense)
    o_ref:  (bt, 128) f32
    """
    h = jnp.dot(x_ref[...], w1_ref[...], preferred_element_type=jnp.float32)
    h = jnp.maximum(h + b1_ref[...], 0.0).astype(jnp.bfloat16)
    out = jnp.dot(h, w2_ref[...], preferred_element_type=jnp.float32)
    o_ref[...] = (out + b2_ref[...]).astype(o_ref.dtype)


# ----------------------------------------------------------------------------
# pallas_call wrappers
# ----------------------------------------------------------------------------
def _conv_matmul(p, w, b):
    """p: (B, M, K) bf16, w: (K, N) bf16, b: (1, N) f32 -> (B, M, N) bf16."""
    B, M, K = p.shape
    N = w.shape[1]
    return pl.pallas_call(
        _conv_kernel,
        out_shape=jax.ShapeDtypeStruct((B, M, N), jnp.bfloat16),
        grid=(B,),
        in_specs=[
            pl.BlockSpec((1, M, K), lambda i: (i, 0, 0)),   # per-sample row tile
            pl.BlockSpec((K, N), lambda i: (0, 0)),          # weight, VMEM-resident
            pl.BlockSpec((1, N), lambda i: (0, 0)),          # bias,   VMEM-resident
        ],
        out_specs=pl.BlockSpec((1, M, N), lambda i: (i, 0, 0)),
        compiler_params=pltpu.CompilerParams(
            dimension_semantics=("parallel",)),               # megacore sharding (v7x)
    )(p, w, b)


def _fc_forward(x, w1, b1, w2, b2, bt=128):
    """x: (B, 2592) bf16 -> (B, 128) f32 via fused fc1+fc2."""
    B, K = x.shape
    H = w1.shape[1]
    N = w2.shape[1]
    bt = min(bt, B)
    Bp = ((B + bt - 1) // bt) * bt
    if Bp != B:
        x = jnp.pad(x, ((0, Bp - B), (0, 0)))
    out = pl.pallas_call(
        _fc_kernel,
        out_shape=jax.ShapeDtypeStruct((Bp, N), jnp.float32),
        grid=(Bp // bt,),
        in_specs=[
            pl.BlockSpec((bt, K), lambda i: (i, 0)),
            pl.BlockSpec((K, H), lambda i: (0, 0)),
            pl.BlockSpec((1, H), lambda i: (0, 0)),
            pl.BlockSpec((H, N), lambda i: (0, 0)),
            pl.BlockSpec((1, N), lambda i: (0, 0)),
        ],
        out_specs=pl.BlockSpec((bt, N), lambda i: (i, 0)),
        compiler_params=pltpu.CompilerParams(
            dimension_semantics=("parallel",)),
    )(x, w1, b1, w2, b2)
    return out[:B]


# ----------------------------------------------------------------------------
# NHWC im2col (layout-neutral wrapper glue: strided slices + one lane concat)
# ----------------------------------------------------------------------------
def _im2col_nhwc(x, k, s):
    """x: (B, H, W, C) -> ((B, OH*OW, k*k*C), OH, OW), feature order (ki, kj, c)."""
    B, H, W, C = x.shape
    OH = (H - k) // s + 1
    OW = (W - k) // s + 1
    cols = []
    for i in range(k):
        for j in range(k):
            cols.append(x[:, i:i + s * OH:s, j:j + s * OW:s, :])
    p = jnp.concatenate(cols, axis=-1)                  # (B, OH, OW, k*k*C)
    return p.reshape(B, OH * OW, k * k * C), OH, OW


# ----------------------------------------------------------------------------
# Parameters: PyTorch-layout init + one-time kernel-friendly re-layout.
# ----------------------------------------------------------------------------
def init_params(key, action_size):
    ks = jax.random.split(key, 8)

    def u(k, shape, scale):
        return jax.random.uniform(k, shape, jnp.float32, -scale, scale)

    return {
        "w_conv1": u(ks[0], (16, 4, 8, 8), 0.05),       # Conv2d(4, 16, 8, stride=4)
        "b_conv1": u(ks[1], (16,), 0.05),
        "w_conv2": u(ks[2], (32, 16, 4, 4), 0.05),      # Conv2d(16, 32, 4, stride=2)
        "b_conv2": u(ks[3], (32,), 0.05),
        "w_fc1":   u(ks[4], (256, 9 * 9 * 32), 0.02),   # Linear(2592, 256)
        "b_fc1":   u(ks[5], (256,), 0.02),
        "w_fc2":   u(ks[6], (action_size, 256), 0.05),  # Linear(256, action_size)
        "b_fc2":   u(ks[7], (action_size,), 0.05),
    }
    # TODO(synk): bn1 (BatchNorm2d) is defined in __init__ but unused in forward.


def prepare_params(params):
    """One-time re-layout: (K, N) matmul weights, bf16, NHWC flatten order, padding."""
    a = params["w_fc2"].shape[0]
    assert a <= LANE

    # conv weights: (O, I, kh, kw) -> (kh, kw, I, O) -> (kh*kw*I, O), row order (ki, kj, c)
    w1 = jnp.transpose(params["w_conv1"], (2, 3, 1, 0)).reshape(8 * 8 * 4, 16)
    w1 = jnp.pad(w1, ((0, 0), (0, LANE - 16))).astype(jnp.bfloat16)        # (256, 128)
    b1 = jnp.pad(params["b_conv1"], (0, LANE - 16)).reshape(1, LANE).astype(jnp.float32)

    w2 = jnp.transpose(params["w_conv2"], (2, 3, 1, 0)).reshape(4 * 4 * 16, 32)
    w2 = w2.astype(jnp.bfloat16)                                            # (256, 32)
    b2 = params["b_conv2"].reshape(1, 32).astype(jnp.float32)

    # fc1: PyTorch flatten order is (c, oh, ow); in-kernel order is (oh, ow, c),
    # so permute the input-feature axis once here.
    wf1 = (params["w_fc1"].reshape(256, 32, 9, 9)
           .transpose(2, 3, 1, 0).reshape(9 * 9 * 32, 256).astype(jnp.bfloat16))
    bf1 = params["b_fc1"].reshape(1, 256).astype(jnp.float32)

    # fc2: (A, 256) -> (256, A) -> pad A to 128 for a lane-dense output store.
    wf2 = jnp.pad(params["w_fc2"].T, ((0, 0), (0, LANE - a))).astype(jnp.bfloat16)
    bf2 = jnp.pad(params["b_fc2"], (0, LANE - a)).reshape(1, LANE).astype(jnp.float32)

    return {"w1": w1, "b1": b1, "w2": w2, "b2": b2,
            "wf1": wf1, "bf1": bf1, "wf2": wf2, "bf2": bf2}


# ----------------------------------------------------------------------------
# Forward pass
# ----------------------------------------------------------------------------
def qcn_forward(prep, state, *, action_size):
    B = state.shape[0]

    # Single NCHW -> NHWC layout change; everything stays NHWC afterwards.
    x = jnp.transpose(state, (0, 2, 3, 1)).astype(jnp.bfloat16)       # (B, 84, 84, 4)

    # conv1 (4 -> 16, k=8, s=4) + ReLU.  Output lane-padded to 128 channels.
    p1, oh1, ow1 = _im2col_nhwc(x, 8, 4)                              # (B, 400, 256)
    y1 = _conv_matmul(p1, prep["w1"], prep["b1"])                     # (B, 400, 128) bf16
    y1 = y1.reshape(B, oh1, ow1, LANE)[..., :16]                      # (B, 20, 20, 16)

    # conv2 (16 -> 32, k=4, s=2) + ReLU.
    p2, oh2, ow2 = _im2col_nhwc(y1, 4, 2)                             # (B, 81, 256)
    y2 = _conv_matmul(p2, prep["w2"], prep["b2"])                     # (B, 81, 32) bf16

    # Free reshape (row-major (oh, ow, c) flatten; wf1 rows were permuted to match).
    flat = y2.reshape(B, oh2 * ow2 * 32)                              # (B, 2592)

    # fc1 + ReLU + fc2 fused in one kernel (weights resident in VMEM).
    out = _fc_forward(flat, prep["wf1"], prep["bf1"], prep["wf2"], prep["bf2"])
    return out[:, :action_size]


# ----------------------------------------------------------------------------
# Pure-JAX f32 reference (original PyTorch layouts) for correctness checking.
# ----------------------------------------------------------------------------
def reference_forward(params, state):
    dn = ("NCHW", "OIHW", "NCHW")
    y1 = jax.lax.conv_general_dilated(state, params["w_conv1"], (4, 4), "VALID",
                                      dimension_numbers=dn)
    y1 = jax.nn.relu(y1 + params["b_conv1"][None, :, None, None])
    y2 = jax.lax.conv_general_dilated(y1, params["w_conv2"], (2, 2), "VALID",
                                      dimension_numbers=dn)
    y2 = jax.nn.relu(y2 + params["b_conv2"][None, :, None, None])
    flat = y2.reshape(y2.shape[0], -1)
    h = jax.nn.relu(flat @ params["w_fc1"].T + params["b_fc1"])
    return h @ params["w_fc2"].T + params["b_fc2"]


if __name__ == "__main__":
    action_size = 6
    key = jax.random.PRNGKey(0)
    k_param, k_state = jax.random.split(key)

    params = init_params(k_param, action_size)
    prep = prepare_params(params)            # one-time weight re-layout (outside jit)
    state = jax.random.normal(k_state, (2, 4, 84, 84), dtype=jnp.float32)

    fwd = jax.jit(functools.partial(qcn_forward, action_size=action_size))
    out = jax.block_until_ready(fwd(prep, state))

    ref = jax.block_until_ready(reference_forward(params, state))
    assert out.shape == (2, action_size)
    max_err = float(jnp.max(jnp.abs(out - ref)))
    # bf16 matmul inputs with f32 accumulation -> small rounding vs the f32 reference.
    assert jnp.allclose(out, ref, atol=2e-2, rtol=2e-2), f"mismatch: max|err|={max_err}"

    print("KERNEL_OK")
</pallas_src>

<mosaic_0001>
module attributes {stable_mosaic.version = 11 : i64} {
  func.func @_conv_kernel(%arg0: i32, %arg1: memref<1x400x256xbf16, #tpu.memory_space<vmem>>, %arg2: memref<256x128xbf16, #tpu.memory_space<vmem>>, %arg3: memref<1x128xf32, #tpu.memory_space<vmem>>, %arg4: memref<1x400x128xbf16, #tpu.memory_space<vmem>>) attributes {dimension_semantics = [#tpu.dimension_semantics<parallel>], iteration_bounds = array<i64: 2>, scalar_prefetch = 0 : i64, scratch_operands = 0 : i64, tpu.core_type = #tpu.core_type<tc>, window_params = [{transform_indices = @transform_0, window_bounds = array<i64: 1, 400, 256>}, {pipeline_mode = #tpu.pipeline_mode<synchronous>, transform_indices = @transform_1, window_bounds = array<i64: 256, 128>}, {pipeline_mode = #tpu.pipeline_mode<synchronous>, transform_indices = @transform_2, window_bounds = array<i64: 1, 128>}, {transform_indices = @transform_3, window_bounds = array<i64: 1, 400, 128>}]} {
    %c0 = arith.constant 0 : index
    %c0_0 = arith.constant 0 : index
    %c0_1 = arith.constant 0 : index
    %0 = vector.load %arg1[%c0, %c0_0, %c0_1] : memref<1x400x256xbf16, #tpu.memory_space<vmem>>, vector<1x400x256xbf16>
    %1 = vector.shape_cast %0 : vector<1x400x256xbf16> to vector<400x256xbf16>
    %c0_2 = arith.constant 0 : index
    %c0_3 = arith.constant 0 : index
    %2 = vector.load %arg2[%c0_2, %c0_3] : memref<256x128xbf16, #tpu.memory_space<vmem>>, vector<256x128xbf16>
    %cst = arith.constant dense<0.000000e+00> : vector<400x128xf32>
    %3 = tpu.matmul %1, %2, %cst {dimension_numbers = #tpu.dot_dimension_numbers<[1], [0], [0], [1], [0, 0, 1, 1], [], []>} : vector<400x256xbf16>, vector<256x128xbf16>, vector<400x128xf32> -> vector<400x128xf32>
    %c0_4 = arith.constant 0 : index
    %c0_5 = arith.constant 0 : index
    %4 = vector.load %arg3[%c0_4, %c0_5] : memref<1x128xf32, #tpu.memory_space<vmem>>, vector<1x128xf32>
    %5 = vector.broadcast %4 : vector<1x128xf32> to vector<400x128xf32>
    %6 = arith.addf %3, %5 : vector<400x128xf32>
    %cst_6 = arith.constant 0.000000e+00 : f32
    %7 = vector.broadcast %cst_6 : f32 to vector<400x128xf32>
    %8 = arith.maximumf %6, %7 : vector<400x128xf32>
    %9 = arith.truncf %8 : vector<400x128xf32> to vector<400x128xbf16>
    %c0_7 = arith.constant 0 : index
    %c0_8 = arith.constant 0 : index
    %c0_9 = arith.constant 0 : index
    %10 = vector.load %arg4[%c0_7, %c0_8, %c0_9] : memref<1x400x128xbf16, #tpu.memory_space<vmem>>, vector<1x400x128xbf16>
    %11 = vector.shape_cast %10 : vector<1x400x128xbf16> to vector<400x128xbf16>
    %12 = vector.shape_cast %9 : vector<400x128xbf16> to vector<1x400x128xbf16>
    tpu.vector_store %arg4[%c0_7, %c0_8, %c0_9], %12 {strides = array<i32>} : memref<1x400x128xbf16, #tpu.memory_space<vmem>>, vector<1x400x128xbf16>,
    return
  }
  func.func @transform_0(%arg0: i32) -> (i32, i32, i32) {
    %c0_i32 = arith.constant 0 : i32
    %c0_i32_0 = arith.constant 0 : i32
    %c0_i32_1 = arith.constant 0 : i32
    return %arg0, %c0_i32, %c0_i32_0 : i32, i32, i32
  }
  func.func @transform_1(%arg0: i32) -> (i32, i32) {
    %c0_i32 = arith.constant 0 : i32
    %c0_i32_0 = arith.constant 0 : i32
    %c0_i32_1 = arith.constant 0 : i32
    return %c0_i32, %c0_i32_0 : i32, i32
  }
  func.func @transform_2(%arg0: i32) -> (i32, i32) {
    %c0_i32 = arith.constant 0 : i32
    %c0_i32_0 = arith.constant 0 : i32
    %c0_i32_1 = arith.constant 0 : i32
    return %c0_i32, %c0_i32_0 : i32, i32
  }
  func.func @transform_3(%arg0: i32) -> (i32, i32, i32) {
    %c0_i32 = arith.constant 0 : i32
    %c0_i32_0 = arith.constant 0 : i32
    %c0_i32_1 = arith.constant 0 : i32
    return %arg0, %c0_i32, %c0_i32_0 : i32, i32, i32
  }
}

module attributes {stable_mosaic.version = 11 : i64} {
  func.func @_conv_kernel(%arg0: i32, %arg1: memref<1x81x256xbf16, #tpu.memory_space<vmem>>, %arg2: memref<256x32xbf16, #tpu.memory_space<vmem>>, %arg3: memref<1x32xf32, #tpu.memory_space<vmem>>, %arg4: memref<1x81x32xbf16, #tpu.memory_space<vmem>>) attributes {dimension_semantics = [#tpu.dimension_semantics<parallel>], iteration_bounds = array<i64: 2>, scalar_prefetch = 0 : i64, scratch_operands = 0 : i64, tpu.core_type = #tpu.core_type<tc>, window_params = [{transform_indices = @transform_0, window_bounds = array<i64: 1, 81, 256>}, {pipeline_mode = #tpu.pipeline_mode<synchronous>, transform_indices = @transform_1, window_bounds = array<i64: 256, 32>}, {pipeline_mode = #tpu.pipeline_mode<synchronous>, transform_indices = @transform_2, window_bounds = array<i64: 1, 32>}, {transform_indices = @transform_3, window_bounds = array<i64: 1, 81, 32>}]} {
    %c0 = arith.constant 0 : index
    %c0_0 = arith.constant 0 : index
    %c0_1 = arith.constant 0 : index
    %0 = vector.load %arg1[%c0, %c0_0, %c0_1] : memref<1x81x256xbf16, #tpu.memory_space<vmem>>, vector<1x81x256xbf16>
    %1 = vector.shape_cast %0 : vector<1x81x256xbf16> to vector<81x256xbf16>
    %c0_2 = arith.constant 0 : index
    %c0_3 = arith.constant 0 : index
    %2 = vector.load %arg2[%c0_2, %c0_3] : memref<256x32xbf16, #tpu.memory_space<vmem>>, vector<256x32xbf16>
    %cst = arith.constant dense<0.000000e+00> : vector<81x32xf32>
    %3 = tpu.matmul %1, %2, %cst {dimension_numbers = #tpu.dot_dimension_numbers<[1], [0], [0], [1], [0, 0, 1, 1], [], []>} : vector<81x256xbf16>, vector<256x32xbf16>, vector<81x32xf32> -> vector<81x32xf32>
    %c0_4 = arith.constant 0 : index
    %c0_5 = arith.constant 0 : index
    %4 = vector.load %arg3[%c0_4, %c0_5] : memref<1x32xf32, #tpu.memory_space<vmem>>, vector<1x32xf32>
    %5 = vector.broadcast %4 : vector<1x32xf32> to vector<81x32xf32>
    %6 = arith.addf %3, %5 : vector<81x32xf32>
    %cst_6 = arith.constant 0.000000e+00 : f32
    %7 = vector.broadcast %cst_6 : f32 to vector<81x32xf32>
    %8 = arith.maximumf %6, %7 : vector<81x32xf32>
    %9 = arith.truncf %8 : vector<81x32xf32> to vector<81x32xbf16>
    %c0_7 = arith.constant 0 : index
    %c0_8 = arith.constant 0 : index
    %c0_9 = arith.constant 0 : index
    %10 = vector.load %arg4[%c0_7, %c0_8, %c0_9] : memref<1x81x32xbf16, #tpu.memory_space<vmem>>, vector<1x81x32xbf16>
    %11 = vector.shape_cast %10 : vector<1x81x32xbf16> to vector<81x32xbf16>
    %12 = vector.shape_cast %9 : vector<81x32xbf16> to vector<1x81x32xbf16>
    tpu.vector_store %arg4[%c0_7, %c0_8, %c0_9], %12 {strides = array<i32>} : memref<1x81x32xbf16, #tpu.memory_space<vmem>>, vector<1x81x32xbf16>,
    return
  }
  func.func @transform_0(%arg0: i32) -> (i32, i32, i32) {
    %c0_i32 = arith.constant 0 : i32
    %c0_i32_0 = arith.constant 0 : i32
    %c0_i32_1 = arith.constant 0 : i32
    return %arg0, %c0_i32, %c0_i32_0 : i32, i32, i32
  }
  func.func @transform_1(%arg0: i32) -> (i32, i32) {
    %c0_i32 = arith.constant 0 : i32
    %c0_i32_0 = arith.constant 0 : i32
    %c0_i32_1 = arith.constant 0 : i32
    return %c0_i32, %c0_i32_0 : i32, i32
  }
  func.func @transform_2(%arg0: i32) -> (i32, i32) {
    %c0_i32 = arith.constant 0 : i32
    %c0_i32_0 = arith.constant 0 : i32
    %c0_i32_1 = arith.constant 0 : i32
    return %c0_i32, %c0_i32_0 : i32, i32
  }
  func.func @transform_3(%arg0: i32) -> (i32, i32, i32) {
    %c0_i32 = arith.constant 0 : i32
    %c0_i32_0 = arith.constant 0 : i32
    %c0_i32_1 = arith.constant 0 : i32
    return %arg0, %c0_i32, %c0_i32_0 : i32, i32, i32
  }
}

module attributes {stable_mosaic.version = 11 : i64} {
  func.func @_fc_kernel(%arg0: i32, %arg1: memref<2x2592xbf16, #tpu.memory_space<vmem>>, %arg2: memref<2592x256xbf16, #tpu.memory_space<vmem>>, %arg3: memref<1x256xf32, #tpu.memory_space<vmem>>, %arg4: memref<256x128xbf16, #tpu.memory_space<vmem>>, %arg5: memref<1x128xf32, #tpu.memory_space<vmem>>, %arg6: memref<2x128xf32, #tpu.memory_space<vmem>>) attributes {dimension_semantics = [#tpu.dimension_semantics<parallel>], iteration_bounds = array<i64: 1>, scalar_prefetch = 0 : i64, scratch_operands = 0 : i64, tpu.core_type = #tpu.core_type<tc>, window_params = [{transform_indices = @transform_0, window_bounds = array<i64: 2, 2592>}, {pipeline_mode = #tpu.pipeline_mode<synchronous>, transform_indices = @transform_1, window_bounds = array<i64: 2592, 256>}, {pipeline_mode = #tpu.pipeline_mode<synchronous>, transform_indices = @transform_2, window_bounds = array<i64: 1, 256>}, {pipeline_mode = #tpu.pipeline_mode<synchronous>, transform_indices = @transform_3, window_bounds = array<i64: 256, 128>}, {pipeline_mode = #tpu.pipeline_mode<synchronous>, transform_indices = @transform_4, window_bounds = array<i64: 1, 128>}, {transform_indices = @transform_5, window_bounds = array<i64: 2, 128>}]} {
    %c0 = arith.constant 0 : index
    %c0_0 = arith.constant 0 : index
    %0 = vector.load %arg1[%c0, %c0_0] : memref<2x2592xbf16, #tpu.memory_space<vmem>>, vector<2x2592xbf16>
    %c0_1 = arith.constant 0 : index
    %c0_2 = arith.constant 0 : index
    %1 = vector.load %arg2[%c0_1, %c0_2] : memref<2592x256xbf16, #tpu.memory_space<vmem>>, vector<2592x256xbf16>
    %cst = arith.constant dense<0.000000e+00> : vector<2x256xf32>
    %2 = tpu.matmul %0, %1, %cst {dimension_numbers = #tpu.dot_dimension_numbers<[1], [0], [0], [1], [0, 0, 1, 1], [], []>} : vector<2x2592xbf16>, vector<2592x256xbf16>, vector<2x256xf32> -> vector<2x256xf32>
    %c0_3 = arith.constant 0 : index
    %c0_4 = arith.constant 0 : index
    %3 = vector.load %arg3[%c0_3, %c0_4] : memref<1x256xf32, #tpu.memory_space<vmem>>, vector<1x256xf32>
    %4 = vector.broadcast %3 : vector<1x256xf32> to vector<2x256xf32>
    %5 = arith.addf %2, %4 : vector<2x256xf32>
    %cst_5 = arith.constant 0.000000e+00 : f32
    %6 = vector.broadcast %cst_5 : f32 to vector<2x256xf32>
    %7 = arith.maximumf %5, %6 : vector<2x256xf32>
    %8 = arith.truncf %7 : vector<2x256xf32> to vector<2x256xbf16>
    %c0_6 = arith.constant 0 : index
    %c0_7 = arith.constant 0 : index
    %9 = vector.load %arg4[%c0_6, %c0_7] : memref<256x128xbf16, #tpu.memory_space<vmem>>, vector<256x128xbf16>
    %cst_8 = arith.constant dense<0.000000e+00> : vector<2x128xf32>
    %10 = tpu.matmul %8, %9, %cst_8 {dimension_numbers = #tpu.dot_dimension_numbers<[1], [0], [0], [1], [0, 0, 1, 1], [], []>} : vector<2x256xbf16>, vector<256x128xbf16>, vector<2x128xf32> -> vector<2x128xf32>
    %c0_9 = arith.constant 0 : index
    %c0_10 = arith.constant 0 : index
    %11 = vector.load %arg5[%c0_9, %c0_10] : memref<1x128xf32, #tpu.memory_space<vmem>>, vector<1x128xf32>
    %12 = vector.broadcast %11 : vector<1x128xf32> to vector<2x128xf32>
    %13 = arith.addf %10, %12 : vector<2x128xf32>
    %c0_11 = arith.constant 0 : index
    %c0_12 = arith.constant 0 : index
    %14 = vector.load %arg6[%c0_11, %c0_12] : memref<2x128xf32, #tpu.memory_space<vmem>>, vector<2x128xf32>
    tpu.vector_store %arg6[%c0_11, %c0_12], %13 {strides = array<i32>} : memref<2x128xf32, #tpu.memory_space<vmem>>, vector<2x128xf32>,
    return
  }
  func.func @transform_0(%arg0: i32) -> (i32, i32) {
    %c0_i32 = arith.constant 0 : i32
    %c0_i32_0 = arith.constant 0 : i32
    return %arg0, %c0_i32 : i32, i32
  }
  func.func @transform_1(%arg0: i32) -> (i32, i32) {
    %c0_i32 = arith.constant 0 : i32
    %c0_i32_0 = arith.constant 0 : i32
    %c0_i32_1 = arith.constant 0 : i32
    return %c0_i32, %c0_i32_0 : i32, i32
  }
  func.func @transform_2(%arg0: i32) -> (i32, i32) {
    %c0_i32 = arith.constant 0 : i32
    %c0_i32_0 = arith.constant 0 : i32
    %c0_i32_1 = arith.constant 0 : i32
    return %c0_i32, %c0_i32_0 : i32, i32
  }
  func.func @transform_3(%arg0: i32) -> (i32, i32) {
    %c0_i32 = arith.constant 0 : i32
    %c0_i32_0 = arith.constant 0 : i32
    %c0_i32_1 = arith.constant 0 : i32
    return %c0_i32, %c0_i32_0 : i32, i32
  }
  func.func @transform_4(%arg0: i32) -> (i32, i32) {
    %c0_i32 = arith.constant 0 : i32
    %c0_i32_0 = arith.constant 0 : i32
    %c0_i32_1 = arith.constant 0 : i32
    return %c0_i32, %c0_i32_0 : i32, i32
  }
  func.func @transform_5(%arg0: i32) -> (i32, i32) {
    %c0_i32 = arith.constant 0 : i32
    %c0_i32_0 = arith.constant 0 : i32
    return %arg0, %c0_i32 : i32, i32
  }
}

</mosaic_0001>

<llo_original>
// kernel: qcn_forward.3
$region0: #{qcn_forward.3}
  #allocation0 [shape = 'u32[]', space=smem, size = 0x4, offset = 0x4, fixed_abs, tag = 'smem constant byte address 0x4 - core index']
  #allocation1 [shape = 'u32[144,128]{1,0:T(1,128)}', space=vmem, size = 0x12000, scoped, tag = 'internal scratch']
  %s0 = inlined_call_operand.vmem [shape: bf16[2,400,256], index: 0, kind: input, shape index: {}]
  %s1 = inlined_call_operand.vmem [shape: bf16[256,128], index: 1, kind: input, shape index: {}]
  %s2 = inlined_call_operand.vmem [shape: f32[1,128], index: 2, kind: input, shape index: {}]
  %s3 = inlined_call_operand.vmem [shape: bf16[2,400,128], index: 3, kind: output, shape index: {}]
  %s4 = sld [smem:[#allocation0]]
  $region45: #{qcn_forward.3} parent=0
    _
  %s6 = ssub.s32 1, %s4
  %s7 = scalar_select 0, %s6, %s4
  loop: start=0, step=1, limit=4
  $region2: #{qcn_forward.3} parent=0 // loop_pre_header
    _
  $region3: #{qcn_forward.3} parent=0 // loop_header
    %s9 = sphi 0, %s13
    %p10 = scmp.ge.s32.totalorder %s9, 4
    %s19 = sphi 0, %s21
    %s22 = sphi 0, %s19
    %s23 = sphi 0, %s22
    %s39 = sphi 0, %s23
    %s43 = sphi 0, %s43
    %s45 = sphi 0, %s43
    %s46 = sphi 0, %s45
    %s60 = sphi 0, %s46
    %s64 = sphi 0, %s64
    %s66 = sphi 0, %s64
    %s67 = sphi 0, %s66
    %s81 = sphi 0, %s67
    %s87 = sphi 0, %s89
    %s90 = sphi 0, %s87
    %s91 = sphi 0, %s90
    %s107 = sphi 0, %s91
  $region4: #{qcn_forward.3} parent=0 // loop_header_branch
    %12 = sbr.rel (%p10) target = $region8
  $region5: #{qcn_forward.3} parent=0 // loop_body
    %s14 = ssub.s32 %s9, 1
    %s15 = ssub.s32 %s9, 2
    %s16 = sadd.s32 %s9, 1
    %s17 = ssub.s32 %s9, %s16
    %p18 = scmp.eq.s32.totalorder %s17, 0
    %s20 = sadd.s32 %s19, 1
    %s21 = scalar_select %p18, %s19, %s20
    %p24 = pneg %p18
    %p25 = scmp.eq.s32.totalorder %s9, 1
    %p26 = por %p24, %p25
    %p27 = scmp.ne.s32.totalorder %s19, %s22
    %p28 = scmp.eq.s32.totalorder %s9, 0
    %p29 = por %p27, %p28
    %p30 = scmp.ne.s32.totalorder %s19, %s22
    %p31 = scmp.eq.s32.totalorder %s14, 1
    %p32 = por %p30, %p31
    %p33 = scmp.ne.s32.totalorder %s22, %s23
    %p34 = scmp.eq.s32.totalorder %s14, 0
    %p35 = por %p33, %p34
    %p36 = scmp.ne.s32.totalorder %s22, %s23
    %p37 = scmp.eq.s32.totalorder %s15, 1
    %p38 = por %p36, %p37
    %p40 = scmp.ne.s32.totalorder %s23, %s39
    %p41 = scmp.eq.s32.totalorder %s15, 0
    %p42 = por %p40, %p41
    %s44 = sadd.s32 %s43, 1
    %p47 = scmp.eq.s32.totalorder %s9, 1
    %p48 = scmp.ne.s32.totalorder %s43, %s45
    %p49 = scmp.eq.s32.totalorder %s9, 0
    %p50 = por %p48, %p49
    %p51 = scmp.ne.s32.totalorder %s43, %s45
    %p52 = scmp.eq.s32.totalorder %s14, 1
    %p53 = por %p51, %p52
    %p54 = scmp.ne.s32.totalorder %s45, %s46
    %p55 = scmp.eq.s32.totalorder %s14, 0
    %p56 = por %p54, %p55
    %p57 = scmp.ne.s32.totalorder %s45, %s46
    %p58 = scmp.eq.s32.totalorder %s15, 1
    %p59 = por %p57, %p58
    %p61 = scmp.ne.s32.totalorder %s46, %s60
    %p62 = scmp.eq.s32.totalorder %s15, 0
    %p63 = por %p61, %p62
    %s65 = sadd.s32 %s64, 1
    %p68 = scmp.eq.s32.totalorder %s9, 1
    %p69 = scmp.ne.s32.totalorder %s64, %s66
    %p70 = scmp.eq.s32.totalorder %s9, 0
    %p71 = por %p69, %p70
    %p72 = scmp.ne.s32.totalorder %s64, %s66
    %p73 = scmp.eq.s32.totalorder %s14, 1
    %p74 = por %p72, %p73
    %p75 = scmp.ne.s32.totalorder %s66, %s67
    %p76 = scmp.eq.s32.totalorder %s14, 0
    %p77 = por %p75, %p76
    %p78 = scmp.ne.s32.totalorder %s66, %s67
    %p79 = scmp.eq.s32.totalorder %s15, 1
    %p80 = por %p78, %p79
    %p82 = scmp.ne.s32.totalorder %s67, %s81
    %p83 = scmp.eq.s32.totalorder %s15, 0
    %p84 = por %p82, %p83
    %s85 = ssub.s32 %s9, %s16
    %p86 = scmp.eq.s32.totalorder %s85, 0
    %s88 = sadd.s32 %s87, 1
    %s89 = scalar_select %p86, %s87, %s88
    %p92 = pneg %p86
    %p93 = scmp.eq.s32.totalorder %s9, 1
    %p94 = por %p92, %p93
    %p95 = scmp.ne.s32.totalorder %s87, %s90
    %p96 = scmp.eq.s32.totalorder %s9, 0
    %p97 = por %p95, %p96
    %p98 = scmp.ne.s32.totalorder %s87, %s90
    %p99 = scmp.eq.s32.totalorder %s14, 1
    %p100 = por %p98, %p99
    %p101 = scmp.ne.s32.totalorder %s90, %s91
    %p102 = scmp.eq.s32.totalorder %s14, 0
    %p103 = por %p101, %p102
    %p104 = scmp.ne.s32.totalorder %s90, %s91
    %p105 = scmp.eq.s32.totalorder %s15, 1
    %p106 = por %p104, %p105
    %p108 = scmp.ne.s32.totalorder %s91, %s107
    %p109 = scmp.eq.s32.totalorder %s15, 0
    %p110 = por %p108, %p109
    %p111 = scmp.le.s32.totalorder 1, %s9
    %p112 = scmp.lt.s32.totalorder %s9, 3
    %p113 = pnand %p111, %p112
    %p114 = pneg %p113
    // Predicated region
    $region9: #{qcn_forward.3} parent=5 // pred_check
      _
    $region10: #{qcn_forward.3} parent=5 // pred_check_branch
      %116 = sbr.rel (%p113) target = $region12
    $region11: #{qcn_forward.3} parent=5 // pred_region
      %s117 = ssub.s32 %s9, 1
      // Predicated region
      $region13: #{qcn_forward.3} parent=11 // pred_check
        %p118 = pneg %p56
      $region14: #{qcn_forward.3} parent=11 // pred_check_branch
        %120 = sbr.rel (%p118) target = $region16
      $region15: #{qcn_forward.3} parent=11 // pred_region
        _
      $region16: #{qcn_forward.3} parent=11 // pred_fallthru
        _
      // Predicated region
      $region17: #{qcn_forward.3} parent=11 // pred_check
        %p121 = pneg %p77
      $region18: #{qcn_forward.3} parent=11 // pred_check_branch
        %123 = sbr.rel (%p121) target = $region20
      $region19: #{qcn_forward.3} parent=11 // pred_region
        _
      $region20: #{qcn_forward.3} parent=11 // pred_fallthru
        _
    $region12: #{qcn_forward.3} parent=5 // pred_fallthru
      _
    %p124 = scmp.lt.s32.totalorder %s9, 2
    // Predicated region
    $region21: #{qcn_forward.3} parent=5 // pred_check
      %p125 = pneg %p124
    $region22: #{qcn_forward.3} parent=5 // pred_check_branch
      %127 = sbr.rel (%p125) target = $region24
    $region23: #{qcn_forward.3} parent=5 // pred_region
      // Predicated region
      $region25: #{qcn_forward.3} parent=23 // pred_check
        %p128 = pneg %p29
      $region26: #{qcn_forward.3} parent=23 // pred_check_branch
        %130 = sbr.rel (%p128) target = $region28
      $region27: #{qcn_forward.3} parent=23 // pred_region
        %p131 = scmp.lt.s32.totalorder %s9, 1
        %s132 = scalar_select %p131, %s9, 1
        %s133 = smul.addr %s132, 100
        %s134 = smul.addr %s133, 4
        %s135 = scalar_lea.vmem %s0, %s134
      $region28: #{qcn_forward.3} parent=23 // pred_fallthru
        _
    $region24: #{qcn_forward.3} parent=5 // pred_fallthru
      _
    %p136 = scmp.le.s32.totalorder 1, %s9
    %p137 = scmp.lt.s32.totalorder %s9, 3
    %p138 = pnand %p136, %p137
    %p139 = pneg %p138
    // Predicated region
    $region29: #{qcn_forward.3} parent=5 // pred_check
      _
    $region30: #{qcn_forward.3} parent=5 // pred_check_branch
      %141 = sbr.rel (%p138) target = $region32
    $region31: #{qcn_forward.3} parent=5 // pred_region
      %s142 = ssub.s32 %s9, 1
      %p143 = scmp.lt.s32.totalorder %s14, 1
      %s144 = scalar_select %p143, %s14, 1
      %s145 = smul.addr %s144, 100
      %s146 = smul.addr %s145, 4
      %s147 = scalar_lea.vmem %s0, %s146
      %p148 = pneg %p35
      %p149 = pneg %p32
      %p150 = pneg %p56
      %p151 = pneg %p53
      %p152 = pneg %p77
      %p153 = pneg %p74
      %p154 = pneg %p103
      %p155 = pneg %p100
      %p156 = scmp.lt.s32.totalorder %s14, 1
      %s157 = scalar_select %p156, %s14, 1
      %s158 = smul.addr %s157, 50
      %s159 = smul.addr %s158, 4
      %s160 = scalar_lea.vmem %s3, %s159
      %p161 = scmp.lt.s32.totalorder %s14, 1
      %s162 = scalar_select %p161, %s14, 1
      %s163 = smul.addr %s162, 100
      %s164 = smul.addr %s163, 4
      %s165 = scalar_lea.vmem %s0, %s164
      %p166 = scmp.lt.s32.totalorder %s14, 1
      %s167 = scalar_select %p166, %s14, 1
      %s168 = smul.addr %s167, 50
      %s169 = smul.addr %s168, 4
      %s170 = scalar_lea.vmem %s3, %s169
      %v172 = vld [vmem:[%s165] sm:$0xff]
      %v173 = vld [vmem:[%s165 + $0x8] sm:$0xff]
      %v174 = vld [vmem:[%s165 + $0x10] sm:$0xff]
      %v175 = vld [vmem:[%s165 + $0x18] sm:$0xff]
      %v176 = vld [vmem:[%s165 + $0x20] sm:$0xff]
      %v177 = vld [vmem:[%s165 + $0x28] sm:$0xff]
      %v178 = vld [vmem:[%s165 + $0x30] sm:$0xff]
      %v179 = vld [vmem:[%s165 + $0x38] sm:$0xff]
      %v180 = vld [vmem:[%s165 + $0x40] sm:$0xff]
      %v181 = vld [vmem:[%s165 + $0x48] sm:$0xff]
      %v182 = vld [vmem:[%s165 + $0x50] sm:$0xff]
      %v183 = vld [vmem:[%s165 + $0x58] sm:$0xff]
      %v184 = vld [vmem:[%s165 + $0x60] sm:$0xff]
      %v185 = vld [vmem:[%s165 + $0x68] sm:$0xff]
      %v186 = vld [vmem:[%s165 + $0x70] sm:$0xff]
      %v187 = vld [vmem:[%s165 + $0x78] sm:$0xff]
      %v188 = vld [vmem:[%s165 + $0x80] sm:$0xff]
      %v189 = vld [vmem:[%s165 + $0x88] sm:$0xff]
      %v190 = vld [vmem:[%s165 + $0x90] sm:$0xff]
      %v191 = vld [vmem:[%s165 + $0x98] sm:$0xff]
      %v192 = vld [vmem:[%s165 + $0xa0] sm:$0xff]
      %v193 = vld [vmem:[%s165 + $0xa8] sm:$0xff]
      %v194 = vld [vmem:[%s165 + $0xb0] sm:$0xff]
      %v195 = vld [vmem:[%s165 + $0xb8] sm:$0xff]
      %v196 = vld [vmem:[%s165 + $0xc0] sm:$0xff]
      %v197 = vld [vmem:[%s165 + $0xc8] sm:$0xff]
      %v198 = vld [vmem:[%s165 + $0xd0] sm:$0xff]
      %v199 = vld [vmem:[%s165 + $0xd8] sm:$0xff]
      %v200 = vld [vmem:[%s165 + $0xe0] sm:$0xff]
      %v201 = vld [vmem:[%s165 + $0xe8] sm:$0xff]
      %v202 = vld [vmem:[%s165 + $0xf0] sm:$0xff]
      %v203 = vld [vmem:[%s165 + $0xf8] sm:$0xff]
      %v204 = vld [vmem:[%s165 + $0x100] sm:$0xff]
      %v205 = vld [vmem:[%s165 + $0x108] sm:$0xff]
      %v206 = vld [vmem:[%s165 + $0x110] sm:$0xff]
      %v207 = vld [vmem:[%s165 + $0x118] sm:$0xff]
      %v208 = vld [vmem:[%s165 + $0x120] sm:$0xff]
      %v209 = vld [vmem:[%s165 + $0x128] sm:$0xff]
      %v210 = vld [vmem:[%s165 + $0x130] sm:$0xff]
      %v211 = vld [vmem:[%s165 + $0x138] sm:$0xff]
      %v212 = vld [vmem:[%s165 + $0x140] sm:$0xff]
      %v213 = vld [vmem:[%s165 + $0x148] sm:$0xff]
      %v214 = vld [vmem:[%s165 + $0x150] sm:$0xff]
      %v215 = vld [vmem:[%s165 + $0x158] sm:$0xff]
      %v216 = vld [vmem:[%s165 + $0x160] sm:$0xff]
      %v217 = vld [vmem:[%s165 + $0x168] sm:$0xff]
      %v218 = vld [vmem:[%s165 + $0x170] sm:$0xff]
      %v219 = vld [vmem:[%s165 + $0x178] sm:$0xff]
      %v220 = vld [vmem:[%s165 + $0x180] sm:$0xff]
      %v221 = vld [vmem:[%s165 + $0x188] sm:$0xff]
      %v222 = vld [vmem:[%s1] sm:$0xf]
      %v223 = vld [vmem:[%s1 + $0x4] sm:$0xf]
      %v224 = vld [vmem:[%s1 + $0x8] sm:$0xf]
      %v225 = vld [vmem:[%s1 + $0xc] sm:$0xf]
      %v226 = vld [vmem:[%s1 + $0x10] sm:$0xf]
      %v227 = vld [vmem:[%s1 + $0x14] sm:$0xf]
      %v228 = vld [vmem:[%s1 + $0x18] sm:$0xf]
      %v229 = vld [vmem:[%s1 + $0x1c] sm:$0xf]
      %v230 = vld [vmem:[%s1 + $0x20] sm:$0xf]
      %v231 = vld [vmem:[%s1 + $0x24] sm:$0xf]
      %v232 = vld [vmem:[%s1 + $0x28] sm:$0xf]
      %v233 = vld [vmem:[%s1 + $0x2c] sm:$0xf]
      %v234 = vld [vmem:[%s1 + $0x30] sm:$0xf]
      %v235 = vld [vmem:[%s1 + $0x34] sm:$0xf]
      %v236 = vld [vmem:[%s1 + $0x38] sm:$0xf]
      %v237 = vld [vmem:[%s1 + $0x3c] sm:$0xf]
      %v238 = vld [vmem:[%s1 + $0x40] sm:$0xf]
      %v239 = vld [vmem:[%s1 + $0x44] sm:$0xf]
      %v240 = vld [vmem:[%s1 + $0x48] sm:$0xf]
      %v241 = vld [vmem:[%s1 + $0x4c] sm:$0xf]
      %v242 = vld [vmem:[%s1 + $0x50] sm:$0xf]
      %v243 = vld [vmem:[%s1 + $0x54] sm:$0xf]
      %v244 = vld [vmem:[%s1 + $0x58] sm:$0xf]
      %v245 = vld [vmem:[%s1 + $0x5c] sm:$0xf]
      %v246 = vld [vmem:[%s1 + $0x60] sm:$0xf]
      %v247 = vld [vmem:[%s1 + $0x64] sm:$0xf]
      %v248 = vld [vmem:[%s1 + $0x68] sm:$0xf]
      %v249 = vld [vmem:[%s1 + $0x6c] sm:$0xf]
      %v250 = vld [vmem:[%s1 + $0x70] sm:$0xf]
      %v251 = vld [vmem:[%s1 + $0x74] sm:$0xf]
      %v252 = vld [vmem:[%s1 + $0x78] sm:$0xf]
      %v253 = vld [vmem:[%s1 + $0x7c] sm:$0xf]
      %v254 = vld [vmem:[%s2] sm:$0x1]
      %v256 = vlaneseq
      %v257 = vshrl.u32 %v256, 7
      %v258 = vsub.s32 0, %v257
      %v259 = vrot.slane %v254, %v258
      %v311 = vunpack.c.l.b16 %v172
      %v312 = vunpack.c.h.b16 %v172
      %v313 = vunpack.c.l.b16 %v173
      %v314 = vunpack.c.h.b16 %v173
      %v315 = vunpack.c.l.b16 %v174
      %v316 = vunpack.c.h.b16 %v174
      %v317 = vunpack.c.l.b16 %v175
      %v318 = vunpack.c.h.b16 %v175
      %v319 = vunpack.c.l.b16 %v176
      %v320 = vunpack.c.h.b16 %v176
      %v321 = vunpack.c.l.b16 %v177
      %v322 = vunpack.c.h.b16 %v177
      %v323 = vunpack.c.l.b16 %v178
      %v324 = vunpack.c.h.b16 %v178
      %v325 = vunpack.c.l.b16 %v179
      %v326 = vunpack.c.h.b16 %v179
      %v327 = vunpack.c.l.b16 %v180
      %v328 = vunpack.c.h.b16 %v180
      %v329 = vunpack.c.l.b16 %v181
      %v330 = vunpack.c.h.b16 %v181
      %v331 = vunpack.c.l.b16 %v182
      %v332 = vunpack.c.h.b16 %v182
      %v333 = vunpack.c.l.b16 %v183
      %v334 = vunpack.c.h.b16 %v183
      %v335 = vunpack.c.l.b16 %v184
      %v336 = vunpack.c.h.b16 %v184
      %v337 = vunpack.c.l.b16 %v185
      %v338 = vunpack.c.h.b16 %v185
      %v339 = vunpack.c.l.b16 %v186
      %v340 = vunpack.c.h.b16 %v186
      %v341 = vunpack.c.l.b16 %v187
      %v342 = vunpack.c.h.b16 %v187
      %v343 = vunpack.c.l.b16 %v188
      %v344 = vunpack.c.h.b16 %v188
      %v345 = vunpack.c.l.b16 %v189
      %v346 = vunpack.c.h.b16 %v189
      %v347 = vunpack.c.l.b16 %v190
      %v348 = vunpack.c.h.b16 %v190
      %v349 = vunpack.c.l.b16 %v191
      %v350 = vunpack.c.h.b16 %v191
      %v351 = vunpack.c.l.b16 %v192
      %v352 = vunpack.c.h.b16 %v192
      %v353 = vunpack.c.l.b16 %v193
      %v354 = vunpack.c.h.b16 %v193
      %v355 = vunpack.c.l.b16 %v194
      %v356 = vunpack.c.h.b16 %v194
      %v357 = vunpack.c.l.b16 %v195
      %v358 = vunpack.c.h.b16 %v195
      %v359 = vunpack.c.l.b16 %v196
      %v360 = vunpack.c.h.b16 %v196
      %v361 = vunpack.c.l.b16 %v197
      %v362 = vunpack.c.h.b16 %v197
      %v363 = vunpack.c.l.b16 %v198
      %v364 = vunpack.c.h.b16 %v198
      %v365 = vunpack.c.l.b16 %v199
      %v366 = vunpack.c.h.b16 %v199
      %v367 = vunpack.c.l.b16 %v200
      %v368 = vunpack.c.h.b16 %v200
      %v369 = vunpack.c.l.b16 %v201
      %v370 = vunpack.c.h.b16 %v201
      %v371 = vunpack.c.l.b16 %v202
      %v372 = vunpack.c.h.b16 %v202
      %v373 = vunpack.c.l.b16 %v203
      %v374 = vunpack.c.h.b16 %v203
      %v375 = vunpack.c.l.b16 %v204
      %v376 = vunpack.c.h.b16 %v204
      %v377 = vunpack.c.l.b16 %v205
      %v378 = vunpack.c.h.b16 %v205
      %v379 = vunpack.c.l.b16 %v206
      %v380 = vunpack.c.h.b16 %v206
      %v381 = vunpack.c.l.b16 %v207
      %v382 = vunpack.c.h.b16 %v207
      %v383 = vunpack.c.l.b16 %v208
      %v384 = vunpack.c.h.b16 %v208
      %v385 = vunpack.c.l.b16 %v209
      %v386 = vunpack.c.h.b16 %v209
      %v387 = vunpack.c.l.b16 %v210
      %v388 = vunpack.c.h.b16 %v210
      %v389 = vunpack.c.l.b16 %v211
      %v390 = vunpack.c.h.b16 %v211
      %v391 = vunpack.c.l.b16 %v212
      %v392 = vunpack.c.h.b16 %v212
      %v393 = vunpack.c.l.b16 %v213
      %v394 = vunpack.c.h.b16 %v213
      %v395 = vunpack.c.l.b16 %v214
      %v396 = vunpack.c.h.b16 %v214
      %v397 = vunpack.c.l.b16 %v215
      %v398 = vunpack.c.h.b16 %v215
      %v399 = vunpack.c.l.b16 %v216
      %v400 = vunpack.c.h.b16 %v216
      %v401 = vunpack.c.l.b16 %v217
      %v402 = vunpack.c.h.b16 %v217
      %v403 = vunpack.c.l.b16 %v218
      %v404 = vunpack.c.h.b16 %v218
      %v405 = vunpack.c.l.b16 %v219
      %v406 = vunpack.c.h.b16 %v219
      %v407 = vunpack.c.l.b16 %v220
      %v408 = vunpack.c.h.b16 %v220
      %v409 = vunpack.c.l.b16 %v221
      %v410 = vunpack.c.h.b16 %v221
      %v411 = vpack.c.b16 %v313, %v311
      %v412 = vpack.c.b16 %v314, %v312
      %v413 = vpack.c.b16 %v317, %v315
      %v414 = vpack.c.b16 %v318, %v316
      %v415 = vpack.c.b16 %v321, %v319
      %v416 = vpack.c.b16 %v322, %v320
      %v417 = vpack.c.b16 %v325, %v323
      %v418 = vpack.c.b16 %v326, %v324
      %v419 = vpack.c.b16 %v329, %v327
      %v420 = vpack.c.b16 %v330, %v328
      %v421 = vpack.c.b16 %v333, %v331
      %v422 = vpack.c.b16 %v334, %v332
      %v423 = vpack.c.b16 %v337, %v335
      %v424 = vpack.c.b16 %v338, %v336
      %v425 = vpack.c.b16 %v341, %v339
      %v426 = vpack.c.b16 %v342, %v340
      %v427 = vpack.c.b16 %v345, %v343
      %v428 = vpack.c.b16 %v346, %v344
      %v429 = vpack.c.b16 %v349, %v347
      %v430 = vpack.c.b16 %v350, %v348
      %v431 = vpack.c.b16 %v353, %v351
      %v432 = vpack.c.b16 %v354, %v352
      %v433 = vpack.c.b16 %v357, %v355
      %v434 = vpack.c.b16 %v358, %v356
      %v435 = vpack.c.b16 %v361, %v359
      %v436 = vpack.c.b16 %v362, %v360
      %v437 = vpack.c.b16 %v365, %v363
      %v438 = vpack.c.b16 %v366, %v364
      %v439 = vpack.c.b16 %v369, %v367
      %v440 = vpack.c.b16 %v370, %v368
      %v441 = vpack.c.b16 %v373, %v371
      %v442 = vpack.c.b16 %v374, %v372
      %v443 = vpack.c.b16 %v377, %v375
      %v444 = vpack.c.b16 %v378, %v376
      %v445 = vpack.c.b16 %v381, %v379
      %v446 = vpack.c.b16 %v382, %v380
      %v447 = vpack.c.b16 %v385, %v383
      %v448 = vpack.c.b16 %v386, %v384
      %v449 = vpack.c.b16 %v389, %v387
      %v450 = vpack.c.b16 %v390, %v388
      %v451 = vpack.c.b16 %v393, %v391
      %v452 = vpack.c.b16 %v394, %v392
      %v453 = vpack.c.b16 %v397, %v395
      %v454 = vpack.c.b16 %v398, %v396
      %v455 = vpack.c.b16 %v401, %v399
      %v456 = vpack.c.b16 %v402, %v400
      %v457 = vpack.c.b16 %v405, %v403
      %v458 = vpack.c.b16 %v406, %v404
      %v459 = vpack.c.b16 %v409, %v407
      %v460 = vpack.c.b16 %v410, %v408
      %v543 = vunpack.c.l.b16 %v222
      %v544 = vunpack.c.l.b16 %v223
      %v545 = vunpack.c.l.b16 %v224
      %v546 = vunpack.c.l.b16 %v225
      %v547 = vunpack.c.l.b16 %v226
      %v548 = vunpack.c.l.b16 %v227
      %v549 = vunpack.c.l.b16 %v228
      %v550 = vunpack.c.l.b16 %v229
      %v551 = vunpack.c.l.b16 %v230
      %v552 = vunpack.c.l.b16 %v231
      %v553 = vunpack.c.l.b16 %v232
      %v554 = vunpack.c.l.b16 %v233
      %v555 = vunpack.c.l.b16 %v234
      %v556 = vunpack.c.l.b16 %v235
      %v557 = vunpack.c.l.b16 %v236
      %v558 = vunpack.c.l.b16 %v237
      %v559 = vunpack.c.l.b16 %v238
      %v560 = vunpack.c.l.b16 %v239
      %v561 = vunpack.c.l.b16 %v240
      %v562 = vunpack.c.l.b16 %v241
      %v563 = vunpack.c.l.b16 %v242
      %v564 = vunpack.c.l.b16 %v243
      %v565 = vunpack.c.l.b16 %v244
      %v566 = vunpack.c.l.b16 %v245
      %v567 = vunpack.c.l.b16 %v246
      %v568 = vunpack.c.l.b16 %v247
      %v569 = vunpack.c.l.b16 %v248
      %v570 = vunpack.c.l.b16 %v249
      %v571 = vunpack.c.l.b16 %v250
      %v572 = vunpack.c.l.b16 %v251
      %v573 = vunpack.c.l.b16 %v252
      %v574 = vunpack.c.l.b16 %v253
      %v575 = vpack.c.b16 %v544, %v543
      %v576 = vpack.c.b16 %v546, %v545
      %v577 = vpack.c.b16 %v548, %v547
      %v578 = vpack.c.b16 %v550, %v549
      %v579 = vpack.c.b16 %v552, %v551
      %v580 = vpack.c.b16 %v554, %v553
      %v581 = vpack.c.b16 %v556, %v555
      %v582 = vpack.c.b16 %v558, %v557
      %v583 = vpack.c.b16 %v560, %v559
      %v584 = vpack.c.b16 %v562, %v561
      %v585 = vpack.c.b16 %v564, %v563
      %v586 = vpack.c.b16 %v566, %v565
      %v587 = vpack.c.b16 %v568, %v567
      %v588 = vpack.c.b16 %v570, %v569
      %v589 = vpack.c.b16 %v572, %v571
      %v590 = vpack.c.b16 %v574, %v573
      %607 = vmatprep.subr.bf16.mxu0 0
      %608 = vmatpush1.bf16.msra.mxu0 %v575
      %609 = vmatprep.subr.bf16.mxu0 0
      %610 = vmatpush1.bf16.msra.mxu0 %v576
      %611 = vmatprep.subr.bf16.mxu0 0
      %612 = vmatpush1.bf16.msra.mxu0 %v577
      %613 = vmatprep.subr.bf16.mxu0 0
      %614 = vmatpush1.bf16.msra.mxu0 %v578
      %615 = vmatprep.subr.bf16.mxu0 0
      %616 = vmatpush1.bf16.msra.mxu0 %v579
      %617 = vmatprep.subr.bf16.mxu0 0
      %618 = vmatpush1.bf16.msra.mxu0 %v580
      %619 = vmatprep.subr.bf16.mxu0 0
      %620 = vmatpush1.bf16.msra.mxu0 %v581
      %621 = vmatprep.subr.bf16.mxu0 0
      %622 = vmatpush1.bf16.msra.mxu0 %v582
      %623 = vmatprep.subr.bf16.mxu0 0
      %624 = vmatpush1.bf16.msra.mxu0 %v583
      %625 = vmatprep.subr.bf16.mxu0 0
      %626 = vmatpush1.bf16.msra.mxu0 %v584
      %627 = vmatprep.subr.bf16.mxu0 0
      %628 = vmatpush1.bf16.msra.mxu0 %v585
      %629 = vmatprep.subr.bf16.mxu0 0
      %630 = vmatpush1.bf16.msra.mxu0 %v586
      %631 = vmatprep.subr.bf16.mxu0 0
      %632 = vmatpush1.bf16.msra.mxu0 %v587
      %633 = vmatprep.subr.bf16.mxu0 0
      %634 = vmatpush1.bf16.msra.mxu0 %v588
      %635 = vmatprep.subr.bf16.mxu0 0
      %636 = vmatpush1.bf16.msra.mxu0 %v589
      %637 = vmatprep.subr.bf16.mxu0 0
      %638 = vmatpush1.bf16.msra.mxu0 %v590
      %639 = vmatprep.mubr.bf16.mxu0 %v412
      %640 = vmatmul.mubr.bf16.gmra.mrb[0].mxu0 %v411
      %v641 = vpop.f32.mrb[0].mxu0
      %v642 = vadd.f32 %v259, %v641
      %v643 = vpop.f32.mrb[0].mxu0
      %v644 = vpop.f32.mrb[0].mxu0
      %v645 = vadd.f32 %v259, %v644
      %v646 = vpop.f32.mrb[0].mxu0
      %647 = vmatprep.mubr.bf16.mxu0 %v414
      %648 = vmatmul.mubr.bf16.gmra.mrb[0].mxu0 %v413
      %v649 = vpop.f32.mrb[0].mxu0
      %v650 = vadd.f32 %v259, %v649
      %v651 = vpop.f32.mrb[0].mxu0
      %v652 = vpop.f32.mrb[0].mxu0
      %v653 = vadd.f32 %v259, %v652
      %v654 = vpop.f32.mrb[0].mxu0
      %655 = vmatprep.mubr.bf16.mxu0 %v416
      %656 = vmatmul.mubr.bf16.gmra.mrb[0].mxu0 %v415
      %v657 = vpop.f32.mrb[0].mxu0
      %v658 = vadd.f32 %v259, %v657
      %v659 = vpop.f32.mrb[0].mxu0
      %v660 = vpop.f32.mrb[0].mxu0
      %v661 = vadd.f32 %v259, %v660
      %v662 = vpop.f32.mrb[0].mxu0
      %663 = vmatprep.mubr.bf16.mxu0 %v418
      %664 = vmatmul.mubr.bf16.gmra.mrb[0].mxu0 %v417
      %v665 = vpop.f32.mrb[0].mxu0
      %v666 = vadd.f32 %v259, %v665
      %v667 = vpop.f32.mrb[0].mxu0
      %v668 = vpop.f32.mrb[0].mxu0
      %v669 = vadd.f32 %v259, %v668
      %v670 = vpop.f32.mrb[0].mxu0
      %671 = vmatprep.mubr.bf16.mxu0 %v420
      %672 = vmatmul.mubr.bf16.gmra.mrb[0].mxu0 %v419
      %v673 = vpop.f32.mrb[0].mxu0
      %v674 = vadd.f32 %v259, %v673
      %v675 = vpop.f32.mrb[0].mxu0
      %v676 = vpop.f32.mrb[0].mxu0
      %v677 = vadd.f32 %v259, %v676
      %v678 = vpop.f32.mrb[0].mxu0
      %679 = vmatprep.mubr.bf16.mxu0 %v422
      %680 = vmatmul.mubr.bf16.gmra.mrb[0].mxu0 %v421
      %v681 = vpop.f32.mrb[0].mxu0
      %v682 = vadd.f32 %v259, %v681
      %v683 = vpop.f32.mrb[0].mxu0
      %v684 = vpop.f32.mrb[0].mxu0
      %v685 = vadd.f32 %v259, %v684
      %v686 = vpop.f32.mrb[0].mxu0
      %687 = vmatprep.mubr.bf16.mxu0 %v424
      %688 = vmatmul.mubr.bf16.gmra.mrb[0].mxu0 %v423
      %v689 = vpop.f32.mrb[0].mxu0
      %v690 = vadd.f32 %v259, %v689
      %v691 = vpop.f32.mrb[0].mxu0
      %v692 = vpop.f32.mrb[0].mxu0
      %v693 = vadd.f32 %v259, %v692
      %v694 = vpop.f32.mrb[0].mxu0
      %695 = vmatprep.mubr.bf16.mxu0 %v426
      %696 = vmatmul.mubr.bf16.gmra.mrb[0].mxu0 %v425
      %v697 = vpop.f32.mrb[0].mxu0
      %v698 = vadd.f32 %v259, %v697
      %v699 = vpop.f32.mrb[0].mxu0
      %v700 = vpop.f32.mrb[0].mxu0
      %v701 = vadd.f32 %v259, %v700
      %v702 = vpop.f32.mrb[0].mxu0
      %703 = vmatprep.mubr.bf16.mxu0 %v428
      %704 = vmatmul.mubr.bf16.gmra.mrb[0].mxu0 %v427
      %v705 = vpop.f32.mrb[0].mxu0
      %v706 = vadd.f32 %v259, %v705
      %v707 = vpop.f32.mrb[0].mxu0
      %v708 = vpop.f32.mrb[0].mxu0
      %v709 = vadd.f32 %v259, %v708
      %v710 = vpop.f32.mrb[0].mxu0
      %711 = vmatprep.mubr.bf16.mxu0 %v430
      %712 = vmatmul.mubr.bf16.gmra.mrb[0].mxu0 %v429
      %v713 = vpop.f32.mrb[0].mxu0
      %v714 = vadd.f32 %v259, %v713
      %v715 = vpop.f32.mrb[0].mxu0
      %v716 = vpop.f32.mrb[0].mxu0
      %v717 = vadd.f32 %v259, %v716
      %v718 = vpop.f32.mrb[0].mxu0
      %719 = vmatprep.mubr.bf16.mxu0 %v432
      %720 = vmatmul.mubr.bf16.gmra.mrb[0].mxu0 %v431
      %v721 = vpop.f32.mrb[0].mxu0
      %v722 = vadd.f32 %v259, %v721
      %v723 = vpop.f32.mrb[0].mxu0
      %v724 = vpop.f32.mrb[0].mxu0
      %v725 = vadd.f32 %v259, %v724
      %v726 = vpop.f32.mrb[0].mxu0
      %727 = vmatprep.mubr.bf16.mxu0 %v434
      %728 = vmatmul.mubr.bf16.gmra.mrb[0].mxu0 %v433
      %v729 = vpop.f32.mrb[0].mxu0
      %v730 = vadd.f32 %v259, %v729
      %v731 = vpop.f32.mrb[0].mxu0
      %v732 = vpop.f32.mrb[0].mxu0
      %v733 = vadd.f32 %v259, %v732
      %v734 = vpop.f32.mrb[0].mxu0
      %735 = vmatprep.mubr.bf16.mxu0 %v436
      %736 = vmatmul.mubr.bf16.gmra.mrb[0].mxu0 %v435
      %v737 = vpop.f32.mrb[0].mxu0
      %v738 = vadd.f32 %v259, %v737
      %v739 = vpop.f32.mrb[0].mxu0
      %v740 = vpop.f32.mrb[0].mxu0
      %v741 = vadd.f32 %v259, %v740
      %v742 = vpop.f32.mrb[0].mxu0
      %743 = vmatprep.mubr.bf16.mxu0 %v438
      %744 = vmatmul.mubr.bf16.gmra.mrb[0].mxu0 %v437
      %v745 = vpop.f32.mrb[0].mxu0
      %v746 = vadd.f32 %v259, %v745
      %v747 = vpop.f32.mrb[0].mxu0
      %v748 = vpop.f32.mrb[0].mxu0
      %v749 = vadd.f32 %v259, %v748
      %v750 = vpop.f32.mrb[0].mxu0
      %751 = vmatprep.mubr.bf16.mxu0 %v440
      %752 = vmatmul.mubr.bf16.gmra.mrb[0].mxu0 %v439
      %v753 = vpop.f32.mrb[0].mxu0
      %v754 = vadd.f32 %v259, %v753
      %v755 = vpop.f32.mrb[0].mxu0
      %v756 = vpop.f32.mrb[0].mxu0
      %v757 = vadd.f32 %v259, %v756
      %v758 = vpop.f32.mrb[0].mxu0
      %759 = vmatprep.mubr.bf16.mxu0 %v442
      %760 = vmatmul.mubr.bf16.gmra.mrb[0].mxu0 %v441
      %v761 = vpop.f32.mrb[0].mxu0
      %v762 = vadd.f32 %v259, %v761
      %v763 = vpop.f32.mrb[0].mxu0
      %v764 = vpop.f32.mrb[0].mxu0
      %v765 = vadd.f32 %v259, %v764
      %v766 = vpop.f32.mrb[0].mxu0
      %767 = vmatprep.mubr.bf16.mxu0 %v444
      %768 = vmatmul.mubr.bf16.gmra.mrb[0].mxu0 %v443
      %v769 = vpop.f32.mrb[0].mxu0
      %v770 = vadd.f32 %v259, %v769
      %v771 = vpop.f32.mrb[0].mxu0
      %v772 = vpop.f32.mrb[0].mxu0
      %v773 = vadd.f32 %v259, %v772
      %v774 = vpop.f32.mrb[0].mxu0
      %775 = vmatprep.mubr.bf16.mxu0 %v446
      %776 = vmatmul.mubr.bf16.gmra.mrb[0].mxu0 %v445
      %v777 = vpop.f32.mrb[0].mxu0
      %v778 = vadd.f32 %v259, %v777
      %v779 = vpop.f32.mrb[0].mxu0
      %v780 = vpop.f32.mrb[0].mxu0
      %v781 = vadd.f32 %v259, %v780
      %v782 = vpop.f32.mrb[0].mxu0
      %783 = vmatprep.mubr.bf16.mxu0 %v448
      %784 = vmatmul.mubr.bf16.gmra.mrb[0].mxu0 %v447
      %v785 = vpop.f32.mrb[0].mxu0
      %v786 = vadd.f32 %v259, %v785
      %v787 = vpop.f32.mrb[0].mxu0
      %v788 = vpop.f32.mrb[0].mxu0
      %v789 = vadd.f32 %v259, %v788
      %v790 = vpop.f32.mrb[0].mxu0
      %791 = vmatprep.mubr.bf16.mxu0 %v450
      %792 = vmatmul.mubr.bf16.gmra.mrb[0].mxu0 %v449
      %v793 = vpop.f32.mrb[0].mxu0
      %v794 = vadd.f32 %v259, %v793
      %v795 = vpop.f32.mrb[0].mxu0
      %v796 = vpop.f32.mrb[0].mxu0
      %v797 = vadd.f32 %v259, %v796
      %v798 = vpop.f32.mrb[0].mxu0
      %799 = vmatprep.mubr.bf16.mxu0 %v452
      %800 = vmatmul.mubr.bf16.gmra.mrb[0].mxu0 %v451
      %v801 = vpop.f32.mrb[0].mxu0
      %v802 = vadd.f32 %v259, %v801
      %v803 = vpop.f32.mrb[0].mxu0
      %v804 = vpop.f32.mrb[0].mxu0
      %v805 = vadd.f32 %v259, %v804
      %v806 = vpop.f32.mrb[0].mxu0
      %807 = vmatprep.mubr.bf16.mxu0 %v454
      %808 = vmatmul.mubr.bf16.gmra.mrb[0].mxu0 %v453
      %v809 = vpop.f32.mrb[0].mxu0
      %v810 = vadd.f32 %v259, %v809
      %v811 = vpop.f32.mrb[0].mxu0
      %v812 = vpop.f32.mrb[0].mxu0
      %v813 = vadd.f32 %v259, %v812
      %v814 = vpop.f32.mrb[0].mxu0
      %815 = vmatprep.mubr.bf16.mxu0 %v456
      %816 = vmatmul.mubr.bf16.gmra.mrb[0].mxu0 %v455
      %v817 = vpop.f32.mrb[0].mxu0
      %v818 = vadd.f32 %v259, %v817
      %v819 = vpop.f32.mrb[0].mxu0
      %v820 = vpop.f32.mrb[0].mxu0
      %v821 = vadd.f32 %v259, %v820
      %v822 = vpop.f32.mrb[0].mxu0
      %823 = vmatprep.mubr.bf16.mxu0 %v458
      %824 = vmatmul.mubr.bf16.gmra.mrb[0].mxu0 %v457
      %v825 = vpop.f32.mrb[0].mxu0
      %v826 = vadd.f32 %v259, %v825
      %v827 = vpop.f32.mrb[0].mxu0
      %v828 = vpop.f32.mrb[0].mxu0
      %v829 = vadd.f32 %v259, %v828
      %v830 = vpop.f32.mrb[0].mxu0
      %831 = vmatprep.mubr.bf16.mxu0 %v460
      %832 = vmatmul.mubr.bf16.gmra.mrb[0].mxu0 %v459
      %v833 = vpop.f32.mrb[0].mxu0
      %v834 = vadd.f32 %v259, %v833
      %v835 = vpop.f32.mrb[0].mxu0
      %v836 = vpop.f32.mrb[0].mxu0
      %v837 = vadd.f32 %v259, %v836
      %v838 = vpop.f32.mrb[0].mxu0
      %839 = vdwg.mxu0
      %v840 = vmax.f32 %v642, 0.0
      %v841 = vmax.f32 %v645, 0.0
      %v842 = vmax.f32 %v650, 0.0
      %v843 = vmax.f32 %v653, 0.0
      %v844 = vmax.f32 %v658, 0.0
      %v845 = vmax.f32 %v661, 0.0
      %v846 = vmax.f32 %v666, 0.0
      %v847 = vmax.f32 %v669, 0.0
      %v848 = vmax.f32 %v674, 0.0
      %v849 = vmax.f32 %v677, 0.0
      %v850 = vmax.f32 %v682, 0.0
      %v851 = vmax.f32 %v685, 0.0
      %v852 = vmax.f32 %v690, 0.0
      %v853 = vmax.f32 %v693, 0.0
      %v854 = vmax.f32 %v698, 0.0
      %v855 = vmax.f32 %v701, 0.0
      %v856 = vmax.f32 %v706, 0.0
      %v857 = vmax.f32 %v709, 0.0
      %v858 = vmax.f32 %v714, 0.0
      %v859 = vmax.f32 %v717, 0.0
      %v860 = vmax.f32 %v722, 0.0
      %v861 = vmax.f32 %v725, 0.0
      %v862 = vmax.f32 %v730, 0.0
      %v863 = vmax.f32 %v733, 0.0
      %v864 = vmax.f32 %v738, 0.0
      %v865 = vmax.f32 %v741, 0.0
      %v866 = vmax.f32 %v746, 0.0
      %v867 = vmax.f32 %v749, 0.0
      %v868 = vmax.f32 %v754, 0.0
      %v869 = vmax.f32 %v757, 0.0
      %v870 = vmax.f32 %v762, 0.0
      %v871 = vmax.f32 %v765, 0.0
      %v872 = vmax.f32 %v770, 0.0
      %v873 = vmax.f32 %v773, 0.0
      %v874 = vmax.f32 %v778, 0.0
      %v875 = vmax.f32 %v781, 0.0
      %v876 = vmax.f32 %v786, 0.0
      %v877 = vmax.f32 %v789, 0.0
      %v878 = vmax.f32 %v794, 0.0
      %v879 = vmax.f32 %v797, 0.0
      %v880 = vmax.f32 %v802, 0.0
      %v881 = vmax.f32 %v805, 0.0
      %v882 = vmax.f32 %v810, 0.0
      %v883 = vmax.f32 %v813, 0.0
      %v884 = vmax.f32 %v818, 0.0
      %v885 = vmax.f32 %v821, 0.0
      %v886 = vmax.f32 %v826, 0.0
      %v887 = vmax.f32 %v829, 0.0
      %v888 = vmax.f32 %v834, 0.0
      %v889 = vmax.f32 %v837, 0.0
      %v890 = vpack.c.bf16 %v841, %v840
      %v891 = vpack.c.bf16 %v843, %v842
      %v892 = vpack.c.bf16 %v845, %v844
      %v893 = vpack.c.bf16 %v847, %v846
      %v894 = vpack.c.bf16 %v849, %v848
      %v895 = vpack.c.bf16 %v851, %v850
      %v896 = vpack.c.bf16 %v853, %v852
      %v897 = vpack.c.bf16 %v855, %v854
      %v898 = vpack.c.bf16 %v857, %v856
      %v899 = vpack.c.bf16 %v859, %v858
      %v900 = vpack.c.bf16 %v861, %v860
      %v901 = vpack.c.bf16 %v863, %v862
      %v902 = vpack.c.bf16 %v865, %v864
      %v903 = vpack.c.bf16 %v867, %v866
      %v904 = vpack.c.bf16 %v869, %v868
      %v905 = vpack.c.bf16 %v871, %v870
      %v906 = vpack.c.bf16 %v873, %v872
      %v907 = vpack.c.bf16 %v875, %v874
      %v908 = vpack.c.bf16 %v877, %v876
      %v909 = vpack.c.bf16 %v879, %v878
      %v910 = vpack.c.bf16 %v881, %v880
      %v911 = vpack.c.bf16 %v883, %v882
      %v912 = vpack.c.bf16 %v885, %v884
      %v913 = vpack.c.bf16 %v887, %v886
      %v914 = vpack.c.bf16 %v889, %v888
      %v940 = vunpack.c.l.b16 %v890
      %v941 = vunpack.c.h.b16 %v890
      %v942 = vunpack.c.l.b16 %v891
      %v943 = vunpack.c.h.b16 %v891
      %v944 = vunpack.c.l.b16 %v892
      %v945 = vunpack.c.h.b16 %v892
      %v946 = vunpack.c.l.b16 %v893
      %v947 = vunpack.c.h.b16 %v893
      %v948 = vunpack.c.l.b16 %v894
      %v949 = vunpack.c.h.b16 %v894
      %v950 = vunpack.c.l.b16 %v895
      %v951 = vunpack.c.h.b16 %v895
      %v952 = vunpack.c.l.b16 %v896
      %v953 = vunpack.c.h.b16 %v896
      %v954 = vunpack.c.l.b16 %v897
      %v955 = vunpack.c.h.b16 %v897
      %v956 = vunpack.c.l.b16 %v898
      %v957 = vunpack.c.h.b16 %v898
      %v958 = vunpack.c.l.b16 %v899
      %v959 = vunpack.c.h.b16 %v899
      %v960 = vunpack.c.l.b16 %v900
      %v961 = vunpack.c.h.b16 %v900
      %v962 = vunpack.c.l.b16 %v901
      %v963 = vunpack.c.h.b16 %v901
      %v964 = vunpack.c.l.b16 %v902
      %v965 = vunpack.c.h.b16 %v902
      %v966 = vunpack.c.l.b16 %v903
      %v967 = vunpack.c.h.b16 %v903
      %v968 = vunpack.c.l.b16 %v904
      %v969 = vunpack.c.h.b16 %v904
      %v970 = vunpack.c.l.b16 %v905
      %v971 = vunpack.c.h.b16 %v905
      %v972 = vunpack.c.l.b16 %v906
      %v973 = vunpack.c.h.b16 %v906
      %v974 = vunpack.c.l.b16 %v907
      %v975 = vunpack.c.h.b16 %v907
      %v976 = vunpack.c.l.b16 %v908
      %v977 = vunpack.c.h.b16 %v908
      %v978 = vunpack.c.l.b16 %v909
      %v979 = vunpack.c.h.b16 %v909
      %v980 = vunpack.c.l.b16 %v910
      %v981 = vunpack.c.h.b16 %v910
      %v982 = vunpack.c.l.b16 %v911
      %v983 = vunpack.c.h.b16 %v911
      %v984 = vunpack.c.l.b16 %v912
      %v985 = vunpack.c.h.b16 %v912
      %v986 = vunpack.c.l.b16 %v913
      %v987 = vunpack.c.h.b16 %v913
      %v988 = vunpack.c.l.b16 %v914
      %v989 = vunpack.c.h.b16 %v914
      %v990 = vpack.c.b16 %v940, %v940
      %v991 = vpack.c.b16 %v941, %v941
      %v992 = vpack.c.b16 %v942, %v942
      %v993 = vpack.c.b16 %v943, %v943
      %v994 = vpack.c.b16 %v944, %v944
      %v995 = vpack.c.b16 %v945, %v945
      %v996 = vpack.c.b16 %v946, %v946
      %v997 = vpack.c.b16 %v947, %v947
      %v998 = vpack.c.b16 %v948, %v948
      %v999 = vpack.c.b16 %v949, %v949
      %v1000 = vpack.c.b16 %v950, %v950
      %v1001 = vpack.c.b16 %v951, %v951
      %v1002 = vpack.c.b16 %v952, %v952
      %v1003 = vpack.c.b16 %v953, %v953
      %v1004 = vpack.c.b16 %v954, %v954
      %v1005 = vpack.c.b16 %v955, %v955
      %v1006 = vpack.c.b16 %v956, %v956
      %v1007 = vpack.c.b16 %v957, %v957
      %v1008 = vpack.c.b16 %v958, %v958
      %v1009 = vpack.c.b16 %v959, %v959
      %v1010 = vpack.c.b16 %v960, %v960
      %v1011 = vpack.c.b16 %v961, %v961
      %v1012 = vpack.c.b16 %v962, %v962
      %v1013 = vpack.c.b16 %v963, %v963
      %v1014 = vpack.c.b16 %v964, %v964
      %v1015 = vpack.c.b16 %v965, %v965
      %v1016 = vpack.c.b16 %v966, %v966
      %v1017 = vpack.c.b16 %v967, %v967
      %v1018 = vpack.c.b16 %v968, %v968
      %v1019 = vpack.c.b16 %v969, %v969
      %v1020 = vpack.c.b16 %v970, %v970
      %v1021 = vpack.c.b16 %v971, %v971
      %v1022 = vpack.c.b16 %v972, %v972
      %v1023 = vpack.c.b16 %v973, %v973
      %v1024 = vpack.c.b16 %v974, %v974
      %v1025 = vpack.c.b16 %v975, %v975
      %v1026 = vpack.c.b16 %v976, %v976
      %v1027 = vpack.c.b16 %v977, %v977
      %v1028 = vpack.c.b16 %v978, %v978
      %v1029 = vpack.c.b16 %v979, %v979
      %v1030 = vpack.c.b16 %v980, %v980
      %v1031 = vpack.c.b16 %v981, %v981
      %v1032 = vpack.c.b16 %v982, %v982
      %v1033 = vpack.c.b16 %v983, %v983
      %v1034 = vpack.c.b16 %v984, %v984
      %v1035 = vpack.c.b16 %v985, %v985
      %v1036 = vpack.c.b16 %v986, %v986
      %v1037 = vpack.c.b16 %v987, %v987
      %v1038 = vpack.c.b16 %v988, %v988
      %v1039 = vpack.c.b16 %v989, %v989
      %1090 = vst [vmem:[%s170] sm:$0xf] %v990
      %1091 = vst [vmem:[%s170 + $0x4] sm:$0xf] %v991
      %1092 = vst [vmem:[%s170 + $0x8] sm:$0xf] %v992
      %1093 = vst [vmem:[%s170 + $0xc] sm:$0xf] %v993
      %1094 = vst [vmem:[%s170 + $0x10] sm:$0xf] %v994
      %1095 = vst [vmem:[%s170 + $0x14] sm:$0xf] %v995
      %1096 = vst [vmem:[%s170 + $0x18] sm:$0xf] %v996
      %1097 = vst [vmem:[%s170 + $0x1c] sm:$0xf] %v997
      %1098 = vst [vmem:[%s170 + $0x20] sm:$0xf] %v998
      %1099 = vst [vmem:[%s170 + $0x24] sm:$0xf] %v999
      %1100 = vst [vmem:[%s170 + $0x28] sm:$0xf] %v1000
      %1101 = vst [vmem:[%s170 + $0x2c] sm:$0xf] %v1001
      %1102 = vst [vmem:[%s170 + $0x30] sm:$0xf] %v1002
      %1103 = vst [vmem:[%s170 + $0x34] sm:$0xf] %v1003
      %1104 = vst [vmem:[%s170 + $0x38] sm:$0xf] %v1004
      %1105 = vst [vmem:[%s170 + $0x3c] sm:$0xf] %v1005
      %1106 = vst [vmem:[%s170 + $0x40] sm:$0xf] %v1006
      %1107 = vst [vmem:[%s170 + $0x44] sm:$0xf] %v1007
      %1108 = vst [vmem:[%s170 + $0x48] sm:$0xf] %v1008
      %1109 = vst [vmem:[%s170 + $0x4c] sm:$0xf] %v1009
      %1110 = vst [vmem:[%s170 + $0x50] sm:$0xf] %v1010
      %1111 = vst [vmem:[%s170 + $0x54] sm:$0xf] %v1011
      %1112 = vst [vmem:[%s170 + $0x58] sm:$0xf] %v1012
      %1113 = vst [vmem:[%s170 + $0x5c] sm:$0xf] %v1013
      %1114 = vst [vmem:[%s170 + $0x60] sm:$0xf] %v1014
      %1115 = vst [vmem:[%s170 + $0x64] sm:$0xf] %v1015
      %1116 = vst [vmem:[%s170 + $0x68] sm:$0xf] %v1016
      %1117 = vst [vmem:[%s170 + $0x6c] sm:$0xf] %v1017
      %1118 = vst [vmem:[%s170 + $0x70] sm:$0xf] %v1018
      %1119 = vst [vmem:[%s170 + $0x74] sm:$0xf] %v1019
      %1120 = vst [vmem:[%s170 + $0x78] sm:$0xf] %v1020
      %1121 = vst [vmem:[%s170 + $0x7c] sm:$0xf] %v1021
      %1122 = vst [vmem:[%s170 + $0x80] sm:$0xf] %v1022
      %1123 = vst [vmem:[%s170 + $0x84] sm:$0xf] %v1023
      %1124 = vst [vmem:[%s170 + $0x88] sm:$0xf] %v1024
      %1125 = vst [vmem:[%s170 + $0x8c] sm:$0xf] %v1025
      %1126 = vst [vmem:[%s170 + $0x90] sm:$0xf] %v1026
      %1127 = vst [vmem:[%s170 + $0x94] sm:$0xf] %v1027
      %1128 = vst [vmem:[%s170 + $0x98] sm:$0xf] %v1028
      %1129 = vst [vmem:[%s170 + $0x9c] sm:$0xf] %v1029
      %1130 = vst [vmem:[%s170 + $0xa0] sm:$0xf] %v1030
      %1131 = vst [vmem:[%s170 + $0xa4] sm:$0xf] %v1031
      %1132 = vst [vmem:[%s170 + $0xa8] sm:$0xf] %v1032
      %1133 = vst [vmem:[%s170 + $0xac] sm:$0xf] %v1033
      %1134 = vst [vmem:[%s170 + $0xb0] sm:$0xf] %v1034
      %1135 = vst [vmem:[%s170 + $0xb4] sm:$0xf] %v1035
      %1136 = vst [vmem:[%s170 + $0xb8] sm:$0xf] %v1036
      %1137 = vst [vmem:[%s170 + $0xbc] sm:$0xf] %v1037
      %1138 = vst [vmem:[%s170 + $0xc0] sm:$0xf] %v1038
      %1139 = vst [vmem:[%s170 + $0xc4] sm:$0xf] %v1039
      %p1140 = scmp.lt.s32.totalorder %s14, 1
      %s1141 = scalar_select %p1140, %s14, 1
      %s1142 = smul.addr %s1141, 50
      %s1143 = smul.addr %s1142, 4
      %s1144 = scalar_lea.vmem %s3, %s1143
      // Predicated region
      $region33: #{qcn_forward.3} parent=31 // pred_check
        %p1145 = pneg %p100
      $region34: #{qcn_forward.3} parent=31 // pred_check_branch
        %1147 = sbr.rel (%p1145) target = $region36
      $region35: #{qcn_forward.3} parent=31 // pred_region
        _
      $region36: #{qcn_forward.3} parent=31 // pred_fallthru
        _
    $region32: #{qcn_forward.3} parent=5 // pred_fallthru
      _
    %p1148 = scmp.le.s32.totalorder 2, %s9
    // Predicated region
    $region37: #{qcn_forward.3} parent=5 // pred_check
      %p1149 = pneg %p1148
    $region38: #{qcn_forward.3} parent=5 // pred_check_branch
      %1151 = sbr.rel (%p1149) target = $region40
    $region39: #{qcn_forward.3} parent=5 // pred_region
      %s1152 = ssub.s32 %s9, 2
      // Predicated region
      $region41: #{qcn_forward.3} parent=39 // pred_check
        %p1153 = pneg %p106
      $region42: #{qcn_forward.3} parent=39 // pred_check_branch
        %1155 = sbr.rel (%p1153) target = $region44
      $region43: #{qcn_forward.3} parent=39 // pred_region
        %p1156 = scmp.lt.s32.totalorder %s15, 1
        %s1157 = scalar_select %p1156, %s15, 1
        %s1158 = smul.addr %s1157, 50
        %s1159 = smul.addr %s1158, 4
        %s1160 = scalar_lea.vmem %s3, %s1159
      $region44: #{qcn_forward.3} parent=39 // pred_fallthru
        _
    $region40: #{qcn_forward.3} parent=5 // pred_fallthru
      _
  $region6: #{qcn_forward.3} parent=0 // loop_footer
    %s13 = sadd.s32 1, %s9
  $region7: #{qcn_forward.3} parent=0 // loop_footer_branch
    %8 = sbr.rel target = $region3
  $region8: #{qcn_forward.3} parent=0 // loop_exit
    _

// kernel: qcn_forward.4
$region0: #{qcn_forward.4}
  #allocation0 [shape = 'u32[]', space=smem, size = 0x4, offset = 0x4, fixed_abs, tag = 'smem constant byte address 0x4 - core index']
  #allocation1 [shape = 'u32[144,128]{1,0:T(1,128)}', space=vmem, size = 0x12000, scoped, tag = 'internal scratch']
  %s0 = inlined_call_operand.vmem [shape: bf16[2,81,256], index: 0, kind: input, shape index: {}]
  %s1 = inlined_call_operand.vmem [shape: bf16[256,32], index: 1, kind: input, shape index: {}]
  %s2 = inlined_call_operand.vmem [shape: f32[1,32], index: 2, kind: input, shape index: {}]
  %s3 = inlined_call_operand.vmem [shape: bf16[2,81,32], index: 3, kind: output, shape index: {}]
  %s4 = sld [smem:[#allocation0]]
  $region45: #{qcn_forward.4} parent=0
    _
  %s6 = ssub.s32 1, %s4
  %s7 = scalar_select 0, %s6, %s4
  loop: start=0, step=1, limit=4
  $region2: #{qcn_forward.4} parent=0 // loop_pre_header
    _
  $region3: #{qcn_forward.4} parent=0 // loop_header
    %s9 = sphi 0, %s13
    %p10 = scmp.ge.s32.totalorder %s9, 4
    %s19 = sphi 0, %s21
    %s22 = sphi 0, %s19
    %s23 = sphi 0, %s22
    %s39 = sphi 0, %s23
    %s43 = sphi 0, %s43
    %s45 = sphi 0, %s43
    %s46 = sphi 0, %s45
    %s60 = sphi 0, %s46
    %s64 = sphi 0, %s64
    %s66 = sphi 0, %s64
    %s67 = sphi 0, %s66
    %s81 = sphi 0, %s67
    %s87 = sphi 0, %s89
    %s90 = sphi 0, %s87
    %s91 = sphi 0, %s90
    %s107 = sphi 0, %s91
  $region4: #{qcn_forward.4} parent=0 // loop_header_branch
    %12 = sbr.rel (%p10) target = $region8
  $region5: #{qcn_forward.4} parent=0 // loop_body
    %s14 = ssub.s32 %s9, 1
    %s15 = ssub.s32 %s9, 2
    %s16 = sadd.s32 %s9, 1
    %s17 = ssub.s32 %s9, %s16
    %p18 = scmp.eq.s32.totalorder %s17, 0
    %s20 = sadd.s32 %s19, 1
    %s21 = scalar_select %p18, %s19, %s20
    %p24 = pneg %p18
    %p25 = scmp.eq.s32.totalorder %s9, 1
    %p26 = por %p24, %p25
    %p27 = scmp.ne.s32.totalorder %s19, %s22
    %p28 = scmp.eq.s32.totalorder %s9, 0
    %p29 = por %p27, %p28
    %p30 = scmp.ne.s32.totalorder %s19, %s22
    %p31 = scmp.eq.s32.totalorder %s14, 1
    %p32 = por %p30, %p31
    %p33 = scmp.ne.s32.totalorder %s22, %s23
    %p34 = scmp.eq.s32.totalorder %s14, 0
    %p35 = por %p33, %p34
    %p36 = scmp.ne.s32.totalorder %s22, %s23
    %p37 = scmp.eq.s32.totalorder %s15, 1
    %p38 = por %p36, %p37
    %p40 = scmp.ne.s32.totalorder %s23, %s39
    %p41 = scmp.eq.s32.totalorder %s15, 0
    %p42 = por %p40, %p41
    %s44 = sadd.s32 %s43, 1
    %p47 = scmp.eq.s32.totalorder %s9, 1
    %p48 = scmp.ne.s32.totalorder %s43, %s45
    %p49 = scmp.eq.s32.totalorder %s9, 0
    %p50 = por %p48, %p49
    %p51 = scmp.ne.s32.totalorder %s43, %s45
    %p52 = scmp.eq.s32.totalorder %s14, 1
    %p53 = por %p51, %p52
    %p54 = scmp.ne.s32.totalorder %s45, %s46
    %p55 = scmp.eq.s32.totalorder %s14, 0
    %p56 = por %p54, %p55
    %p57 = scmp.ne.s32.totalorder %s45, %s46
    %p58 = scmp.eq.s32.totalorder %s15, 1
    %p59 = por %p57, %p58
    %p61 = scmp.ne.s32.totalorder %s46, %s60
    %p62 = scmp.eq.s32.totalorder %s15, 0
    %p63 = por %p61, %p62
    %s65 = sadd.s32 %s64, 1
    %p68 = scmp.eq.s32.totalorder %s9, 1
    %p69 = scmp.ne.s32.totalorder %s64, %s66
    %p70 = scmp.eq.s32.totalorder %s9, 0
    %p71 = por %p69, %p70
    %p72 = scmp.ne.s32.totalorder %s64, %s66
    %p73 = scmp.eq.s32.totalorder %s14, 1
    %p74 = por %p72, %p73
    %p75 = scmp.ne.s32.totalorder %s66, %s67
    %p76 = scmp.eq.s32.totalorder %s14, 0
    %p77 = por %p75, %p76
    %p78 = scmp.ne.s32.totalorder %s66, %s67
    %p79 = scmp.eq.s32.totalorder %s15, 1
    %p80 = por %p78, %p79
    %p82 = scmp.ne.s32.totalorder %s67, %s81
    %p83 = scmp.eq.s32.totalorder %s15, 0
    %p84 = por %p82, %p83
    %s85 = ssub.s32 %s9, %s16
    %p86 = scmp.eq.s32.totalorder %s85, 0
    %s88 = sadd.s32 %s87, 1
    %s89 = scalar_select %p86, %s87, %s88
    %p92 = pneg %p86
    %p93 = scmp.eq.s32.totalorder %s9, 1
    %p94 = por %p92, %p93
    %p95 = scmp.ne.s32.totalorder %s87, %s90
    %p96 = scmp.eq.s32.totalorder %s9, 0
    %p97 = por %p95, %p96
    %p98 = scmp.ne.s32.totalorder %s87, %s90
    %p99 = scmp.eq.s32.totalorder %s14, 1
    %p100 = por %p98, %p99
    %p101 = scmp.ne.s32.totalorder %s90, %s91
    %p102 = scmp.eq.s32.totalorder %s14, 0
    %p103 = por %p101, %p102
    %p104 = scmp.ne.s32.totalorder %s90, %s91
    %p105 = scmp.eq.s32.totalorder %s15, 1
    %p106 = por %p104, %p105
    %p108 = scmp.ne.s32.totalorder %s91, %s107
    %p109 = scmp.eq.s32.totalorder %s15, 0
    %p110 = por %p108, %p109
    %p111 = scmp.le.s32.totalorder 1, %s9
    %p112 = scmp.lt.s32.totalorder %s9, 3
    %p113 = pnand %p111, %p112
    %p114 = pneg %p113
    // Predicated region
    $region9: #{qcn_forward.4} parent=5 // pred_check
      _
    $region10: #{qcn_forward.4} parent=5 // pred_check_branch
      %116 = sbr.rel (%p113) target = $region12
    $region11: #{qcn_forward.4} parent=5 // pred_region
      %s117 = ssub.s32 %s9, 1
      // Predicated region
      $region13: #{qcn_forward.4} parent=11 // pred_check
        %p118 = pneg %p56
      $region14: #{qcn_forward.4} parent=11 // pred_check_branch
        %120 = sbr.rel (%p118) target = $region16
      $region15: #{qcn_forward.4} parent=11 // pred_region
        _
      $region16: #{qcn_forward.4} parent=11 // pred_fallthru
        _
      // Predicated region
      $region17: #{qcn_forward.4} parent=11 // pred_check
        %p121 = pneg %p77
      $region18: #{qcn_forward.4} parent=11 // pred_check_branch
        %123 = sbr.rel (%p121) target = $region20
      $region19: #{qcn_forward.4} parent=11 // pred_region
        _
      $region20: #{qcn_forward.4} parent=11 // pred_fallthru
        _
    $region12: #{qcn_forward.4} parent=5 // pred_fallthru
      _
    %p124 = scmp.lt.s32.totalorder %s9, 2
    // Predicated region
    $region21: #{qcn_forward.4} parent=5 // pred_check
      %p125 = pneg %p124
    $region22: #{qcn_forward.4} parent=5 // pred_check_branch
      %127 = sbr.rel (%p125) target = $region24
    $region23: #{qcn_forward.4} parent=5 // pred_region
      // Predicated region
      $region25: #{qcn_forward.4} parent=23 // pred_check
        %p128 = pneg %p29
      $region26: #{qcn_forward.4} parent=23 // pred_check_branch
        %130 = sbr.rel (%p128) target = $region28
      $region27: #{qcn_forward.4} parent=23 // pred_region
        %p131 = scmp.lt.s32.totalorder %s9, 1
        %s132 = scalar_select %p131, %s9, 1
        %s133 = smul.addr %s132, 22
        %s134 = smul.addr %s133, 4
        %s135 = scalar_lea.vmem %s0, %s134
      $region28: #{qcn_forward.4} parent=23 // pred_fallthru
        _
    $region24: #{qcn_forward.4} parent=5 // pred_fallthru
      _
    %p136 = scmp.le.s32.totalorder 1, %s9
    %p137 = scmp.lt.s32.totalorder %s9, 3
    %p138 = pnand %p136, %p137
    %p139 = pneg %p138
    // Predicated region
    $region29: #{qcn_forward.4} parent=5 // pred_check
      _
    $region30: #{qcn_forward.4} parent=5 // pred_check_branch
      %141 = sbr.rel (%p138) target = $region32
    $region31: #{qcn_forward.4} parent=5 // pred_region
      %s142 = ssub.s32 %s9, 1
      %p143 = scmp.lt.s32.totalorder %s14, 1
      %s144 = scalar_select %p143, %s14, 1
      %s145 = smul.addr %s144, 22
      %s146 = smul.addr %s145, 4
      %s147 = scalar_lea.vmem %s0, %s146
      %p148 = pneg %p35
      %p149 = pneg %p32
      %p150 = pneg %p56
      %p151 = pneg %p53
      %p152 = pneg %p77
      %p153 = pneg %p74
      %p154 = pneg %p103
      %p155 = pneg %p100
      %p156 = scmp.lt.s32.totalorder %s14, 1
      %s157 = scalar_select %p156, %s14, 1
      %s158 = smul.addr %s157, 11
      %s159 = smul.addr %s158, 4
      %s160 = scalar_lea.vmem %s3, %s159
      %p161 = scmp.lt.s32.totalorder %s14, 1
      %s162 = scalar_select %p161, %s14, 1
      %s163 = smul.addr %s162, 22
      %s164 = smul.addr %s163, 4
      %s165 = scalar_lea.vmem %s0, %s164
      %p166 = scmp.lt.s32.totalorder %s14, 1
      %s167 = scalar_select %p166, %s14, 1
      %s168 = smul.addr %s167, 11
      %s169 = smul.addr %s168, 4
      %s170 = scalar_lea.vmem %s3, %s169
      %v172 = vld [vmem:[%s165] sm:$0xff]
      %v173 = vld [vmem:[%s165 + $0x8] sm:$0xff]
      %v174 = vld [vmem:[%s165 + $0x10] sm:$0xff]
      %v175 = vld [vmem:[%s165 + $0x18] sm:$0xff]
      %v176 = vld [vmem:[%s165 + $0x20] sm:$0xff]
      %v177 = vld [vmem:[%s165 + $0x28] sm:$0xff]
      %v178 = vld [vmem:[%s165 + $0x30] sm:$0xff]
      %v179 = vld [vmem:[%s165 + $0x38] sm:$0xff]
      %v180 = vld [vmem:[%s165 + $0x40] sm:$0xff]
      %v181 = vld [vmem:[%s165 + $0x48] sm:$0xff]
      %v182 = vld [vmem:[%s165 + $0x50] sm:$0x11]
      %v183 = vld [vmem:[%s1] sm:$0xf]
      %v184 = vld [vmem:[%s1 + $0x4] sm:$0xf]
      %v185 = vld [vmem:[%s1 + $0x8] sm:$0xf]
      %v186 = vld [vmem:[%s1 + $0xc] sm:$0xf]
      %v187 = vld [vmem:[%s1 + $0x10] sm:$0xf]
      %v188 = vld [vmem:[%s1 + $0x14] sm:$0xf]
      %v189 = vld [vmem:[%s1 + $0x18] sm:$0xf]
      %v190 = vld [vmem:[%s1 + $0x1c] sm:$0xf]
      %v191 = vld [vmem:[%s1 + $0x20] sm:$0xf]
      %v192 = vld [vmem:[%s1 + $0x24] sm:$0xf]
      %v193 = vld [vmem:[%s1 + $0x28] sm:$0xf]
      %v194 = vld [vmem:[%s1 + $0x2c] sm:$0xf]
      %v195 = vld [vmem:[%s1 + $0x30] sm:$0xf]
      %v196 = vld [vmem:[%s1 + $0x34] sm:$0xf]
      %v197 = vld [vmem:[%s1 + $0x38] sm:$0xf]
      %v198 = vld [vmem:[%s1 + $0x3c] sm:$0xf]
      %v199 = vld [vmem:[%s1 + $0x40] sm:$0xf]
      %v200 = vld [vmem:[%s1 + $0x44] sm:$0xf]
      %v201 = vld [vmem:[%s1 + $0x48] sm:$0xf]
      %v202 = vld [vmem:[%s1 + $0x4c] sm:$0xf]
      %v203 = vld [vmem:[%s1 + $0x50] sm:$0xf]
      %v204 = vld [vmem:[%s1 + $0x54] sm:$0xf]
      %v205 = vld [vmem:[%s1 + $0x58] sm:$0xf]
      %v206 = vld [vmem:[%s1 + $0x5c] sm:$0xf]
      %v207 = vld [vmem:[%s1 + $0x60] sm:$0xf]
      %v208 = vld [vmem:[%s1 + $0x64] sm:$0xf]
      %v209 = vld [vmem:[%s1 + $0x68] sm:$0xf]
      %v210 = vld [vmem:[%s1 + $0x6c] sm:$0xf]
      %v211 = vld [vmem:[%s1 + $0x70] sm:$0xf]
      %v212 = vld [vmem:[%s1 + $0x74] sm:$0xf]
      %v213 = vld [vmem:[%s1 + $0x78] sm:$0xf]
      %v214 = vld [vmem:[%s1 + $0x7c] sm:$0xf]
      %v215 = vld [vmem:[%s2] sm:$0x1]
      %v217 = vlaneseq
      %v218 = vshrl.u32 %v217, 7
      %v219 = vsub.s32 0, %v218
      %v220 = vrot.slane %v215, %v219
      %v233 = vunpack.c.l.b16 %v172
      %v234 = vunpack.c.h.b16 %v172
      %v235 = vunpack.c.l.b16 %v173
      %v236 = vunpack.c.h.b16 %v173
      %v237 = vunpack.c.l.b16 %v174
      %v238 = vunpack.c.h.b16 %v174
      %v239 = vunpack.c.l.b16 %v175
      %v240 = vunpack.c.h.b16 %v175
      %v241 = vunpack.c.l.b16 %v176
      %v242 = vunpack.c.h.b16 %v176
      %v243 = vunpack.c.l.b16 %v177
      %v244 = vunpack.c.h.b16 %v177
      %v245 = vunpack.c.l.b16 %v178
      %v246 = vunpack.c.h.b16 %v178
      %v247 = vunpack.c.l.b16 %v179
      %v248 = vunpack.c.h.b16 %v179
      %v249 = vunpack.c.l.b16 %v180
      %v250 = vunpack.c.h.b16 %v180
      %v251 = vunpack.c.l.b16 %v181
      %v252 = vunpack.c.h.b16 %v181
      %v253 = vunpack.c.l.b16 %v182
      %v254 = vunpack.c.h.b16 %v182
      %v255 = vpack.c.b16 %v235, %v233
      %v256 = vpack.c.b16 %v236, %v234
      %v257 = vpack.c.b16 %v239, %v237
      %v258 = vpack.c.b16 %v240, %v238
      %v259 = vpack.c.b16 %v243, %v241
      %v260 = vpack.c.b16 %v244, %v242
      %v261 = vpack.c.b16 %v247, %v245
      %v262 = vpack.c.b16 %v248, %v246
      %v263 = vpack.c.b16 %v251, %v249
      %v264 = vpack.c.b16 %v252, %v250
      %v265 = vpack.c.b16 %v253, %v253
      %v266 = vpack.c.b16 %v254, %v254
      %v311 = vunpack.c.l.b16 %v183
      %v312 = vunpack.c.l.b16 %v184
      %v313 = vunpack.c.l.b16 %v185
      %v314 = vunpack.c.l.b16 %v186
      %v315 = vunpack.c.l.b16 %v187
      %v316 = vunpack.c.l.b16 %v188
      %v317 = vunpack.c.l.b16 %v189
      %v318 = vunpack.c.l.b16 %v190
      %v319 = vunpack.c.l.b16 %v191
      %v320 = vunpack.c.l.b16 %v192
      %v321 = vunpack.c.l.b16 %v193
      %v322 = vunpack.c.l.b16 %v194
      %v323 = vunpack.c.l.b16 %v195
      %v324 = vunpack.c.l.b16 %v196
      %v325 = vunpack.c.l.b16 %v197
      %v326 = vunpack.c.l.b16 %v198
      %v327 = vunpack.c.l.b16 %v199
      %v328 = vunpack.c.l.b16 %v200
      %v329 = vunpack.c.l.b16 %v201
      %v330 = vunpack.c.l.b16 %v202
      %v331 = vunpack.c.l.b16 %v203
      %v332 = vunpack.c.l.b16 %v204
      %v333 = vunpack.c.l.b16 %v205
      %v334 = vunpack.c.l.b16 %v206
      %v335 = vunpack.c.l.b16 %v207
      %v336 = vunpack.c.l.b16 %v208
      %v337 = vunpack.c.l.b16 %v209
      %v338 = vunpack.c.l.b16 %v210
      %v339 = vunpack.c.l.b16 %v211
      %v340 = vunpack.c.l.b16 %v212
      %v341 = vunpack.c.l.b16 %v213
      %v342 = vunpack.c.l.b16 %v214
      %v343 = vpack.c.b16 %v312, %v311
      %v344 = vpack.c.b16 %v314, %v313
      %v345 = vpack.c.b16 %v316, %v315
      %v346 = vpack.c.b16 %v318, %v317
      %v347 = vpack.c.b16 %v320, %v319
      %v348 = vpack.c.b16 %v322, %v321
      %v349 = vpack.c.b16 %v324, %v323
      %v350 = vpack.c.b16 %v326, %v325
      %v351 = vpack.c.b16 %v328, %v327
      %v352 = vpack.c.b16 %v330, %v329
      %v353 = vpack.c.b16 %v332, %v331
      %v354 = vpack.c.b16 %v334, %v333
      %v355 = vpack.c.b16 %v336, %v335
      %v356 = vpack.c.b16 %v338, %v337
      %v357 = vpack.c.b16 %v340, %v339
      %v358 = vpack.c.b16 %v342, %v341
      %375 = vmatprep.subr.bf16.mxu0 0
      %376 = vmatpush1.bf16.msra.mxu0 %v343
      %377 = vmatprep.subr.bf16.mxu0 0
      %378 = vmatpush1.bf16.msra.mxu0 %v344
      %379 = vmatprep.subr.bf16.mxu0 0
      %380 = vmatpush1.bf16.msra.mxu0 %v345
      %381 = vmatprep.subr.bf16.mxu0 0
      %382 = vmatpush1.bf16.msra.mxu0 %v346
      %383 = vmatprep.subr.bf16.mxu0 0
      %384 = vmatpush1.bf16.msra.mxu0 %v347
      %385 = vmatprep.subr.bf16.mxu0 0
      %386 = vmatpush1.bf16.msra.mxu0 %v348
      %387 = vmatprep.subr.bf16.mxu0 0
      %388 = vmatpush1.bf16.msra.mxu0 %v349
      %389 = vmatprep.subr.bf16.mxu0 0
      %390 = vmatpush1.bf16.msra.mxu0 %v350
      %391 = vmatprep.subr.bf16.mxu0 0
      %392 = vmatpush1.bf16.msra.mxu0 %v351
      %393 = vmatprep.subr.bf16.mxu0 0
      %394 = vmatpush1.bf16.msra.mxu0 %v352
      %395 = vmatprep.subr.bf16.mxu0 0
      %396 = vmatpush1.bf16.msra.mxu0 %v353
      %397 = vmatprep.subr.bf16.mxu0 0
      %398 = vmatpush1.bf16.msra.mxu0 %v354
      %399 = vmatprep.subr.bf16.mxu0 0
      %400 = vmatpush1.bf16.msra.mxu0 %v355
      %401 = vmatprep.subr.bf16.mxu0 0
      %402 = vmatpush1.bf16.msra.mxu0 %v356
      %403 = vmatprep.subr.bf16.mxu0 0
      %404 = vmatpush1.bf16.msra.mxu0 %v357
      %405 = vmatprep.subr.bf16.mxu0 0
      %406 = vmatpush1.bf16.msra.mxu0 %v358
      %407 = vmatprep.mubr.bf16.mxu0 %v256
      %408 = vmatmul.mubr.bf16.gmra.mrb[0].mxu0 %v255
      %v409 = vpop.f32.mrb[0].mxu0
      %v410 = vadd.f32 %v220, %v409
      %v411 = vpop.f32.mrb[0].mxu0
      %v412 = vpop.f32.mrb[0].mxu0
      %v413 = vadd.f32 %v220, %v412
      %v414 = vpop.f32.mrb[0].mxu0
      %415 = vmatprep.mubr.bf16.mxu0 %v258
      %416 = vmatmul.mubr.bf16.gmra.mrb[0].mxu0 %v257
      %v417 = vpop.f32.mrb[0].mxu0
      %v418 = vadd.f32 %v220, %v417
      %v419 = vpop.f32.mrb[0].mxu0
      %v420 = vpop.f32.mrb[0].mxu0
      %v421 = vadd.f32 %v220, %v420
      %v422 = vpop.f32.mrb[0].mxu0
      %423 = vmatprep.mubr.bf16.mxu0 %v260
      %424 = vmatmul.mubr.bf16.gmra.mrb[0].mxu0 %v259
      %v425 = vpop.f32.mrb[0].mxu0
      %v426 = vadd.f32 %v220, %v425
      %v427 = vpop.f32.mrb[0].mxu0
      %v428 = vpop.f32.mrb[0].mxu0
      %v429 = vadd.f32 %v220, %v428
      %v430 = vpop.f32.mrb[0].mxu0
      %431 = vmatprep.mubr.bf16.mxu0 %v262
      %432 = vmatmul.mubr.bf16.gmra.mrb[0].mxu0 %v261
      %v433 = vpop.f32.mrb[0].mxu0
      %v434 = vadd.f32 %v220, %v433
      %v435 = vpop.f32.mrb[0].mxu0
      %v436 = vpop.f32.mrb[0].mxu0
      %v437 = vadd.f32 %v220, %v436
      %v438 = vpop.f32.mrb[0].mxu0
      %439 = vmatprep.mubr.bf16.mxu0 %v264
      %440 = vmatmul.mubr.bf16.gmra.mrb[0].mxu0 %v263
      %v441 = vpop.f32.mrb[0].mxu0
      %v442 = vadd.f32 %v220, %v441
      %v443 = vpop.f32.mrb[0].mxu0
      %v444 = vpop.f32.mrb[0].mxu0
      %v445 = vadd.f32 %v220, %v444
      %v446 = vpop.f32.mrb[0].mxu0
      %447 = vmatprep.mubr.bf16.mxu0 %v266
      %448 = vmatmul.mubr.bf16.gmra.mrb[0].mxu0 %v265
      %v449 = vpop.f32.mrb[0].mxu0
      %v450 = vadd.f32 %v220, %v449
      %v451 = vpop.f32.mrb[0].mxu0
      %v452 = vpop.f32.mrb[0].mxu0
      %v453 = vpop.f32.mrb[0].mxu0
      %454 = vdwg.mxu0
      %v455 = vmax.f32 %v410, 0.0
      %v456 = vmax.f32 %v413, 0.0
      %v457 = vmax.f32 %v418, 0.0
      %v458 = vmax.f32 %v421, 0.0
      %v459 = vmax.f32 %v426, 0.0
      %v460 = vmax.f32 %v429, 0.0
      %v461 = vmax.f32 %v434, 0.0
      %v462 = vmax.f32 %v437, 0.0
      %v463 = vmax.f32 %v442, 0.0
      %v464 = vmax.f32 %v445, 0.0
      %v465 = vmax.f32 %v450, 0.0
      %v466 = vpack.c.bf16 %v456, %v455
      %v467 = vpack.c.bf16 %v458, %v457
      %v468 = vpack.c.bf16 %v460, %v459
      %v469 = vpack.c.bf16 %v462, %v461
      %v470 = vpack.c.bf16 %v464, %v463
      %v471 = vpack.c.bf16 %v465, %v465
      %v478 = vunpack.c.l.b16 %v466
      %v479 = vunpack.c.h.b16 %v466
      %v480 = vunpack.c.l.b16 %v467
      %v481 = vunpack.c.h.b16 %v467
      %v482 = vunpack.c.l.b16 %v468
      %v483 = vunpack.c.h.b16 %v468
      %v484 = vunpack.c.l.b16 %v469
      %v485 = vunpack.c.h.b16 %v469
      %v486 = vunpack.c.l.b16 %v470
      %v487 = vunpack.c.h.b16 %v470
      %v488 = vunpack.c.l.b16 %v471
      %v489 = vpack.c.b16 %v478, %v478
      %v490 = vpack.c.b16 %v479, %v479
      %v491 = vpack.c.b16 %v480, %v480
      %v492 = vpack.c.b16 %v481, %v481
      %v493 = vpack.c.b16 %v482, %v482
      %v494 = vpack.c.b16 %v483, %v483
      %v495 = vpack.c.b16 %v484, %v484
      %v496 = vpack.c.b16 %v485, %v485
      %v497 = vpack.c.b16 %v486, %v486
      %v498 = vpack.c.b16 %v487, %v487
      %v499 = vpack.c.b16 %v488, %v488
      %vm511 = vcmask 257024
      %512 = vst.msk [vmem:[%s170] sm:$0xf] %vm511, %v489
      %513 = vst.msk [vmem:[%s170 + $0x4] sm:$0xf] %vm511, %v490
      %514 = vst.msk [vmem:[%s170 + $0x8] sm:$0xf] %vm511, %v491
      %515 = vst.msk [vmem:[%s170 + $0xc] sm:$0xf] %vm511, %v492
      %516 = vst.msk [vmem:[%s170 + $0x10] sm:$0xf] %vm511, %v493
      %517 = vst.msk [vmem:[%s170 + $0x14] sm:$0xf] %vm511, %v494
      %518 = vst.msk [vmem:[%s170 + $0x18] sm:$0xf] %vm511, %v495
      %519 = vst.msk [vmem:[%s170 + $0x1c] sm:$0xf] %vm511, %v496
      %520 = vst.msk [vmem:[%s170 + $0x20] sm:$0xf] %vm511, %v497
      %521 = vst.msk [vmem:[%s170 + $0x24] sm:$0xf] %vm511, %v498
      %vm522 = vcmask 253952
      %vm523 = vsmask.f32 256
      %vm524 = vmand %vm522, %vm523
      %v525 = vld [vmem:[%s170 + $0x28] sm:$0x1]
      %v526 = vsel %vm524, %v499, %v525
      %527 = vst [vmem:[%s170 + $0x28] sm:$0x1] %v526
      %p528 = scmp.lt.s32.totalorder %s14, 1
      %s529 = scalar_select %p528, %s14, 1
      %s530 = smul.addr %s529, 11
      %s531 = smul.addr %s530, 4
      %s532 = scalar_lea.vmem %s3, %s531
      // Predicated region
      $region33: #{qcn_forward.4} parent=31 // pred_check
        %p533 = pneg %p100
      $region34: #{qcn_forward.4} parent=31 // pred_check_branch
        %535 = sbr.rel (%p533) target = $region36
      $region35: #{qcn_forward.4} parent=31 // pred_region
        _
      $region36: #{qcn_forward.4} parent=31 // pred_fallthru
        _
    $region32: #{qcn_forward.4} parent=5 // pred_fallthru
      _
    %p536 = scmp.le.s32.totalorder 2, %s9
    // Predicated region
    $region37: #{qcn_forward.4} parent=5 // pred_check
      %p537 = pneg %p536
    $region38: #{qcn_forward.4} parent=5 // pred_check_branch
      %539 = sbr.rel (%p537) target = $region40
    $region39: #{qcn_forward.4} parent=5 // pred_region
      %s540 = ssub.s32 %s9, 2
      // Predicated region
      $region41: #{qcn_forward.4} parent=39 // pred_check
        %p541 = pneg %p106
      $region42: #{qcn_forward.4} parent=39 // pred_check_branch
        %543 = sbr.rel (%p541) target = $region44
      $region43: #{qcn_forward.4} parent=39 // pred_region
        %p544 = scmp.lt.s32.totalorder %s15, 1
        %s545 = scalar_select %p544, %s15, 1
        %s546 = smul.addr %s545, 11
        %s547 = smul.addr %s546, 4
        %s548 = scalar_lea.vmem %s3, %s547
      $region44: #{qcn_forward.4} parent=39 // pred_fallthru
        _
    $region40: #{qcn_forward.4} parent=5 // pred_fallthru
      _
  $region6: #{qcn_forward.4} parent=0 // loop_footer
    %s13 = sadd.s32 1, %s9
  $region7: #{qcn_forward.4} parent=0 // loop_footer_branch
    %8 = sbr.rel target = $region3
  $region8: #{qcn_forward.4} parent=0 // loop_exit
    _

// kernel: qcn_forward.5
$region0: #{qcn_forward.5}
  #allocation0 [shape = 'u32[]', space=smem, size = 0x4, offset = 0x4, fixed_abs, tag = 'smem constant byte address 0x4 - core index']
  #allocation1 [shape = 'u32[144,128]{1,0:T(1,128)}', space=vmem, size = 0x12000, scoped, tag = 'internal scratch']
  %s0 = inlined_call_operand.vmem [shape: bf16[2,2592], index: 0, kind: input, shape index: {}]
  %s1 = inlined_call_operand.vmem [shape: bf16[2592,256], index: 1, kind: input, shape index: {}]
  %s2 = inlined_call_operand.vmem [shape: f32[1,256], index: 2, kind: input, shape index: {}]
  %s3 = inlined_call_operand.vmem [shape: bf16[256,128], index: 3, kind: input, shape index: {}]
  %s4 = inlined_call_operand.vmem [shape: f32[1,128], index: 4, kind: input, shape index: {}]
  %s5 = inlined_call_operand.hbm [shape: f32[2,128], index: 5, kind: output, shape index: {}]
  %s6 = sld [smem:[#allocation0]]
  $region30: #{qcn_forward.5} parent=0
    _
  %s8 = ssub.s32 1, %s6
  %s9 = scalar_select 0, %s8, %s6
  $region1: #{qcn_forward.5} parent=0
    #allocation2 [shape = 'u8[1024]{0}', space=vmem, size = 0x400, scoped, tag = 'output window, operand 0, single buffered']
    #allocation3 [shape = 's32[1]{0}', space=sflag, size = 0x4, scoped, tag = 'scoped memory for qcn_forward.5']
    %10 = vsyncpa [#allocation3], 0
    // Predicated region
    $region2: #{qcn_forward.5} parent=1 // pred_check
      _
    $region3: #{qcn_forward.5} parent=1 // pred_check_branch
      %12 = sbr.rel (0) target = $region5
    $region4: #{qcn_forward.5} parent=1 // pred_region
      _
    $region5: #{qcn_forward.5} parent=1 // pred_fallthru
      _
    // Predicated region
    $region6: #{qcn_forward.5} parent=1 // pred_check
      _
    $region7: #{qcn_forward.5} parent=1 // pred_check_branch
      %14 = sbr.rel (0) target = $region9
    $region8: #{qcn_forward.5} parent=1 // pred_region
      _
    $region9: #{qcn_forward.5} parent=1 // pred_fallthru
      _
    // Predicated region
    $region10: #{qcn_forward.5} parent=1 // pred_check
      _
    $region11: #{qcn_forward.5} parent=1 // pred_check_branch
      %16 = sbr.rel (0) target = $region13
    $region12: #{qcn_forward.5} parent=1 // pred_region
      _
    $region13: #{qcn_forward.5} parent=1 // pred_fallthru
      _
    // Predicated region
    $region14: #{qcn_forward.5} parent=1 // pred_check
      _
    $region15: #{qcn_forward.5} parent=1 // pred_check_branch
      %18 = sbr.rel (0) target = $region17
    $region16: #{qcn_forward.5} parent=1 // pred_region
      _
    $region17: #{qcn_forward.5} parent=1 // pred_fallthru
      _
    // Predicated region
    $region18: #{qcn_forward.5} parent=1 // pred_check
      _
    $region19: #{qcn_forward.5} parent=1 // pred_check_branch
      %20 = sbr.rel (0) target = $region21
    $region20: #{qcn_forward.5} parent=1 // pred_region
      _
    $region21: #{qcn_forward.5} parent=1 // pred_fallthru
      _
    %v22 = vld [vmem:[%s0] sm:$0xff]
    %v23 = vld [vmem:[%s0 + $0x8] sm:$0xff]
    %v24 = vld [vmem:[%s0 + $0x10] sm:$0x1f]
    %v25 = vld [vmem:[%s1] sm:$0xff]
    %v26 = vld [vmem:[%s1 + $0x8] sm:$0xff]
    %v27 = vld [vmem:[%s1 + $0x10] sm:$0xff]
    %v28 = vld [vmem:[%s1 + $0x18] sm:$0xff]
    %v29 = vld [vmem:[%s1 + $0x20] sm:$0xff]
    %v30 = vld [vmem:[%s1 + $0x28] sm:$0xff]
    %v31 = vld [vmem:[%s1 + $0x30] sm:$0xff]
    %v32 = vld [vmem:[%s1 + $0x38] sm:$0xff]
    %v33 = vld [vmem:[%s1 + $0x40] sm:$0xff]
    %v34 = vld [vmem:[%s1 + $0x48] sm:$0xff]
    %v35 = vld [vmem:[%s1 + $0x50] sm:$0xff]
    %v36 = vld [vmem:[%s1 + $0x58] sm:$0xff]
    %v37 = vld [vmem:[%s1 + $0x60] sm:$0xff]
    %v38 = vld [vmem:[%s1 + $0x68] sm:$0xff]
    %v39 = vld [vmem:[%s1 + $0x70] sm:$0xff]
    %v40 = vld [vmem:[%s1 + $0x78] sm:$0xff]
    %v41 = vld [vmem:[%s1 + $0x80] sm:$0xff]
    %v42 = vld [vmem:[%s1 + $0x88] sm:$0xff]
    %v43 = vld [vmem:[%s1 + $0x90] sm:$0xff]
    %v44 = vld [vmem:[%s1 + $0x98] sm:$0xff]
    %v45 = vld [vmem:[%s1 + $0xa0] sm:$0xff]
    %v46 = vld [vmem:[%s1 + $0xa8] sm:$0xff]
    %v47 = vld [vmem:[%s1 + $0xb0] sm:$0xff]
    %v48 = vld [vmem:[%s1 + $0xb8] sm:$0xff]
    %v49 = vld [vmem:[%s1 + $0xc0] sm:$0xff]
    %v50 = vld [vmem:[%s1 + $0xc8] sm:$0xff]
    %v51 = vld [vmem:[%s1 + $0xd0] sm:$0xff]
    %v52 = vld [vmem:[%s1 + $0xd8] sm:$0xff]
    %v53 = vld [vmem:[%s1 + $0xe0] sm:$0xff]
    %v54 = vld [vmem:[%s1 + $0xe8] sm:$0xff]
    %v55 = vld [vmem:[%s1 + $0xf0] sm:$0xff]
    %v56 = vld [vmem:[%s1 + $0xf8] sm:$0xff]
    %v57 = vld [vmem:[%s1 + $0x100] sm:$0xff]
    %v58 = vld [vmem:[%s1 + $0x108] sm:$0xff]
    %v59 = vld [vmem:[%s1 + $0x110] sm:$0xff]
    %v60 = vld [vmem:[%s1 + $0x118] sm:$0xff]
    %v61 = vld [vmem:[%s1 + $0x120] sm:$0xff]
    %v62 = vld [vmem:[%s1 + $0x128] sm:$0xff]
    %v63 = vld [vmem:[%s1 + $0x130] sm:$0xff]
    %v64 = vld [vmem:[%s1 + $0x138] sm:$0xff]
    %v65 = vld [vmem:[%s1 + $0x140] sm:$0xff]
    %v66 = vld [vmem:[%s1 + $0x148] sm:$0xff]
    %v67 = vld [vmem:[%s1 + $0x150] sm:$0xff]
    %v68 = vld [vmem:[%s1 + $0x158] sm:$0xff]
    %v69 = vld [vmem:[%s1 + $0x160] sm:$0xff]
    %v70 = vld [vmem:[%s1 + $0x168] sm:$0xff]
    %v71 = vld [vmem:[%s1 + $0x170] sm:$0xff]
    %v72 = vld [vmem:[%s1 + $0x178] sm:$0xff]
    %v73 = vld [vmem:[%s1 + $0x180] sm:$0xff]
    %v74 = vld [vmem:[%s1 + $0x188] sm:$0xff]
    %v75 = vld [vmem:[%s1 + $0x190] sm:$0xff]
    %v76 = vld [vmem:[%s1 + $0x198] sm:$0xff]
    %v77 = vld [vmem:[%s1 + $0x1a0] sm:$0xff]
    %v78 = vld [vmem:[%s1 + $0x1a8] sm:$0xff]
    %v79 = vld [vmem:[%s1 + $0x1b0] sm:$0xff]
    %v80 = vld [vmem:[%s1 + $0x1b8] sm:$0xff]
    %v81 = vld [vmem:[%s1 + $0x1c0] sm:$0xff]
    %v82 = vld [vmem:[%s1 + $0x1c8] sm:$0xff]
    %v83 = vld [vmem:[%s1 + $0x1d0] sm:$0xff]
    %v84 = vld [vmem:[%s1 + $0x1d8] sm:$0xff]
    %v85 = vld [vmem:[%s1 + $0x1e0] sm:$0xff]
    %v86 = vld [vmem:[%s1 + $0x1e8] sm:$0xff]
    %v87 = vld [vmem:[%s1 + $0x1f0] sm:$0xff]
    %v88 = vld [vmem:[%s1 + $0x1f8] sm:$0xff]
    %v89 = vld [vmem:[%s1 + $0x200] sm:$0xff]
    %v90 = vld [vmem:[%s1 + $0x208] sm:$0xff]
    %v91 = vld [vmem:[%s1 + $0x210] sm:$0xff]
    %v92 = vld [vmem:[%s1 + $0x218] sm:$0xff]
    %v93 = vld [vmem:[%s1 + $0x220] sm:$0xff]
    %v94 = vld [vmem:[%s1 + $0x228] sm:$0xff]
    %v95 = vld [vmem:[%s1 + $0x230] sm:$0xff]
    %v96 = vld [vmem:[%s1 + $0x238] sm:$0xff]
    %v97 = vld [vmem:[%s1 + $0x240] sm:$0xff]
    %v98 = vld [vmem:[%s1 + $0x248] sm:$0xff]
    %v99 = vld [vmem:[%s1 + $0x250] sm:$0xff]
    %v100 = vld [vmem:[%s1 + $0x258] sm:$0xff]
    %v101 = vld [vmem:[%s1 + $0x260] sm:$0xff]
    %v102 = vld [vmem:[%s1 + $0x268] sm:$0xff]
    %v103 = vld [vmem:[%s1 + $0x270] sm:$0xff]
    %v104 = vld [vmem:[%s1 + $0x278] sm:$0xff]
    %v105 = vld [vmem:[%s1 + $0x280] sm:$0xff]
    %v106 = vld [vmem:[%s1 + $0x288] sm:$0xff]
    %v107 = vld [vmem:[%s1 + $0x290] sm:$0xff]
    %v108 = vld [vmem:[%s1 + $0x298] sm:$0xff]
    %v109 = vld [vmem:[%s1 + $0x2a0] sm:$0xff]
    %v110 = vld [vmem:[%s1 + $0x2a8] sm:$0xff]
    %v111 = vld [vmem:[%s1 + $0x2b0] sm:$0xff]
    %v112 = vld [vmem:[%s1 + $0x2b8] sm:$0xff]
    %v113 = vld [vmem:[%s1 + $0x2c0] sm:$0xff]
    %v114 = vld [vmem:[%s1 + $0x2c8] sm:$0xff]
    %v115 = vld [vmem:[%s1 + $0x2d0] sm:$0xff]
    %v116 = vld [vmem:[%s1 + $0x2d8] sm:$0xff]
    %v117 = vld [vmem:[%s1 + $0x2e0] sm:$0xff]
    %v118 = vld [vmem:[%s1 + $0x2e8] sm:$0xff]
    %v119 = vld [vmem:[%s1 + $0x2f0] sm:$0xff]
    %v120 = vld [vmem:[%s1 + $0x2f8] sm:$0xff]
    %v121 = vld [vmem:[%s1 + $0x300] sm:$0xff]
    %v122 = vld [vmem:[%s1 + $0x308] sm:$0xff]
    %v123 = vld [vmem:[%s1 + $0x310] sm:$0xff]
    %v124 = vld [vmem:[%s1 + $0x318] sm:$0xff]
    %v125 = vld [vmem:[%s1 + $0x320] sm:$0xff]
    %v126 = vld [vmem:[%s1 + $0x328] sm:$0xff]
    %v127 = vld [vmem:[%s1 + $0x330] sm:$0xff]
    %v128 = vld [vmem:[%s1 + $0x338] sm:$0xff]
    %v129 = vld [vmem:[%s1 + $0x340] sm:$0xff]
    %v130 = vld [vmem:[%s1 + $0x348] sm:$0xff]
    %v131 = vld [vmem:[%s1 + $0x350] sm:$0xff]
    %v132 = vld [vmem:[%s1 + $0x358] sm:$0xff]
    %v133 = vld [vmem:[%s1 + $0x360] sm:$0xff]
    %v134 = vld [vmem:[%s1 + $0x368] sm:$0xff]
    %v135 = vld [vmem:[%s1 + $0x370] sm:$0xff]
    %v136 = vld [vmem:[%s1 + $0x378] sm:$0xff]
    %v137 = vld [vmem:[%s1 + $0x380] sm:$0xff]
    %v138 = vld [vmem:[%s1 + $0x388] sm:$0xff]
    %v139 = vld [vmem:[%s1 + $0x390] sm:$0xff]
    %v140 = vld [vmem:[%s1 + $0x398] sm:$0xff]
    %v141 = vld [vmem:[%s1 + $0x3a0] sm:$0xff]
    %v142 = vld [vmem:[%s1 + $0x3a8] sm:$0xff]
    %v143 = vld [vmem:[%s1 + $0x3b0] sm:$0xff]
    %v144 = vld [vmem:[%s1 + $0x3b8] sm:$0xff]
    %v145 = vld [vmem:[%s1 + $0x3c0] sm:$0xff]
    %v146 = vld [vmem:[%s1 + $0x3c8] sm:$0xff]
    %v147 = vld [vmem:[%s1 + $0x3d0] sm:$0xff]
    %v148 = vld [vmem:[%s1 + $0x3d8] sm:$0xff]
    %v149 = vld [vmem:[%s1 + $0x3e0] sm:$0xff]
    %v150 = vld [vmem:[%s1 + $0x3e8] sm:$0xff]
    %v151 = vld [vmem:[%s1 + $0x3f0] sm:$0xff]
    %v152 = vld [vmem:[%s1 + $0x3f8] sm:$0xff]
    %v153 = vld [vmem:[%s1 + $0x400] sm:$0xff]
    %v154 = vld [vmem:[%s1 + $0x408] sm:$0xff]
    %v155 = vld [vmem:[%s1 + $0x410] sm:$0xff]
    %v156 = vld [vmem:[%s1 + $0x418] sm:$0xff]
    %v157 = vld [vmem:[%s1 + $0x420] sm:$0xff]
    %v158 = vld [vmem:[%s1 + $0x428] sm:$0xff]
    %v159 = vld [vmem:[%s1 + $0x430] sm:$0xff]
    %v160 = vld [vmem:[%s1 + $0x438] sm:$0xff]
    %v161 = vld [vmem:[%s1 + $0x440] sm:$0xff]
    %v162 = vld [vmem:[%s1 + $0x448] sm:$0xff]
    %v163 = vld [vmem:[%s1 + $0x450] sm:$0xff]
    %v164 = vld [vmem:[%s1 + $0x458] sm:$0xff]
    %v165 = vld [vmem:[%s1 + $0x460] sm:$0xff]
    %v166 = vld [vmem:[%s1 + $0x468] sm:$0xff]
    %v167 = vld [vmem:[%s1 + $0x470] sm:$0xff]
    %v168 = vld [vmem:[%s1 + $0x478] sm:$0xff]
    %v169 = vld [vmem:[%s1 + $0x480] sm:$0xff]
    %v170 = vld [vmem:[%s1 + $0x488] sm:$0xff]
    %v171 = vld [vmem:[%s1 + $0x490] sm:$0xff]
    %v172 = vld [vmem:[%s1 + $0x498] sm:$0xff]
    %v173 = vld [vmem:[%s1 + $0x4a0] sm:$0xff]
    %v174 = vld [vmem:[%s1 + $0x4a8] sm:$0xff]
    %v175 = vld [vmem:[%s1 + $0x4b0] sm:$0xff]
    %v176 = vld [vmem:[%s1 + $0x4b8] sm:$0xff]
    %v177 = vld [vmem:[%s1 + $0x4c0] sm:$0xff]
    %v178 = vld [vmem:[%s1 + $0x4c8] sm:$0xff]
    %v179 = vld [vmem:[%s1 + $0x4d0] sm:$0xff]
    %v180 = vld [vmem:[%s1 + $0x4d8] sm:$0xff]
    %v181 = vld [vmem:[%s1 + $0x4e0] sm:$0xff]
    %v182 = vld [vmem:[%s1 + $0x4e8] sm:$0xff]
    %v183 = vld [vmem:[%s1 + $0x4f0] sm:$0xff]
    %v184 = vld [vmem:[%s1 + $0x4f8] sm:$0xff]
    %v185 = vld [vmem:[%s1 + $0x500] sm:$0xff]
    %v186 = vld [vmem:[%s1 + $0x508] sm:$0xff]
    %v187 = vld [vmem:[%s1 + $0x510] sm:$0xff]
    %v188 = vld [vmem:[%s1 + $0x518] sm:$0xff]
    %v189 = vld [vmem:[%s1 + $0x520] sm:$0xff]
    %v190 = vld [vmem:[%s1 + $0x528] sm:$0xff]
    %v191 = vld [vmem:[%s1 + $0x530] sm:$0xff]
    %v192 = vld [vmem:[%s1 + $0x538] sm:$0xff]
    %v193 = vld [vmem:[%s1 + $0x540] sm:$0xff]
    %v194 = vld [vmem:[%s1 + $0x548] sm:$0xff]
    %v195 = vld [vmem:[%s1 + $0x550] sm:$0xff]
    %v196 = vld [vmem:[%s1 + $0x558] sm:$0xff]
    %v197 = vld [vmem:[%s1 + $0x560] sm:$0xff]
    %v198 = vld [vmem:[%s1 + $0x568] sm:$0xff]
    %v199 = vld [vmem:[%s1 + $0x570] sm:$0xff]
    %v200 = vld [vmem:[%s1 + $0x578] sm:$0xff]
    %v201 = vld [vmem:[%s1 + $0x580] sm:$0xff]
    %v202 = vld [vmem:[%s1 + $0x588] sm:$0xff]
    %v203 = vld [vmem:[%s1 + $0x590] sm:$0xff]
    %v204 = vld [vmem:[%s1 + $0x598] sm:$0xff]
    %v205 = vld [vmem:[%s1 + $0x5a0] sm:$0xff]
    %v206 = vld [vmem:[%s1 + $0x5a8] sm:$0xff]
    %v207 = vld [vmem:[%s1 + $0x5b0] sm:$0xff]
    %v208 = vld [vmem:[%s1 + $0x5b8] sm:$0xff]
    %v209 = vld [vmem:[%s1 + $0x5c0] sm:$0xff]
    %v210 = vld [vmem:[%s1 + $0x5c8] sm:$0xff]
    %v211 = vld [vmem:[%s1 + $0x5d0] sm:$0xff]
    %v212 = vld [vmem:[%s1 + $0x5d8] sm:$0xff]
    %v213 = vld [vmem:[%s1 + $0x5e0] sm:$0xff]
    %v214 = vld [vmem:[%s1 + $0x5e8] sm:$0xff]
    %v215 = vld [vmem:[%s1 + $0x5f0] sm:$0xff]
    %v216 = vld [vmem:[%s1 + $0x5f8] sm:$0xff]
    %v217 = vld [vmem:[%s1 + $0x600] sm:$0xff]
    %v218 = vld [vmem:[%s1 + $0x608] sm:$0xff]
    %v219 = vld [vmem:[%s1 + $0x610] sm:$0xff]
    %v220 = vld [vmem:[%s1 + $0x618] sm:$0xff]
    %v221 = vld [vmem:[%s1 + $0x620] sm:$0xff]
    %v222 = vld [vmem:[%s1 + $0x628] sm:$0xff]
    %v223 = vld [vmem:[%s1 + $0x630] sm:$0xff]
    %v224 = vld [vmem:[%s1 + $0x638] sm:$0xff]
    %v225 = vld [vmem:[%s1 + $0x640] sm:$0xff]
    %v226 = vld [vmem:[%s1 + $0x648] sm:$0xff]
    %v227 = vld [vmem:[%s1 + $0x650] sm:$0xff]
    %v228 = vld [vmem:[%s1 + $0x658] sm:$0xff]
    %v229 = vld [vmem:[%s1 + $0x660] sm:$0xff]
    %v230 = vld [vmem:[%s1 + $0x668] sm:$0xff]
    %v231 = vld [vmem:[%s1 + $0x670] sm:$0xff]
    %v232 = vld [vmem:[%s1 + $0x678] sm:$0xff]
    %v233 = vld [vmem:[%s1 + $0x680] sm:$0xff]
    %v234 = vld [vmem:[%s1 + $0x688] sm:$0xff]
    %v235 = vld [vmem:[%s1 + $0x690] sm:$0xff]
    %v236 = vld [vmem:[%s1 + $0x698] sm:$0xff]
    %v237 = vld [vmem:[%s1 + $0x6a0] sm:$0xff]
    %v238 = vld [vmem:[%s1 + $0x6a8] sm:$0xff]
    %v239 = vld [vmem:[%s1 + $0x6b0] sm:$0xff]
    %v240 = vld [vmem:[%s1 + $0x6b8] sm:$0xff]
    %v241 = vld [vmem:[%s1 + $0x6c0] sm:$0xff]
    %v242 = vld [vmem:[%s1 + $0x6c8] sm:$0xff]
    %v243 = vld [vmem:[%s1 + $0x6d0] sm:$0xff]
    %v244 = vld [vmem:[%s1 + $0x6d8] sm:$0xff]
    %v245 = vld [vmem:[%s1 + $0x6e0] sm:$0xff]
    %v246 = vld [vmem:[%s1 + $0x6e8] sm:$0xff]
    %v247 = vld [vmem:[%s1 + $0x6f0] sm:$0xff]
    %v248 = vld [vmem:[%s1 + $0x6f8] sm:$0xff]
    %v249 = vld [vmem:[%s1 + $0x700] sm:$0xff]
    %v250 = vld [vmem:[%s1 + $0x708] sm:$0xff]
    %v251 = vld [vmem:[%s1 + $0x710] sm:$0xff]
    %v252 = vld [vmem:[%s1 + $0x718] sm:$0xff]
    %v253 = vld [vmem:[%s1 + $0x720] sm:$0xff]
    %v254 = vld [vmem:[%s1 + $0x728] sm:$0xff]
    %v255 = vld [vmem:[%s1 + $0x730] sm:$0xff]
    %v256 = vld [vmem:[%s1 + $0x738] sm:$0xff]
    %v257 = vld [vmem:[%s1 + $0x740] sm:$0xff]
    %v258 = vld [vmem:[%s1 + $0x748] sm:$0xff]
    %v259 = vld [vmem:[%s1 + $0x750] sm:$0xff]
    %v260 = vld [vmem:[%s1 + $0x758] sm:$0xff]
    %v261 = vld [vmem:[%s1 + $0x760] sm:$0xff]
    %v262 = vld [vmem:[%s1 + $0x768] sm:$0xff]
    %v263 = vld [vmem:[%s1 + $0x770] sm:$0xff]
    %v264 = vld [vmem:[%s1 + $0x778] sm:$0xff]
    %v265 = vld [vmem:[%s1 + $0x780] sm:$0xff]
    %v266 = vld [vmem:[%s1 + $0x788] sm:$0xff]
    %v267 = vld [vmem:[%s1 + $0x790] sm:$0xff]
    %v268 = vld [vmem:[%s1 + $0x798] sm:$0xff]
    %v269 = vld [vmem:[%s1 + $0x7a0] sm:$0xff]
    %v270 = vld [vmem:[%s1 + $0x7a8] sm:$0xff]
    %v271 = vld [vmem:[%s1 + $0x7b0] sm:$0xff]
    %v272 = vld [vmem:[%s1 + $0x7b8] sm:$0xff]
    %v273 = vld [vmem:[%s1 + $0x7c0] sm:$0xff]
    %v274 = vld [vmem:[%s1 + $0x7c8] sm:$0xff]
    %v275 = vld [vmem:[%s1 + $0x7d0] sm:$0xff]
    %v276 = vld [vmem:[%s1 + $0x7d8] sm:$0xff]
    %v277 = vld [vmem:[%s1 + $0x7e0] sm:$0xff]
    %v278 = vld [vmem:[%s1 + $0x7e8] sm:$0xff]
    %v279 = vld [vmem:[%s1 + $0x7f0] sm:$0xff]
    %v280 = vld [vmem:[%s1 + $0x7f8] sm:$0xff]
    %v281 = vld [vmem:[%s1 + $0x800] sm:$0xff]
    %v282 = vld [vmem:[%s1 + $0x808] sm:$0xff]
    %v283 = vld [vmem:[%s1 + $0x810] sm:$0xff]
    %v284 = vld [vmem:[%s1 + $0x818] sm:$0xff]
    %v285 = vld [vmem:[%s1 + $0x820] sm:$0xff]
    %v286 = vld [vmem:[%s1 + $0x828] sm:$0xff]
    %v287 = vld [vmem:[%s1 + $0x830] sm:$0xff]
    %v288 = vld [vmem:[%s1 + $0x838] sm:$0xff]
    %v289 = vld [vmem:[%s1 + $0x840] sm:$0xff]
    %v290 = vld [vmem:[%s1 + $0x848] sm:$0xff]
    %v291 = vld [vmem:[%s1 + $0x850] sm:$0xff]
    %v292 = vld [vmem:[%s1 + $0x858] sm:$0xff]
    %v293 = vld [vmem:[%s1 + $0x860] sm:$0xff]
    %v294 = vld [vmem:[%s1 + $0x868] sm:$0xff]
    %v295 = vld [vmem:[%s1 + $0x870] sm:$0xff]
    %v296 = vld [vmem:[%s1 + $0x878] sm:$0xff]
    %v297 = vld [vmem:[%s1 + $0x880] sm:$0xff]
    %v298 = vld [vmem:[%s1 + $0x888] sm:$0xff]
    %v299 = vld [vmem:[%s1 + $0x890] sm:$0xff]
    %v300 = vld [vmem:[%s1 + $0x898] sm:$0xff]
    %v301 = vld [vmem:[%s1 + $0x8a0] sm:$0xff]
    %v302 = vld [vmem:[%s1 + $0x8a8] sm:$0xff]
    %v303 = vld [vmem:[%s1 + $0x8b0] sm:$0xff]
    %v304 = vld [vmem:[%s1 + $0x8b8] sm:$0xff]
    %v305 = vld [vmem:[%s1 + $0x8c0] sm:$0xff]
    %v306 = vld [vmem:[%s1 + $0x8c8] sm:$0xff]
    %v307 = vld [vmem:[%s1 + $0x8d0] sm:$0xff]
    %v308 = vld [vmem:[%s1 + $0x8d8] sm:$0xff]
    %v309 = vld [vmem:[%s1 + $0x8e0] sm:$0xff]
    %v310 = vld [vmem:[%s1 + $0x8e8] sm:$0xff]
    %v311 = vld [vmem:[%s1 + $0x8f0] sm:$0xff]
    %v312 = vld [vmem:[%s1 + $0x8f8] sm:$0xff]
    %v313 = vld [vmem:[%s1 + $0x900] sm:$0xff]
    %v314 = vld [vmem:[%s1 + $0x908] sm:$0xff]
    %v315 = vld [vmem:[%s1 + $0x910] sm:$0xff]
    %v316 = vld [vmem:[%s1 + $0x918] sm:$0xff]
    %v317 = vld [vmem:[%s1 + $0x920] sm:$0xff]
    %v318 = vld [vmem:[%s1 + $0x928] sm:$0xff]
    %v319 = vld [vmem:[%s1 + $0x930] sm:$0xff]
    %v320 = vld [vmem:[%s1 + $0x938] sm:$0xff]
    %v321 = vld [vmem:[%s1 + $0x940] sm:$0xff]
    %v322 = vld [vmem:[%s1 + $0x948] sm:$0xff]
    %v323 = vld [vmem:[%s1 + $0x950] sm:$0xff]
    %v324 = vld [vmem:[%s1 + $0x958] sm:$0xff]
    %v325 = vld [vmem:[%s1 + $0x960] sm:$0xff]
    %v326 = vld [vmem:[%s1 + $0x968] sm:$0xff]
    %v327 = vld [vmem:[%s1 + $0x970] sm:$0xff]
    %v328 = vld [vmem:[%s1 + $0x978] sm:$0xff]
    %v329 = vld [vmem:[%s1 + $0x980] sm:$0xff]
    %v330 = vld [vmem:[%s1 + $0x988] sm:$0xff]
    %v331 = vld [vmem:[%s1 + $0x990] sm:$0xff]
    %v332 = vld [vmem:[%s1 + $0x998] sm:$0xff]
    %v333 = vld [vmem:[%s1 + $0x9a0] sm:$0xff]
    %v334 = vld [vmem:[%s1 + $0x9a8] sm:$0xff]
    %v335 = vld [vmem:[%s1 + $0x9b0] sm:$0xff]
    %v336 = vld [vmem:[%s1 + $0x9b8] sm:$0xff]
    %v337 = vld [vmem:[%s1 + $0x9c0] sm:$0xff]
    %v338 = vld [vmem:[%s1 + $0x9c8] sm:$0xff]
    %v339 = vld [vmem:[%s1 + $0x9d0] sm:$0xff]
    %v340 = vld [vmem:[%s1 + $0x9d8] sm:$0xff]
    %v341 = vld [vmem:[%s1 + $0x9e0] sm:$0xff]
    %v342 = vld [vmem:[%s1 + $0x9e8] sm:$0xff]
    %v343 = vld [vmem:[%s1 + $0x9f0] sm:$0xff]
    %v344 = vld [vmem:[%s1 + $0x9f8] sm:$0xff]
    %v345 = vld [vmem:[%s1 + $0xa00] sm:$0xff]
    %v346 = vld [vmem:[%s1 + $0xa08] sm:$0xff]
    %v347 = vld [vmem:[%s1 + $0xa10] sm:$0xff]
    %v348 = vld [vmem:[%s1 + $0xa18] sm:$0xff]
    %v349 = vld [vmem:[%s2] sm:$0x3]
    %v351 = vlaneseq
    %v352 = vshrl.u32 %v351, 7
    %v353 = vsub.s32 0, %v352
    %v354 = vrot.slane %v349, %v353
    %v355 = vlaneseq
    %v356 = vshrl.u32 %v355, 7
    %v357 = vsub.s32 1, %v356
    %v358 = vrot.slane %v349, %v357
    %v364 = vcombine.high %v22, %v22
    %v366 = vunpack.c.l.s4 1966171168
    %v367 = vunpack.c.0.s8 %v366
    %v368 = vlaneseq
    %v369 = vshrl.u32 %v368, 7
    %v370 = vsub.s32 %v367, %v369
    %v371 = vrot.slane %v22, %v370
    %v373 = vunpack.c.l.s4 1966171168
    %v374 = vunpack.c.0.s8 %v373
    %v375 = vlaneseq
    %v376 = vshrl.u32 %v375, 7
    %v377 = vsub.s32 %v374, %v376
    %v378 = vrot.slane %v364, %v377
    %v379 = vcombine.high %v371, %v371
    %v380 = vcombine.high %v378, %v378
    %v382 = vunpack.c.l.s4 1966171168
    %v383 = vunpack.c.0.s8 %v382
    %v384 = vlaneseq
    %v385 = vshrl.u32 %v384, 7
    %v386 = vsub.s32 %v383, %v385
    %v387 = vrot.slane %v371, %v386
    %v389 = vunpack.c.l.s4 1966171168
    %v390 = vunpack.c.0.s8 %v389
    %v391 = vlaneseq
    %v392 = vshrl.u32 %v391, 7
    %v393 = vsub.s32 %v390, %v392
    %v394 = vrot.slane %v378, %v393
    %v396 = vunpack.c.l.s4 1966171168
    %v397 = vunpack.c.0.s8 %v396
    %v398 = vlaneseq
    %v399 = vshrl.u32 %v398, 7
    %v400 = vsub.s32 %v397, %v399
    %v401 = vrot.slane %v379, %v400
    %v403 = vunpack.c.l.s4 1966171168
    %v404 = vunpack.c.0.s8 %v403
    %v405 = vlaneseq
    %v406 = vshrl.u32 %v405, 7
    %v407 = vsub.s32 %v404, %v406
    %v408 = vrot.slane %v380, %v407
    %v409 = vcombine.high %v387, %v387
    %v410 = vcombine.high %v394, %v394
    %v411 = vcombine.high %v401, %v401
    %v412 = vcombine.high %v408, %v408
    %v413 = vcombine.high %v23, %v23
    %v415 = vunpack.c.l.s4 1966171168
    %v416 = vunpack.c.0.s8 %v415
    %v417 = vlaneseq
    %v418 = vshrl.u32 %v417, 7
    %v419 = vsub.s32 %v416, %v418
    %v420 = vrot.slane %v23, %v419
    %v422 = vunpack.c.l.s4 1966171168
    %v423 = vunpack.c.0.s8 %v422
    %v424 = vlaneseq
    %v425 = vshrl.u32 %v424, 7
    %v426 = vsub.s32 %v423, %v425
    %v427 = vrot.slane %v413, %v426
    %v428 = vcombine.high %v420, %v420
    %v429 = vcombine.high %v427, %v427
    %v431 = vunpack.c.l.s4 1966171168
    %v432 = vunpack.c.0.s8 %v431
    %v433 = vlaneseq
    %v434 = vshrl.u32 %v433, 7
    %v435 = vsub.s32 %v432, %v434
    %v436 = vrot.slane %v420, %v435
    %v438 = vunpack.c.l.s4 1966171168
    %v439 = vunpack.c.0.s8 %v438
    %v440 = vlaneseq
    %v441 = vshrl.u32 %v440, 7
    %v442 = vsub.s32 %v439, %v441
    %v443 = vrot.slane %v427, %v442
    %v445 = vunpack.c.l.s4 1966171168
    %v446 = vunpack.c.0.s8 %v445
    %v447 = vlaneseq
    %v448 = vshrl.u32 %v447, 7
    %v449 = vsub.s32 %v446, %v448
    %v450 = vrot.slane %v428, %v449
    %v452 = vunpack.c.l.s4 1966171168
    %v453 = vunpack.c.0.s8 %v452
    %v454 = vlaneseq
    %v455 = vshrl.u32 %v454, 7
    %v456 = vsub.s32 %v453, %v455
    %v457 = vrot.slane %v429, %v456
    %v458 = vcombine.high %v436, %v436
    %v459 = vcombine.high %v443, %v443
    %v460 = vcombine.high %v450, %v450
    %v461 = vcombine.high %v457, %v457
    %v462 = vcombine.high %v24, %v24
    %v464 = vunpack.c.l.s4 1966171168
    %v465 = vunpack.c.0.s8 %v464
    %v466 = vlaneseq
    %v467 = vshrl.u32 %v466, 7
    %v468 = vsub.s32 %v465, %v467
    %v469 = vrot.slane %v24, %v468
    %v471 = vunpack.c.l.s4 1966171168
    %v472 = vunpack.c.0.s8 %v471
    %v473 = vlaneseq
    %v474 = vshrl.u32 %v473, 7
    %v475 = vsub.s32 %v472, %v474
    %v476 = vrot.slane %v462, %v475
    %v477 = vcombine.high %v469, %v469
    %v479 = vunpack.c.l.s4 1966171168
    %v480 = vunpack.c.0.s8 %v479
    %v481 = vlaneseq
    %v482 = vshrl.u32 %v481, 7
    %v483 = vsub.s32 %v480, %v482
    %v484 = vrot.slane %v469, %v483
    %v486 = vunpack.c.l.s4 1966171168
    %v487 = vunpack.c.0.s8 %v486
    %v488 = vlaneseq
    %v489 = vshrl.u32 %v488, 7
    %v490 = vsub.s32 %v487, %v489
    %v491 = vrot.slane %v476, %v490
    %v493 = vunpack.c.l.s4 1966171168
    %v494 = vunpack.c.0.s8 %v493
    %v495 = vlaneseq
    %v496 = vshrl.u32 %v495, 7
    %v497 = vsub.s32 %v494, %v496
    %v498 = vrot.slane %v477, %v497
    %v499 = vcombine.high %v484, %v484
    %v500 = vcombine.high %v498, %v498
    %v845 = vunpack.c.l.b16 %v25
    %v846 = vunpack.c.h.b16 %v25
    %v847 = vunpack.c.l.b16 %v26
    %v848 = vunpack.c.h.b16 %v26
    %v849 = vunpack.c.l.b16 %v27
    %v850 = vunpack.c.h.b16 %v27
    %v851 = vunpack.c.l.b16 %v28
    %v852 = vunpack.c.h.b16 %v28
    %v853 = vunpack.c.l.b16 %v29
    %v854 = vunpack.c.h.b16 %v29
    %v855 = vunpack.c.l.b16 %v30
    %v856 = vunpack.c.h.b16 %v30
    %v857 = vunpack.c.l.b16 %v31
    %v858 = vunpack.c.h.b16 %v31
    %v859 = vunpack.c.l.b16 %v32
    %v860 = vunpack.c.h.b16 %v32
    %v861 = vunpack.c.l.b16 %v33
    %v862 = vunpack.c.h.b16 %v33
    %v863 = vunpack.c.l.b16 %v34
    %v864 = vunpack.c.h.b16 %v34
    %v865 = vunpack.c.l.b16 %v35
    %v866 = vunpack.c.h.b16 %v35
    %v867 = vunpack.c.l.b16 %v36
    %v868 = vunpack.c.h.b16 %v36
    %v869 = vunpack.c.l.b16 %v37
    %v870 = vunpack.c.h.b16 %v37
    %v871 = vunpack.c.l.b16 %v38
    %v872 = vunpack.c.h.b16 %v38
    %v873 = vunpack.c.l.b16 %v39
    %v874 = vunpack.c.h.b16 %v39
    %v875 = vunpack.c.l.b16 %v40
    %v876 = vunpack.c.h.b16 %v40
    %v877 = vunpack.c.l.b16 %v41
    %v878 = vunpack.c.h.b16 %v41
    %v879 = vunpack.c.l.b16 %v42
    %v880 = vunpack.c.h.b16 %v42
    %v881 = vunpack.c.l.b16 %v43
    %v882 = vunpack.c.h.b16 %v43
    %v883 = vunpack.c.l.b16 %v44
    %v884 = vunpack.c.h.b16 %v44
    %v885 = vunpack.c.l.b16 %v45
    %v886 = vunpack.c.h.b16 %v45
    %v887 = vunpack.c.l.b16 %v46
    %v888 = vunpack.c.h.b16 %v46
    %v889 = vunpack.c.l.b16 %v47
    %v890 = vunpack.c.h.b16 %v47
    %v891 = vunpack.c.l.b16 %v48
    %v892 = vunpack.c.h.b16 %v48
    %v893 = vunpack.c.l.b16 %v49
    %v894 = vunpack.c.h.b16 %v49
    %v895 = vunpack.c.l.b16 %v50
    %v896 = vunpack.c.h.b16 %v50
    %v897 = vunpack.c.l.b16 %v51
    %v898 = vunpack.c.h.b16 %v51
    %v899 = vunpack.c.l.b16 %v52
    %v900 = vunpack.c.h.b16 %v52
    %v901 = vunpack.c.l.b16 %v53
    %v902 = vunpack.c.h.b16 %v53
    %v903 = vunpack.c.l.b16 %v54
    %v904 = vunpack.c.h.b16 %v54
    %v905 = vunpack.c.l.b16 %v55
    %v906 = vunpack.c.h.b16 %v55
    %v907 = vunpack.c.l.b16 %v56
    %v908 = vunpack.c.h.b16 %v56
    %v909 = vunpack.c.l.b16 %v57
    %v910 = vunpack.c.h.b16 %v57
    %v911 = vunpack.c.l.b16 %v58
    %v912 = vunpack.c.h.b16 %v58
    %v913 = vunpack.c.l.b16 %v59
    %v914 = vunpack.c.h.b16 %v59
    %v915 = vunpack.c.l.b16 %v60
    %v916 = vunpack.c.h.b16 %v60
    %v917 = vunpack.c.l.b16 %v61
    %v918 = vunpack.c.h.b16 %v61
    %v919 = vunpack.c.l.b16 %v62
    %v920 = vunpack.c.h.b16 %v62
    %v921 = vunpack.c.l.b16 %v63
    %v922 = vunpack.c.h.b16 %v63
    %v923 = vunpack.c.l.b16 %v64
    %v924 = vunpack.c.h.b16 %v64
    %v925 = vunpack.c.l.b16 %v65
    %v926 = vunpack.c.h.b16 %v65
    %v927 = vunpack.c.l.b16 %v66
    %v928 = vunpack.c.h.b16 %v66
    %v929 = vunpack.c.l.b16 %v67
    %v930 = vunpack.c.h.b16 %v67
    %v931 = vunpack.c.l.b16 %v68
    %v932 = vunpack.c.h.b16 %v68
    %v933 = vunpack.c.l.b16 %v69
    %v934 = vunpack.c.h.b16 %v69
    %v935 = vunpack.c.l.b16 %v70
    %v936 = vunpack.c.h.b16 %v70
    %v937 = vunpack.c.l.b16 %v71
    %v938 = vunpack.c.h.b16 %v71
    %v939 = vunpack.c.l.b16 %v72
    %v940 = vunpack.c.h.b16 %v72
    %v941 = vunpack.c.l.b16 %v73
    %v942 = vunpack.c.h.b16 %v73
    %v943 = vunpack.c.l.b16 %v74
    %v944 = vunpack.c.h.b16 %v74
    %v945 = vunpack.c.l.b16 %v75
    %v946 = vunpack.c.h.b16 %v75
    %v947 = vunpack.c.l.b16 %v76
    %v948 = vunpack.c.h.b16 %v76
    %v949 = vunpack.c.l.b16 %v77
    %v950 = vunpack.c.h.b16 %v77
    %v951 = vunpack.c.l.b16 %v78
    %v952 = vunpack.c.h.b16 %v78
    %v953 = vunpack.c.l.b16 %v79
    %v954 = vunpack.c.h.b16 %v79
    %v955 = vunpack.c.l.b16 %v80
    %v956 = vunpack.c.h.b16 %v80
    %v957 = vunpack.c.l.b16 %v81
    %v958 = vunpack.c.h.b16 %v81
    %v959 = vunpack.c.l.b16 %v82
    %v960 = vunpack.c.h.b16 %v82
    %v961 = vunpack.c.l.b16 %v83
    %v962 = vunpack.c.h.b16 %v83
    %v963 = vunpack.c.l.b16 %v84
    %v964 = vunpack.c.h.b16 %v84
    %v965 = vunpack.c.l.b16 %v85
    %v966 = vunpack.c.h.b16 %v85
    %v967 = vunpack.c.l.b16 %v86
    %v968 = vunpack.c.h.b16 %v86
    %v969 = vunpack.c.l.b16 %v87
    %v970 = vunpack.c.h.b16 %v87
    %v971 = vunpack.c.l.b16 %v88
    %v972 = vunpack.c.h.b16 %v88
    %v973 = vunpack.c.l.b16 %v89
    %v974 = vunpack.c.h.b16 %v89
    %v975 = vunpack.c.l.b16 %v90
    %v976 = vunpack.c.h.b16 %v90
    %v977 = vunpack.c.l.b16 %v91
    %v978 = vunpack.c.h.b16 %v91
    %v979 = vunpack.c.l.b16 %v92
    %v980 = vunpack.c.h.b16 %v92
    %v981 = vunpack.c.l.b16 %v93
    %v982 = vunpack.c.h.b16 %v93
    %v983 = vunpack.c.l.b16 %v94
    %v984 = vunpack.c.h.b16 %v94
    %v985 = vunpack.c.l.b16 %v95
    %v986 = vunpack.c.h.b16 %v95
    %v987 = vunpack.c.l.b16 %v96
    %v988 = vunpack.c.h.b16 %v96
    %v989 = vunpack.c.l.b16 %v97
    %v990 = vunpack.c.h.b16 %v97
    %v991 = vunpack.c.l.b16 %v98
    %v992 = vunpack.c.h.b16 %v98
    %v993 = vunpack.c.l.b16 %v99
    %v994 = vunpack.c.h.b16 %v99
    %v995 = vunpack.c.l.b16 %v100
    %v996 = vunpack.c.h.b16 %v100
    %v997 = vunpack.c.l.b16 %v101
    %v998 = vunpack.c.h.b16 %v101
    %v999 = vunpack.c.l.b16 %v102
    %v1000 = vunpack.c.h.b16 %v102
    %v1001 = vunpack.c.l.b16 %v103
    %v1002 = vunpack.c.h.b16 %v103
    %v1003 = vunpack.c.l.b16 %v104
    %v1004 = vunpack.c.h.b16 %v104
    %v1005 = vunpack.c.l.b16 %v105
    %v1006 = vunpack.c.h.b16 %v105
    %v1007 = vunpack.c.l.b16 %v106
    %v1008 = vunpack.c.h.b16 %v106
    %v1009 = vunpack.c.l.b16 %v107
    %v1010 = vunpack.c.h.b16 %v107
    %v1011 = vunpack.c.l.b16 %v108
    %v1012 = vunpack.c.h.b16 %v108
    %v1013 = vunpack.c.l.b16 %v109
    %v1014 = vunpack.c.h.b16 %v109
    %v1015 = vunpack.c.l.b16 %v110
    %v1016 = vunpack.c.h.b16 %v110
    %v1017 = vunpack.c.l.b16 %v111
    %v1018 = vunpack.c.h.b16 %v111
    %v1019 = vunpack.c.l.b16 %v112
    %v1020 = vunpack.c.h.b16 %v112
    %v1021 = vunpack.c.l.b16 %v113
    %v1022 = vunpack.c.h.b16 %v113
    %v1023 = vunpack.c.l.b16 %v114
    %v1024 = vunpack.c.h.b16 %v114
    %v1025 = vunpack.c.l.b16 %v115
    %v1026 = vunpack.c.h.b16 %v115
    %v1027 = vunpack.c.l.b16 %v116
    %v1028 = vunpack.c.h.b16 %v116
    %v1029 = vunpack.c.l.b16 %v117
    %v1030 = vunpack.c.h.b16 %v117
    %v1031 = vunpack.c.l.b16 %v118
    %v1032 = vunpack.c.h.b16 %v118
    %v1033 = vunpack.c.l.b16 %v119
    %v1034 = vunpack.c.h.b16 %v119
    %v1035 = vunpack.c.l.b16 %v120
    %v1036 = vunpack.c.h.b16 %v120
    %v1037 = vunpack.c.l.b16 %v121
    %v1038 = vunpack.c.h.b16 %v121
    %v1039 = vunpack.c.l.b16 %v122
    %v1040 = vunpack.c.h.b16 %v122
    %v1041 = vunpack.c.l.b16 %v123
    %v1042 = vunpack.c.h.b16 %v123
    %v1043 = vunpack.c.l.b16 %v124
    %v1044 = vunpack.c.h.b16 %v124
    %v1045 = vunpack.c.l.b16 %v125
    %v1046 = vunpack.c.h.b16 %v125
    %v1047 = vunpack.c.l.b16 %v126
    %v1048 = vunpack.c.h.b16 %v126
    %v1049 = vunpack.c.l.b16 %v127
    %v1050 = vunpack.c.h.b16 %v127
    %v1051 = vunpack.c.l.b16 %v128
    %v1052 = vunpack.c.h.b16 %v128
    %v1053 = vunpack.c.l.b16 %v129
    %v1054 = vunpack.c.h.b16 %v129
    %v1055 = vunpack.c.l.b16 %v130
    %v1056 = vunpack.c.h.b16 %v130
    %v1057 = vunpack.c.l.b16 %v131
    %v1058 = vunpack.c.h.b16 %v131
    %v1059 = vunpack.c.l.b16 %v132
    %v1060 = vunpack.c.h.b16 %v132
    %v1061 = vunpack.c.l.b16 %v133
    %v1062 = vunpack.c.h.b16 %v133
    %v1063 = vunpack.c.l.b16 %v134
    %v1064 = vunpack.c.h.b16 %v134
    %v1065 = vunpack.c.l.b16 %v135
    %v1066 = vunpack.c.h.b16 %v135
    %v1067 = vunpack.c.l.b16 %v136
    %v1068 = vunpack.c.h.b16 %v136
    %v1069 = vunpack.c.l.b16 %v137
    %v1070 = vunpack.c.h.b16 %v137
    %v1071 = vunpack.c.l.b16 %v138
    %v1072 = vunpack.c.h.b16 %v138
    %v1073 = vunpack.c.l.b16 %v139
    %v1074 = vunpack.c.h.b16 %v139
    %v1075 = vunpack.c.l.b16 %v140
    %v1076 = vunpack.c.h.b16 %v140
    %v1077 = vunpack.c.l.b16 %v141
    %v1078 = vunpack.c.h.b16 %v141
    %v1079 = vunpack.c.l.b16 %v142
    %v1080 = vunpack.c.h.b16 %v142
    %v1081 = vunpack.c.l.b16 %v143
    %v1082 = vunpack.c.h.b16 %v143
    %v1083 = vunpack.c.l.b16 %v144
    %v1084 = vunpack.c.h.b16 %v144
    %v1085 = vunpack.c.l.b16 %v145
    %v1086 = vunpack.c.h.b16 %v145
    %v1087 = vunpack.c.l.b16 %v146
    %v1088 = vunpack.c.h.b16 %v146
    %v1089 = vunpack.c.l.b16 %v147
    %v1090 = vunpack.c.h.b16 %v147
    %v1091 = vunpack.c.l.b16 %v148
    %v1092 = vunpack.c.h.b16 %v148
    %v1093 = vunpack.c.l.b16 %v149
    %v1094 = vunpack.c.h.b16 %v149
    %v1095 = vunpack.c.l.b16 %v150
    %v1096 = vunpack.c.h.b16 %v150
    %v1097 = vunpack.c.l.b16 %v151
    %v1098 = vunpack.c.h.b16 %v151
    %v1099 = vunpack.c.l.b16 %v152
    %v1100 = vunpack.c.h.b16 %v152
    %v1101 = vunpack.c.l.b16 %v153
    %v1102 = vunpack.c.h.b16 %v153
    %v1103 = vunpack.c.l.b16 %v154
    %v1104 = vunpack.c.h.b16 %v154
    %v1105 = vunpack.c.l.b16 %v155
    %v1106 = vunpack.c.h.b16 %v155
    %v1107 = vunpack.c.l.b16 %v156
    %v1108 = vunpack.c.h.b16 %v156
    %v1109 = vunpack.c.l.b16 %v157
    %v1110 = vunpack.c.h.b16 %v157
    %v1111 = vunpack.c.l.b16 %v158
    %v1112 = vunpack.c.h.b16 %v158
    %v1113 = vunpack.c.l.b16 %v159
    %v1114 = vunpack.c.h.b16 %v159
    %v1115 = vunpack.c.l.b16 %v160
    %v1116 = vunpack.c.h.b16 %v160
    %v1117 = vunpack.c.l.b16 %v161
    %v1118 = vunpack.c.h.b16 %v161
    %v1119 = vunpack.c.l.b16 %v162
    %v1120 = vunpack.c.h.b16 %v162
    %v1121 = vunpack.c.l.b16 %v163
    %v1122 = vunpack.c.h.b16 %v163
    %v1123 = vunpack.c.l.b16 %v164
    %v1124 = vunpack.c.h.b16 %v164
    %v1125 = vunpack.c.l.b16 %v165
    %v1126 = vunpack.c.h.b16 %v165
    %v1127 = vunpack.c.l.b16 %v166
    %v1128 = vunpack.c.h.b16 %v166
    %v1129 = vunpack.c.l.b16 %v167
    %v1130 = vunpack.c.h.b16 %v167
    %v1131 = vunpack.c.l.b16 %v168
    %v1132 = vunpack.c.h.b16 %v168
    %v1133 = vunpack.c.l.b16 %v169
    %v1134 = vunpack.c.h.b16 %v169
    %v1135 = vunpack.c.l.b16 %v170
    %v1136 = vunpack.c.h.b16 %v170
    %v1137 = vunpack.c.l.b16 %v171
    %v1138 = vunpack.c.h.b16 %v171
    %v1139 = vunpack.c.l.b16 %v172
    %v1140 = vunpack.c.h.b16 %v172
    %v1141 = vunpack.c.l.b16 %v173
    %v1142 = vunpack.c.h.b16 %v173
    %v1143 = vunpack.c.l.b16 %v174
    %v1144 = vunpack.c.h.b16 %v174
    %v1145 = vunpack.c.l.b16 %v175
    %v1146 = vunpack.c.h.b16 %v175
    %v1147 = vunpack.c.l.b16 %v176
    %v1148 = vunpack.c.h.b16 %v176
    %v1149 = vunpack.c.l.b16 %v177
    %v1150 = vunpack.c.h.b16 %v177
    %v1151 = vunpack.c.l.b16 %v178
    %v1152 = vunpack.c.h.b16 %v178
    %v1153 = vunpack.c.l.b16 %v179
    %v1154 = vunpack.c.h.b16 %v179
    %v1155 = vunpack.c.l.b16 %v180
    %v1156 = vunpack.c.h.b16 %v180
    %v1157 = vunpack.c.l.b16 %v181
    %v1158 = vunpack.c.h.b16 %v181
    %v1159 = vunpack.c.l.b16 %v182
    %v1160 = vunpack.c.h.b16 %v182
    %v1161 = vunpack.c.l.b16 %v183
    %v1162 = vunpack.c.h.b16 %v183
    %v1163 = vunpack.c.l.b16 %v184
    %v1164 = vunpack.c.h.b16 %v184
    %v1165 = vunpack.c.l.b16 %v185
    %v1166 = vunpack.c.h.b16 %v185
    %v1167 = vunpack.c.l.b16 %v186
    %v1168 = vunpack.c.h.b16 %v186
    %v1169 = vunpack.c.l.b16 %v187
    %v1170 = vunpack.c.h.b16 %v187
    %v1171 = vunpack.c.l.b16 %v188
    %v1172 = vunpack.c.h.b16 %v188
    %v1173 = vunpack.c.l.b16 %v189
    %v1174 = vunpack.c.h.b16 %v189
    %v1175 = vunpack.c.l.b16 %v190
    %v1176 = vunpack.c.h.b16 %v190
    %v1177 = vunpack.c.l.b16 %v191
    %v1178 = vunpack.c.h.b16 %v191
    %v1179 = vunpack.c.l.b16 %v192
    %v1180 = vunpack.c.h.b16 %v192
    %v1181 = vunpack.c.l.b16 %v193
    %v1182 = vunpack.c.h.b16 %v193
    %v1183 = vunpack.c.l.b16 %v194
    %v1184 = vunpack.c.h.b16 %v194
    %v1185 = vunpack.c.l.b16 %v195
    %v1186 = vunpack.c.h.b16 %v195
    %v1187 = vunpack.c.l.b16 %v196
    %v1188 = vunpack.c.h.b16 %v196
    %v1189 = vunpack.c.l.b16 %v197
    %v1190 = vunpack.c.h.b16 %v197
    %v1191 = vunpack.c.l.b16 %v198
    %v1192 = vunpack.c.h.b16 %v198
    %v1193 = vunpack.c.l.b16 %v199
    %v1194 = vunpack.c.h.b16 %v199
    %v1195 = vunpack.c.l.b16 %v200
    %v1196 = vunpack.c.h.b16 %v200
    %v1197 = vunpack.c.l.b16 %v201
    %v1198 = vunpack.c.h.b16 %v201
    %v1199 = vunpack.c.l.b16 %v202
    %v1200 = vunpack.c.h.b16 %v202
    %v1201 = vunpack.c.l.b16 %v203
    %v1202 = vunpack.c.h.b16 %v203
    %v1203 = vunpack.c.l.b16 %v204
    %v1204 = vunpack.c.h.b16 %v204
    %v1205 = vunpack.c.l.b16 %v205
    %v1206 = vunpack.c.h.b16 %v205
    %v1207 = vunpack.c.l.b16 %v206
    %v1208 = vunpack.c.h.b16 %v206
    %v1209 = vunpack.c.l.b16 %v207
    %v1210 = vunpack.c.h.b16 %v207
    %v1211 = vunpack.c.l.b16 %v208
    %v1212 = vunpack.c.h.b16 %v208
    %v1213 = vunpack.c.l.b16 %v209
    %v1214 = vunpack.c.h.b16 %v209
    %v1215 = vunpack.c.l.b16 %v210
    %v1216 = vunpack.c.h.b16 %v210
    %v1217 = vunpack.c.l.b16 %v211
    %v1218 = vunpack.c.h.b16 %v211
    %v1219 = vunpack.c.l.b16 %v212
    %v1220 = vunpack.c.h.b16 %v212
    %v1221 = vunpack.c.l.b16 %v213
    %v1222 = vunpack.c.h.b16 %v213
    %v1223 = vunpack.c.l.b16 %v214
    %v1224 = vunpack.c.h.b16 %v214
    %v1225 = vunpack.c.l.b16 %v215
    %v1226 = vunpack.c.h.b16 %v215
    %v1227 = vunpack.c.l.b16 %v216
    %v1228 = vunpack.c.h.b16 %v216
    %v1229 = vunpack.c.l.b16 %v217
    %v1230 = vunpack.c.h.b16 %v217
    %v1231 = vunpack.c.l.b16 %v218
    %v1232 = vunpack.c.h.b16 %v218
    %v1233 = vunpack.c.l.b16 %v219
    %v1234 = vunpack.c.h.b16 %v219
    %v1235 = vunpack.c.l.b16 %v220
    %v1236 = vunpack.c.h.b16 %v220
    %v1237 = vunpack.c.l.b16 %v221
    %v1238 = vunpack.c.h.b16 %v221
    %v1239 = vunpack.c.l.b16 %v222
    %v1240 = vunpack.c.h.b16 %v222
    %v1241 = vunpack.c.l.b16 %v223
    %v1242 = vunpack.c.h.b16 %v223
    %v1243 = vunpack.c.l.b16 %v224
    %v1244 = vunpack.c.h.b16 %v224
    %v1245 = vunpack.c.l.b16 %v225
    %v1246 = vunpack.c.h.b16 %v225
    %v1247 = vunpack.c.l.b16 %v226
    %v1248 = vunpack.c.h.b16 %v226
    %v1249 = vunpack.c.l.b16 %v227
    %v1250 = vunpack.c.h.b16 %v227
    %v1251 = vunpack.c.l.b16 %v228
    %v1252 = vunpack.c.h.b16 %v228
    %v1253 = vunpack.c.l.b16 %v229
    %v1254 = vunpack.c.h.b16 %v229
    %v1255 = vunpack.c.l.b16 %v230
    %v1256 = vunpack.c.h.b16 %v230
    %v1257 = vunpack.c.l.b16 %v231
    %v1258 = vunpack.c.h.b16 %v231
    %v1259 = vunpack.c.l.b16 %v232
    %v1260 = vunpack.c.h.b16 %v232
    %v1261 = vunpack.c.l.b16 %v233
    %v1262 = vunpack.c.h.b16 %v233
    %v1263 = vunpack.c.l.b16 %v234
    %v1264 = vunpack.c.h.b16 %v234
    %v1265 = vunpack.c.l.b16 %v235
    %v1266 = vunpack.c.h.b16 %v235
    %v1267 = vunpack.c.l.b16 %v236
    %v1268 = vunpack.c.h.b16 %v236
    %v1269 = vunpack.c.l.b16 %v237
    %v1270 = vunpack.c.h.b16 %v237
    %v1271 = vunpack.c.l.b16 %v238
    %v1272 = vunpack.c.h.b16 %v238
    %v1273 = vunpack.c.l.b16 %v239
    %v1274 = vunpack.c.h.b16 %v239
    %v1275 = vunpack.c.l.b16 %v240
    %v1276 = vunpack.c.h.b16 %v240
    %v1277 = vunpack.c.l.b16 %v241
    %v1278 = vunpack.c.h.b16 %v241
    %v1279 = vunpack.c.l.b16 %v242
    %v1280 = vunpack.c.h.b16 %v242
    %v1281 = vunpack.c.l.b16 %v243
    %v1282 = vunpack.c.h.b16 %v243
    %v1283 = vunpack.c.l.b16 %v244
    %v1284 = vunpack.c.h.b16 %v244
    %v1285 = vunpack.c.l.b16 %v245
    %v1286 = vunpack.c.h.b16 %v245
    %v1287 = vunpack.c.l.b16 %v246
    %v1288 = vunpack.c.h.b16 %v246
    %v1289 = vunpack.c.l.b16 %v247
    %v1290 = vunpack.c.h.b16 %v247
    %v1291 = vunpack.c.l.b16 %v248
    %v1292 = vunpack.c.h.b16 %v248
    %v1293 = vunpack.c.l.b16 %v249
    %v1294 = vunpack.c.h.b16 %v249
    %v1295 = vunpack.c.l.b16 %v250
    %v1296 = vunpack.c.h.b16 %v250
    %v1297 = vunpack.c.l.b16 %v251
    %v1298 = vunpack.c.h.b16 %v251
    %v1299 = vunpack.c.l.b16 %v252
    %v1300 = vunpack.c.h.b16 %v252
    %v1301 = vunpack.c.l.b16 %v253
    %v1302 = vunpack.c.h.b16 %v253
    %v1303 = vunpack.c.l.b16 %v254
    %v1304 = vunpack.c.h.b16 %v254
    %v1305 = vunpack.c.l.b16 %v255
    %v1306 = vunpack.c.h.b16 %v255
    %v1307 = vunpack.c.l.b16 %v256
    %v1308 = vunpack.c.h.b16 %v256
    %v1309 = vunpack.c.l.b16 %v257
    %v1310 = vunpack.c.h.b16 %v257
    %v1311 = vunpack.c.l.b16 %v258
    %v1312 = vunpack.c.h.b16 %v258
    %v1313 = vunpack.c.l.b16 %v259
    %v1314 = vunpack.c.h.b16 %v259
    %v1315 = vunpack.c.l.b16 %v260
    %v1316 = vunpack.c.h.b16 %v260
    %v1317 = vunpack.c.l.b16 %v261
    %v1318 = vunpack.c.h.b16 %v261
    %v1319 = vunpack.c.l.b16 %v262
    %v1320 = vunpack.c.h.b16 %v262
    %v1321 = vunpack.c.l.b16 %v263
    %v1322 = vunpack.c.h.b16 %v263
    %v1323 = vunpack.c.l.b16 %v264
    %v1324 = vunpack.c.h.b16 %v264
    %v1325 = vunpack.c.l.b16 %v265
    %v1326 = vunpack.c.h.b16 %v265
    %v1327 = vunpack.c.l.b16 %v266
    %v1328 = vunpack.c.h.b16 %v266
    %v1329 = vunpack.c.l.b16 %v267
    %v1330 = vunpack.c.h.b16 %v267
    %v1331 = vunpack.c.l.b16 %v268
    %v1332 = vunpack.c.h.b16 %v268
    %v1333 = vunpack.c.l.b16 %v269
    %v1334 = vunpack.c.h.b16 %v269
    %v1335 = vunpack.c.l.b16 %v270
    %v1336 = vunpack.c.h.b16 %v270
    %v1337 = vunpack.c.l.b16 %v271
    %v1338 = vunpack.c.h.b16 %v271
    %v1339 = vunpack.c.l.b16 %v272
    %v1340 = vunpack.c.h.b16 %v272
    %v1341 = vunpack.c.l.b16 %v273
    %v1342 = vunpack.c.h.b16 %v273
    %v1343 = vunpack.c.l.b16 %v274
    %v1344 = vunpack.c.h.b16 %v274
    %v1345 = vunpack.c.l.b16 %v275
    %v1346 = vunpack.c.h.b16 %v275
    %v1347 = vunpack.c.l.b16 %v276
    %v1348 = vunpack.c.h.b16 %v276
    %v1349 = vunpack.c.l.b16 %v277
    %v1350 = vunpack.c.h.b16 %v277
    %v1351 = vunpack.c.l.b16 %v278
    %v1352 = vunpack.c.h.b16 %v278
    %v1353 = vunpack.c.l.b16 %v279
    %v1354 = vunpack.c.h.b16 %v279
    %v1355 = vunpack.c.l.b16 %v280
    %v1356 = vunpack.c.h.b16 %v280
    %v1357 = vunpack.c.l.b16 %v281
    %v1358 = vunpack.c.h.b16 %v281
    %v1359 = vunpack.c.l.b16 %v282
    %v1360 = vunpack.c.h.b16 %v282
    %v1361 = vunpack.c.l.b16 %v283
    %v1362 = vunpack.c.h.b16 %v283
    %v1363 = vunpack.c.l.b16 %v284
    %v1364 = vunpack.c.h.b16 %v284
    %v1365 = vunpack.c.l.b16 %v285
    %v1366 = vunpack.c.h.b16 %v285
    %v1367 = vunpack.c.l.b16 %v286
    %v1368 = vunpack.c.h.b16 %v286
    %v1369 = vunpack.c.l.b16 %v287
    %v1370 = vunpack.c.h.b16 %v287
    %v1371 = vunpack.c.l.b16 %v288
    %v1372 = vunpack.c.h.b16 %v288
    %v1373 = vunpack.c.l.b16 %v289
    %v1374 = vunpack.c.h.b16 %v289
    %v1375 = vunpack.c.l.b16 %v290
    %v1376 = vunpack.c.h.b16 %v290
    %v1377 = vunpack.c.l.b16 %v291
    %v1378 = vunpack.c.h.b16 %v291
    %v1379 = vunpack.c.l.b16 %v292
    %v1380 = vunpack.c.h.b16 %v292
    %v1381 = vunpack.c.l.b16 %v293
    %v1382 = vunpack.c.h.b16 %v293
    %v1383 = vunpack.c.l.b16 %v294
    %v1384 = vunpack.c.h.b16 %v294
    %v1385 = vunpack.c.l.b16 %v295
    %v1386 = vunpack.c.h.b16 %v295
    %v1387 = vunpack.c.l.b16 %v296
    %v1388 = vunpack.c.h.b16 %v296
    %v1389 = vunpack.c.l.b16 %v297
    %v1390 = vunpack.c.h.b16 %v297
    %v1391 = vunpack.c.l.b16 %v298
    %v1392 = vunpack.c.h.b16 %v298
    %v1393 = vunpack.c.l.b16 %v299
    %v1394 = vunpack.c.h.b16 %v299
    %v1395 = vunpack.c.l.b16 %v300
    %v1396 = vunpack.c.h.b16 %v300
    %v1397 = vunpack.c.l.b16 %v301
    %v1398 = vunpack.c.h.b16 %v301
    %v1399 = vunpack.c.l.b16 %v302
    %v1400 = vunpack.c.h.b16 %v302
    %v1401 = vunpack.c.l.b16 %v303
    %v1402 = vunpack.c.h.b16 %v303
    %v1403 = vunpack.c.l.b16 %v304
    %v1404 = vunpack.c.h.b16 %v304
    %v1405 = vunpack.c.l.b16 %v305
    %v1406 = vunpack.c.h.b16 %v305
    %v1407 = vunpack.c.l.b16 %v306
    %v1408 = vunpack.c.h.b16 %v306
    %v1409 = vunpack.c.l.b16 %v307
    %v1410 = vunpack.c.h.b16 %v307
    %v1411 = vunpack.c.l.b16 %v308
    %v1412 = vunpack.c.h.b16 %v308
    %v1413 = vunpack.c.l.b16 %v309
    %v1414 = vunpack.c.h.b16 %v309
    %v1415 = vunpack.c.l.b16 %v310
    %v1416 = vunpack.c.h.b16 %v310
    %v1417 = vunpack.c.l.b16 %v311
    %v1418 = vunpack.c.h.b16 %v311
    %v1419 = vunpack.c.l.b16 %v312
    %v1420 = vunpack.c.h.b16 %v312
    %v1421 = vunpack.c.l.b16 %v313
    %v1422 = vunpack.c.h.b16 %v313
    %v1423 = vunpack.c.l.b16 %v314
    %v1424 = vunpack.c.h.b16 %v314
    %v1425 = vunpack.c.l.b16 %v315
    %v1426 = vunpack.c.h.b16 %v315
    %v1427 = vunpack.c.l.b16 %v316
    %v1428 = vunpack.c.h.b16 %v316
    %v1429 = vunpack.c.l.b16 %v317
    %v1430 = vunpack.c.h.b16 %v317
    %v1431 = vunpack.c.l.b16 %v318
    %v1432 = vunpack.c.h.b16 %v318
    %v1433 = vunpack.c.l.b16 %v319
    %v1434 = vunpack.c.h.b16 %v319
    %v1435 = vunpack.c.l.b16 %v320
    %v1436 = vunpack.c.h.b16 %v320
    %v1437 = vunpack.c.l.b16 %v321
    %v1438 = vunpack.c.h.b16 %v321
    %v1439 = vunpack.c.l.b16 %v322
    %v1440 = vunpack.c.h.b16 %v322
    %v1441 = vunpack.c.l.b16 %v323
    %v1442 = vunpack.c.h.b16 %v323
    %v1443 = vunpack.c.l.b16 %v324
    %v1444 = vunpack.c.h.b16 %v324
    %v1445 = vunpack.c.l.b16 %v325
    %v1446 = vunpack.c.h.b16 %v325
    %v1447 = vunpack.c.l.b16 %v326
    %v1448 = vunpack.c.h.b16 %v326
    %v1449 = vunpack.c.l.b16 %v327
    %v1450 = vunpack.c.h.b16 %v327
    %v1451 = vunpack.c.l.b16 %v328
    %v1452 = vunpack.c.h.b16 %v328
    %v1453 = vunpack.c.l.b16 %v329
    %v1454 = vunpack.c.h.b16 %v329
    %v1455 = vunpack.c.l.b16 %v330
    %v1456 = vunpack.c.h.b16 %v330
    %v1457 = vunpack.c.l.b16 %v331
    %v1458 = vunpack.c.h.b16 %v331
    %v1459 = vunpack.c.l.b16 %v332
    %v1460 = vunpack.c.h.b16 %v332
    %v1461 = vunpack.c.l.b16 %v333
    %v1462 = vunpack.c.h.b16 %v333
    %v1463 = vunpack.c.l.b16 %v334
    %v1464 = vunpack.c.h.b16 %v334
    %v1465 = vunpack.c.l.b16 %v335
    %v1466 = vunpack.c.h.b16 %v335
    %v1467 = vunpack.c.l.b16 %v336
    %v1468 = vunpack.c.h.b16 %v336
    %v1469 = vunpack.c.l.b16 %v337
    %v1470 = vunpack.c.h.b16 %v337
    %v1471 = vunpack.c.l.b16 %v338
    %v1472 = vunpack.c.h.b16 %v338
    %v1473 = vunpack.c.l.b16 %v339
    %v1474 = vunpack.c.h.b16 %v339
    %v1475 = vunpack.c.l.b16 %v340
    %v1476 = vunpack.c.h.b16 %v340
    %v1477 = vunpack.c.l.b16 %v341
    %v1478 = vunpack.c.h.b16 %v341
    %v1479 = vunpack.c.l.b16 %v342
    %v1480 = vunpack.c.h.b16 %v342
    %v1481 = vunpack.c.l.b16 %v343
    %v1482 = vunpack.c.h.b16 %v343
    %v1483 = vunpack.c.l.b16 %v344
    %v1484 = vunpack.c.h.b16 %v344
    %v1485 = vunpack.c.l.b16 %v345
    %v1486 = vunpack.c.h.b16 %v345
    %v1487 = vunpack.c.l.b16 %v346
    %v1488 = vunpack.c.h.b16 %v346
    %v1489 = vunpack.c.l.b16 %v347
    %v1490 = vunpack.c.h.b16 %v347
    %v1491 = vunpack.c.l.b16 %v348
    %v1492 = vunpack.c.h.b16 %v348
    %v1493 = vpack.c.b16 %v847, %v845
    %v1494 = vpack.c.b16 %v848, %v846
    %v1495 = vpack.c.b16 %v851, %v849
    %v1496 = vpack.c.b16 %v852, %v850
    %v1497 = vpack.c.b16 %v855, %v853
    %v1498 = vpack.c.b16 %v856, %v854
    %v1499 = vpack.c.b16 %v859, %v857
    %v1500 = vpack.c.b16 %v860, %v858
    %v1501 = vpack.c.b16 %v863, %v861
    %v1502 = vpack.c.b16 %v864, %v862
    %v1503 = vpack.c.b16 %v867, %v865
    %v1504 = vpack.c.b16 %v868, %v866
    %v1505 = vpack.c.b16 %v871, %v869
    %v1506 = vpack.c.b16 %v872, %v870
    %v1507 = vpack.c.b16 %v875, %v873
    %v1508 = vpack.c.b16 %v876, %v874
    %v1509 = vpack.c.b16 %v879, %v877
    %v1510 = vpack.c.b16 %v880, %v878
    %v1511 = vpack.c.b16 %v883, %v881
    %v1512 = vpack.c.b16 %v884, %v882
    %v1513 = vpack.c.b16 %v887, %v885
    %v1514 = vpack.c.b16 %v888, %v886
    %v1515 = vpack.c.b16 %v891, %v889
    %v1516 = vpack.c.b16 %v892, %v890
    %v1517 = vpack.c.b16 %v895, %v893
    %v1518 = vpack.c.b16 %v896, %v894
    %v1519 = vpack.c.b16 %v899, %v897
    %v1520 = vpack.c.b16 %v900, %v898
    %v1521 = vpack.c.b16 %v903, %v901
    %v1522 = vpack.c.b16 %v904, %v902
    %v1523 = vpack.c.b16 %v907, %v905
    %v1524 = vpack.c.b16 %v908, %v906
    %v1525 = vpack.c.b16 %v911, %v909
    %v1526 = vpack.c.b16 %v912, %v910
    %v1527 = vpack.c.b16 %v915, %v913
    %v1528 = vpack.c.b16 %v916, %v914
    %v1529 = vpack.c.b16 %v919, %v917
    %v1530 = vpack.c.b16 %v920, %v918
    %v1531 = vpack.c.b16 %v923, %v921
    %v1532 = vpack.c.b16 %v924, %v922
    %v1533 = vpack.c.b16 %v927, %v925
    %v1534 = vpack.c.b16 %v928, %v926
    %v1535 = vpack.c.b16 %v931, %v929
    %v1536 = vpack.c.b16 %v932, %v930
    %v1537 = vpack.c.b16 %v935, %v933
    %v1538 = vpack.c.b16 %v936, %v934
    %v1539 = vpack.c.b16 %v939, %v937
    %v1540 = vpack.c.b16 %v940, %v938
    %v1541 = vpack.c.b16 %v943, %v941
    %v1542 = vpack.c.b16 %v944, %v942
    %v1543 = vpack.c.b16 %v947, %v945
    %v1544 = vpack.c.b16 %v948, %v946
    %v1545 = vpack.c.b16 %v951, %v949
    %v1546 = vpack.c.b16 %v952, %v950
    %v1547 = vpack.c.b16 %v955, %v953
    %v1548 = vpack.c.b16 %v956, %v954
    %v1549 = vpack.c.b16 %v959, %v957
    %v1550 = vpack.c.b16 %v960, %v958
    %v1551 = vpack.c.b16 %v963, %v961
    %v1552 = vpack.c.b16 %v964, %v962
    %v1553 = vpack.c.b16 %v967, %v965
    %v1554 = vpack.c.b16 %v968, %v966
    %v1555 = vpack.c.b16 %v971, %v969
    %v1556 = vpack.c.b16 %v972, %v970
    %v1557 = vpack.c.b16 %v975, %v973
    %v1558 = vpack.c.b16 %v976, %v974
    %v1559 = vpack.c.b16 %v979, %v977
    %v1560 = vpack.c.b16 %v980, %v978
    %v1561 = vpack.c.b16 %v983, %v981
    %v1562 = vpack.c.b16 %v984, %v982
    %v1563 = vpack.c.b16 %v987, %v985
    %v1564 = vpack.c.b16 %v988, %v986
    %v1565 = vpack.c.b16 %v991, %v989
    %v1566 = vpack.c.b16 %v992, %v990
    %v1567 = vpack.c.b16 %v995, %v993
    %v1568 = vpack.c.b16 %v996, %v994
    %v1569 = vpack.c.b16 %v999, %v997
    %v1570 = vpack.c.b16 %v1000, %v998
    %v1571 = vpack.c.b16 %v1003, %v1001
    %v1572 = vpack.c.b16 %v1004, %v1002
    %v1573 = vpack.c.b16 %v1007, %v1005
    %v1574 = vpack.c.b16 %v1008, %v1006
    %v1575 = vpack.c.b16 %v1011, %v1009
    %v1576 = vpack.c.b16 %v1012, %v1010
    %v1577 = vpack.c.b16 %v1015, %v1013
    %v1578 = vpack.c.b16 %v1016, %v1014
    %v1579 = vpack.c.b16 %v1019, %v1017
    %v1580 = vpack.c.b16 %v1020, %v1018
    %v1581 = vpack.c.b16 %v1023, %v1021
    %v1582 = vpack.c.b16 %v1024, %v1022
    %v1583 = vpack.c.b16 %v1027, %v1025
    %v1584 = vpack.c.b16 %v1028, %v1026
    %v1585 = vpack.c.b16 %v1031, %v1029
    %v1586 = vpack.c.b16 %v1032, %v1030
    %v1587 = vpack.c.b16 %v1035, %v1033
    %v1588 = vpack.c.b16 %v1036, %v1034
    %v1589 = vpack.c.b16 %v1039, %v1037
    %v1590 = vpack.c.b16 %v1040, %v1038
    %v1591 = vpack.c.b16 %v1043, %v1041
    %v1592 = vpack.c.b16 %v1044, %v1042
    %v1593 = vpack.c.b16 %v1047, %v1045
    %v1594 = vpack.c.b16 %v1048, %v1046
    %v1595 = vpack.c.b16 %v1051, %v1049
    %v1596 = vpack.c.b16 %v1052, %v1050
    %v1597 = vpack.c.b16 %v1055, %v1053
    %v1598 = vpack.c.b16 %v1056, %v1054
    %v1599 = vpack.c.b16 %v1059, %v1057
    %v1600 = vpack.c.b16 %v1060, %v1058
    %v1601 = vpack.c.b16 %v1063, %v1061
    %v1602 = vpack.c.b16 %v1064, %v1062
    %v1603 = vpack.c.b16 %v1067, %v1065
    %v1604 = vpack.c.b16 %v1068, %v1066
    %v1605 = vpack.c.b16 %v1071, %v1069
    %v1606 = vpack.c.b16 %v1072, %v1070
    %v1607 = vpack.c.b16 %v1075, %v1073
    %v1608 = vpack.c.b16 %v1076, %v1074
    %v1609 = vpack.c.b16 %v1079, %v1077
    %v1610 = vpack.c.b16 %v1080, %v1078
    %v1611 = vpack.c.b16 %v1083, %v1081
    %v1612 = vpack.c.b16 %v1084, %v1082
    %v1613 = vpack.c.b16 %v1087, %v1085
    %v1614 = vpack.c.b16 %v1088, %v1086
    %v1615 = vpack.c.b16 %v1091, %v1089
    %v1616 = vpack.c.b16 %v1092, %v1090
    %v1617 = vpack.c.b16 %v1095, %v1093
    %v1618 = vpack.c.b16 %v1096, %v1094
    %v1619 = vpack.c.b16 %v1099, %v1097
    %v1620 = vpack.c.b16 %v1100, %v1098
    %v1621 = vpack.c.b16 %v1103, %v1101
    %v1622 = vpack.c.b16 %v1104, %v1102
    %v1623 = vpack.c.b16 %v1107, %v1105
    %v1624 = vpack.c.b16 %v1108, %v1106
    %v1625 = vpack.c.b16 %v1111, %v1109
    %v1626 = vpack.c.b16 %v1112, %v1110
    %v1627 = vpack.c.b16 %v1115, %v1113
    %v1628 = vpack.c.b16 %v1116, %v1114
    %v1629 = vpack.c.b16 %v1119, %v1117
    %v1630 = vpack.c.b16 %v1120, %v1118
    %v1631 = vpack.c.b16 %v1123, %v1121
    %v1632 = vpack.c.b16 %v1124, %v1122
    %v1633 = vpack.c.b16 %v1127, %v1125
    %v1634 = vpack.c.b16 %v1128, %v1126
    %v1635 = vpack.c.b16 %v1131, %v1129
    %v1636 = vpack.c.b16 %v1132, %v1130
    %v1637 = vpack.c.b16 %v1135, %v1133
    %v1638 = vpack.c.b16 %v1136, %v1134
    %v1639 = vpack.c.b16 %v1139, %v1137
    %v1640 = vpack.c.b16 %v1140, %v1138
    %v1641 = vpack.c.b16 %v1143, %v1141
    %v1642 = vpack.c.b16 %v1144, %v1142
    %v1643 = vpack.c.b16 %v1147, %v1145
    %v1644 = vpack.c.b16 %v1148, %v1146
    %v1645 = vpack.c.b16 %v1151, %v1149
    %v1646 = vpack.c.b16 %v1152, %v1150
    %v1647 = vpack.c.b16 %v1155, %v1153
    %v1648 = vpack.c.b16 %v1156, %v1154
    %v1649 = vpack.c.b16 %v1159, %v1157
    %v1650 = vpack.c.b16 %v1160, %v1158
    %v1651 = vpack.c.b16 %v1163, %v1161
    %v1652 = vpack.c.b16 %v1164, %v1162
    %v1653 = vpack.c.b16 %v1167, %v1165
    %v1654 = vpack.c.b16 %v1168, %v1166
    %v1655 = vpack.c.b16 %v1171, %v1169
    %v1656 = vpack.c.b16 %v1172, %v1170
    %v1657 = vpack.c.b16 %v1175, %v1173
    %v1658 = vpack.c.b16 %v1176, %v1174
    %v1659 = vpack.c.b16 %v1179, %v1177
    %v1660 = vpack.c.b16 %v1180, %v1178
    %v1661 = vpack.c.b16 %v1183, %v1181
    %v1662 = vpack.c.b16 %v1184, %v1182
    %v1663 = vpack.c.b16 %v1187, %v1185
    %v1664 = vpack.c.b16 %v1188, %v1186
    %v1665 = vpack.c.b16 %v1191, %v1189
    %v1666 = vpack.c.b16 %v1192, %v1190
    %v1667 = vpack.c.b16 %v1195, %v1193
    %v1668 = vpack.c.b16 %v1196, %v1194
    %v1669 = vpack.c.b16 %v1199, %v1197
    %v1670 = vpack.c.b16 %v1200, %v1198
    %v1671 = vpack.c.b16 %v1203, %v1201
    %v1672 = vpack.c.b16 %v1204, %v1202
    %v1673 = vpack.c.b16 %v1207, %v1205
    %v1674 = vpack.c.b16 %v1208, %v1206
    %v1675 = vpack.c.b16 %v1211, %v1209
    %v1676 = vpack.c.b16 %v1212, %v1210
    %v1677 = vpack.c.b16 %v1215, %v1213
    %v1678 = vpack.c.b16 %v1216, %v1214
    %v1679 = vpack.c.b16 %v1219, %v1217
    %v1680 = vpack.c.b16 %v1220, %v1218
    %v1681 = vpack.c.b16 %v1223, %v1221
    %v1682 = vpack.c.b16 %v1224, %v1222
    %v1683 = vpack.c.b16 %v1227, %v1225
    %v1684 = vpack.c.b16 %v1228, %v1226
    %v1685 = vpack.c.b16 %v1231, %v1229
    %v1686 = vpack.c.b16 %v1232, %v1230
    %v1687 = vpack.c.b16 %v1235, %v1233
    %v1688 = vpack.c.b16 %v1236, %v1234
    %v1689 = vpack.c.b16 %v1239, %v1237
    %v1690 = vpack.c.b16 %v1240, %v1238
    %v1691 = vpack.c.b16 %v1243, %v1241
    %v1692 = vpack.c.b16 %v1244, %v1242
    %v1693 = vpack.c.b16 %v1247, %v1245
    %v1694 = vpack.c.b16 %v1248, %v1246
    %v1695 = vpack.c.b16 %v1251, %v1249
    %v1696 = vpack.c.b16 %v1252, %v1250
    %v1697 = vpack.c.b16 %v1255, %v1253
    %v1698 = vpack.c.b16 %v1256, %v1254
    %v1699 = vpack.c.b16 %v1259, %v1257
    %v1700 = vpack.c.b16 %v1260, %v1258
    %v1701 = vpack.c.b16 %v1263, %v1261
    %v1702 = vpack.c.b16 %v1264, %v1262
    %v1703 = vpack.c.b16 %v1267, %v1265
    %v1704 = vpack.c.b16 %v1268, %v1266
    %v1705 = vpack.c.b16 %v1271, %v1269
    %v1706 = vpack.c.b16 %v1272, %v1270
    %v1707 = vpack.c.b16 %v1275, %v1273
    %v1708 = vpack.c.b16 %v1276, %v1274
    %v1709 = vpack.c.b16 %v1279, %v1277
    %v1710 = vpack.c.b16 %v1280, %v1278
    %v1711 = vpack.c.b16 %v1283, %v1281
    %v1712 = vpack.c.b16 %v1284, %v1282
    %v1713 = vpack.c.b16 %v1287, %v1285
    %v1714 = vpack.c.b16 %v1288, %v1286
    %v1715 = vpack.c.b16 %v1291, %v1289
    %v1716 = vpack.c.b16 %v1292, %v1290
    %v1717 = vpack.c.b16 %v1295, %v1293
    %v1718 = vpack.c.b16 %v1296, %v1294
    %v1719 = vpack.c.b16 %v1299, %v1297
    %v1720 = vpack.c.b16 %v1300, %v1298
    %v1721 = vpack.c.b16 %v1303, %v1301
    %v1722 = vpack.c.b16 %v1304, %v1302
    %v1723 = vpack.c.b16 %v1307, %v1305
    %v1724 = vpack.c.b16 %v1308, %v1306
    %v1725 = vpack.c.b16 %v1311, %v1309
    %v1726 = vpack.c.b16 %v1312, %v1310
    %v1727 = vpack.c.b16 %v1315, %v1313
    %v1728 = vpack.c.b16 %v1316, %v1314
    %v1729 = vpack.c.b16 %v1319, %v1317
    %v1730 = vpack.c.b16 %v1320, %v1318
    %v1731 = vpack.c.b16 %v1323, %v1321
    %v1732 = vpack.c.b16 %v1324, %v1322
    %v1733 = vpack.c.b16 %v1327, %v1325
    %v1734 = vpack.c.b16 %v1328, %v1326
    %v1735 = vpack.c.b16 %v1331, %v1329
    %v1736 = vpack.c.b16 %v1332, %v1330
    %v1737 = vpack.c.b16 %v1335, %v1333
    %v1738 = vpack.c.b16 %v1336, %v1334
    %v1739 = vpack.c.b16 %v1339, %v1337
    %v1740 = vpack.c.b16 %v1340, %v1338
    %v1741 = vpack.c.b16 %v1343, %v1341
    %v1742 = vpack.c.b16 %v1344, %v1342
    %v1743 = vpack.c.b16 %v1347, %v1345
    %v1744 = vpack.c.b16 %v1348, %v1346
    %v1745 = vpack.c.b16 %v1351, %v1349
    %v1746 = vpack.c.b16 %v1352, %v1350
    %v1747 = vpack.c.b16 %v1355, %v1353
    %v1748 = vpack.c.b16 %v1356, %v1354
    %v1749 = vpack.c.b16 %v1359, %v1357
    %v1750 = vpack.c.b16 %v1360, %v1358
    %v1751 = vpack.c.b16 %v1363, %v1361
    %v1752 = vpack.c.b16 %v1364, %v1362
    %v1753 = vpack.c.b16 %v1367, %v1365
    %v1754 = vpack.c.b16 %v1368, %v1366
    %v1755 = vpack.c.b16 %v1371, %v1369
    %v1756 = vpack.c.b16 %v1372, %v1370
    %v1757 = vpack.c.b16 %v1375, %v1373
    %v1758 = vpack.c.b16 %v1376, %v1374
    %v1759 = vpack.c.b16 %v1379, %v1377
    %v1760 = vpack.c.b16 %v1380, %v1378
    %v1761 = vpack.c.b16 %v1383, %v1381
    %v1762 = vpack.c.b16 %v1384, %v1382
    %v1763 = vpack.c.b16 %v1387, %v1385
    %v1764 = vpack.c.b16 %v1388, %v1386
    %v1765 = vpack.c.b16 %v1391, %v1389
    %v1766 = vpack.c.b16 %v1392, %v1390
    %v1767 = vpack.c.b16 %v1395, %v1393
    %v1768 = vpack.c.b16 %v1396, %v1394
    %v1769 = vpack.c.b16 %v1399, %v1397
    %v1770 = vpack.c.b16 %v1400, %v1398
    %v1771 = vpack.c.b16 %v1403, %v1401
    %v1772 = vpack.c.b16 %v1404, %v1402
    %v1773 = vpack.c.b16 %v1407, %v1405
    %v1774 = vpack.c.b16 %v1408, %v1406
    %v1775 = vpack.c.b16 %v1411, %v1409
    %v1776 = vpack.c.b16 %v1412, %v1410
    %v1777 = vpack.c.b16 %v1415, %v1413
    %v1778 = vpack.c.b16 %v1416, %v1414
    %v1779 = vpack.c.b16 %v1419, %v1417
    %v1780 = vpack.c.b16 %v1420, %v1418
    %v1781 = vpack.c.b16 %v1423, %v1421
    %v1782 = vpack.c.b16 %v1424, %v1422
    %v1783 = vpack.c.b16 %v1427, %v1425
    %v1784 = vpack.c.b16 %v1428, %v1426
    %v1785 = vpack.c.b16 %v1431, %v1429
    %v1786 = vpack.c.b16 %v1432, %v1430
    %v1787 = vpack.c.b16 %v1435, %v1433
    %v1788 = vpack.c.b16 %v1436, %v1434
    %v1789 = vpack.c.b16 %v1439, %v1437
    %v1790 = vpack.c.b16 %v1440, %v1438
    %v1791 = vpack.c.b16 %v1443, %v1441
    %v1792 = vpack.c.b16 %v1444, %v1442
    %v1793 = vpack.c.b16 %v1447, %v1445
    %v1794 = vpack.c.b16 %v1448, %v1446
    %v1795 = vpack.c.b16 %v1451, %v1449
    %v1796 = vpack.c.b16 %v1452, %v1450
    %v1797 = vpack.c.b16 %v1455, %v1453
    %v1798 = vpack.c.b16 %v1456, %v1454
    %v1799 = vpack.c.b16 %v1459, %v1457
    %v1800 = vpack.c.b16 %v1460, %v1458
    %v1801 = vpack.c.b16 %v1463, %v1461
    %v1802 = vpack.c.b16 %v1464, %v1462
    %v1803 = vpack.c.b16 %v1467, %v1465
    %v1804 = vpack.c.b16 %v1468, %v1466
    %v1805 = vpack.c.b16 %v1471, %v1469
    %v1806 = vpack.c.b16 %v1472, %v1470
    %v1807 = vpack.c.b16 %v1475, %v1473
    %v1808 = vpack.c.b16 %v1476, %v1474
    %v1809 = vpack.c.b16 %v1479, %v1477
    %v1810 = vpack.c.b16 %v1480, %v1478
    %v1811 = vpack.c.b16 %v1483, %v1481
    %v1812 = vpack.c.b16 %v1484, %v1482
    %v1813 = vpack.c.b16 %v1487, %v1485
    %v1814 = vpack.c.b16 %v1488, %v1486
    %v1815 = vpack.c.b16 %v1491, %v1489
    %v1816 = vpack.c.b16 %v1492, %v1490
    %vm2141 = vcmask 261120
    %v2143 = vsel %vm2141, %v491, 0
    %2145 = vmatprep.subr.bf16.mxu0 %v1494
    %2146 = vmatpush1.bf16.msra.mxu0 %v1493
    %2147 = vmatprep.subr.bf16.mxu0 %v1496
    %2148 = vmatpush1.bf16.msra.mxu0 %v1495
    %2149 = vmatprep.subr.bf16.mxu0 %v1498
    %2150 = vmatpush1.bf16.msra.mxu0 %v1497
    %2151 = vmatprep.subr.bf16.mxu0 %v1500
    %2152 = vmatpush1.bf16.msra.mxu0 %v1499
    %2153 = vmatprep.subr.bf16.mxu0 %v1502
    %2154 = vmatpush1.bf16.msra.mxu0 %v1501
    %2155 = vmatprep.subr.bf16.mxu0 %v1504
    %2156 = vmatpush1.bf16.msra.mxu0 %v1503
    %2157 = vmatprep.subr.bf16.mxu0 %v1506
    %2158 = vmatpush1.bf16.msra.mxu0 %v1505
    %2159 = vmatprep.subr.bf16.mxu0 %v1508
    %2160 = vmatpush1.bf16.msra.mxu0 %v1507
    %2161 = vmatprep.subr.bf16.mxu0 %v1510
    %2162 = vmatpush1.bf16.msra.mxu0 %v1509
    %2163 = vmatprep.subr.bf16.mxu0 %v1512
    %2164 = vmatpush1.bf16.msra.mxu0 %v1511
    %2165 = vmatprep.subr.bf16.mxu0 %v1514
    %2166 = vmatpush1.bf16.msra.mxu0 %v1513
    %2167 = vmatprep.subr.bf16.mxu0 %v1516
    %2168 = vmatpush1.bf16.msra.mxu0 %v1515
    %2169 = vmatprep.subr.bf16.mxu0 %v1518
    %2170 = vmatpush1.bf16.msra.mxu0 %v1517
    %2171 = vmatprep.subr.bf16.mxu0 %v1520
    %2172 = vmatpush1.bf16.msra.mxu0 %v1519
    %2173 = vmatprep.subr.bf16.mxu0 %v1522
    %2174 = vmatpush1.bf16.msra.mxu0 %v1521
    %2175 = vmatprep.subr.bf16.mxu0 %v1524
    %2176 = vmatpush1.bf16.msra.mxu0 %v1523
    %2177 = vmatprep.mubr.bf16.mxu0 %v401
    %2178 = vmatmul.mubr.bf16.gmra.mrb[0].mxu0 %v387
    %v2179 = vpop.f32.mrb[0].mxu0
    %v2180 = vadd.f32 %v354, %v2179
    %v2181 = vpop.f32.mrb[0].mxu0
    %v2182 = vadd.f32 %v358, %v2181
    %v2183 = vpop.f32.mrb[0].mxu0
    %v2184 = vpop.f32.mrb[0].mxu0
    %2185 = vdwg.mxu0
    %2186 = vmatprep.subr.bf16.mxu0 %v1526
    %2187 = vmatpush1.bf16.msra.mxu0 %v1525
    %2188 = vmatprep.subr.bf16.mxu0 %v1528
    %2189 = vmatpush1.bf16.msra.mxu0 %v1527
    %2190 = vmatprep.subr.bf16.mxu0 %v1530
    %2191 = vmatpush1.bf16.msra.mxu0 %v1529
    %2192 = vmatprep.subr.bf16.mxu0 %v1532
    %2193 = vmatpush1.bf16.msra.mxu0 %v1531
    %2194 = vmatprep.subr.bf16.mxu0 %v1534
    %2195 = vmatpush1.bf16.msra.mxu0 %v1533
    %2196 = vmatprep.subr.bf16.mxu0 %v1536
    %2197 = vmatpush1.bf16.msra.mxu0 %v1535
    %2198 = vmatprep.subr.bf16.mxu0 %v1538
    %2199 = vmatpush1.bf16.msra.mxu0 %v1537
    %2200 = vmatprep.subr.bf16.mxu0 %v1540
    %2201 = vmatpush1.bf16.msra.mxu0 %v1539
    %2202 = vmatprep.subr.bf16.mxu0 %v1542
    %2203 = vmatpush1.bf16.msra.mxu0 %v1541
    %2204 = vmatprep.subr.bf16.mxu0 %v1544
    %2205 = vmatpush1.bf16.msra.mxu0 %v1543
    %2206 = vmatprep.subr.bf16.mxu0 %v1546
    %2207 = vmatpush1.bf16.msra.mxu0 %v1545
    %2208 = vmatprep.subr.bf16.mxu0 %v1548
    %2209 = vmatpush1.bf16.msra.mxu0 %v1547
    %2210 = vmatprep.subr.bf16.mxu0 %v1550
    %2211 = vmatpush1.bf16.msra.mxu0 %v1549
    %2212 = vmatprep.subr.bf16.mxu0 %v1552
    %2213 = vmatpush1.bf16.msra.mxu0 %v1551
    %2214 = vmatprep.subr.bf16.mxu0 %v1554
    %2215 = vmatpush1.bf16.msra.mxu0 %v1553
    %2216 = vmatprep.subr.bf16.mxu0 %v1556
    %2217 = vmatpush1.bf16.msra.mxu0 %v1555
    %2218 = vmatprep.mubr.bf16.mxu0 %v411
    %2219 = vmatmul.mubr.bf16.gmra.mrb[0].mxu0 %v409
    %v2220 = vpop.f32.mrb[0].mxu0
    %v2221 = vadd.f32 %v2180, %v2220
    %v2222 = vpop.f32.mrb[0].mxu0
    %v2223 = vadd.f32 %v2182, %v2222
    %v2224 = vpop.f32.mrb[0].mxu0
    %v2225 = vpop.f32.mrb[0].mxu0
    %2226 = vdwg.mxu0
    %2227 = vmatprep.subr.bf16.mxu0 %v1558
    %2228 = vmatpush1.bf16.msra.mxu0 %v1557
    %2229 = vmatprep.subr.bf16.mxu0 %v1560
    %2230 = vmatpush1.bf16.msra.mxu0 %v1559
    %2231 = vmatprep.subr.bf16.mxu0 %v1562
    %2232 = vmatpush1.bf16.msra.mxu0 %v1561
    %2233 = vmatprep.subr.bf16.mxu0 %v1564
    %2234 = vmatpush1.bf16.msra.mxu0 %v1563
    %2235 = vmatprep.subr.bf16.mxu0 %v1566
    %2236 = vmatpush1.bf16.msra.mxu0 %v1565
    %2237 = vmatprep.subr.bf16.mxu0 %v1568
    %2238 = vmatpush1.bf16.msra.mxu0 %v1567
    %2239 = vmatprep.subr.bf16.mxu0 %v1570
    %2240 = vmatpush1.bf16.msra.mxu0 %v1569
    %2241 = vmatprep.subr.bf16.mxu0 %v1572
    %2242 = vmatpush1.bf16.msra.mxu0 %v1571
    %2243 = vmatprep.subr.bf16.mxu0 %v1574
    %2244 = vmatpush1.bf16.msra.mxu0 %v1573
    %2245 = vmatprep.subr.bf16.mxu0 %v1576
    %2246 = vmatpush1.bf16.msra.mxu0 %v1575
    %2247 = vmatprep.subr.bf16.mxu0 %v1578
    %2248 = vmatpush1.bf16.msra.mxu0 %v1577
    %2249 = vmatprep.subr.bf16.mxu0 %v1580
    %2250 = vmatpush1.bf16.msra.mxu0 %v1579
    %2251 = vmatprep.subr.bf16.mxu0 %v1582
    %2252 = vmatpush1.bf16.msra.mxu0 %v1581
    %2253 = vmatprep.subr.bf16.mxu0 %v1584
    %2254 = vmatpush1.bf16.msra.mxu0 %v1583
    %2255 = vmatprep.subr.bf16.mxu0 %v1586
    %2256 = vmatpush1.bf16.msra.mxu0 %v1585
    %2257 = vmatprep.subr.bf16.mxu0 %v1588
    %2258 = vmatpush1.bf16.msra.mxu0 %v1587
    %2259 = vmatprep.mubr.bf16.mxu0 %v408
    %2260 = vmatmul.mubr.bf16.gmra.mrb[0].mxu0 %v394
    %v2261 = vpop.f32.mrb[0].mxu0
    %v2262 = vadd.f32 %v2221, %v2261
    %v2263 = vpop.f32.mrb[0].mxu0
    %v2264 = vadd.f32 %v2223, %v2263
    %v2265 = vpop.f32.mrb[0].mxu0
    %v2266 = vpop.f32.mrb[0].mxu0
    %2267 = vdwg.mxu0
    %2268 = vmatprep.subr.bf16.mxu0 %v1590
    %2269 = vmatpush1.bf16.msra.mxu0 %v1589
    %2270 = vmatprep.subr.bf16.mxu0 %v1592
    %2271 = vmatpush1.bf16.msra.mxu0 %v1591
    %2272 = vmatprep.subr.bf16.mxu0 %v1594
    %2273 = vmatpush1.bf16.msra.mxu0 %v1593
    %2274 = vmatprep.subr.bf16.mxu0 %v1596
    %2275 = vmatpush1.bf16.msra.mxu0 %v1595
    %2276 = vmatprep.subr.bf16.mxu0 %v1598
    %2277 = vmatpush1.bf16.msra.mxu0 %v1597
    %2278 = vmatprep.subr.bf16.mxu0 %v1600
    %2279 = vmatpush1.bf16.msra.mxu0 %v1599
    %2280 = vmatprep.subr.bf16.mxu0 %v1602
    %2281 = vmatpush1.bf16.msra.mxu0 %v1601
    %2282 = vmatprep.subr.bf16.mxu0 %v1604
    %2283 = vmatpush1.bf16.msra.mxu0 %v1603
    %2284 = vmatprep.subr.bf16.mxu0 %v1606
    %2285 = vmatpush1.bf16.msra.mxu0 %v1605
    %2286 = vmatprep.subr.bf16.mxu0 %v1608
    %2287 = vmatpush1.bf16.msra.mxu0 %v1607
    %2288 = vmatprep.subr.bf16.mxu0 %v1610
    %2289 = vmatpush1.bf16.msra.mxu0 %v1609
    %2290 = vmatprep.subr.bf16.mxu0 %v1612
    %2291 = vmatpush1.bf16.msra.mxu0 %v1611
    %2292 = vmatprep.subr.bf16.mxu0 %v1614
    %2293 = vmatpush1.bf16.msra.mxu0 %v1613
    %2294 = vmatprep.subr.bf16.mxu0 %v1616
    %2295 = vmatpush1.bf16.msra.mxu0 %v1615
    %2296 = vmatprep.subr.bf16.mxu0 %v1618
    %2297 = vmatpush1.bf16.msra.mxu0 %v1617
    %2298 = vmatprep.subr.bf16.mxu0 %v1620
    %2299 = vmatpush1.bf16.msra.mxu0 %v1619
    %2300 = vmatprep.mubr.bf16.mxu0 %v412
    %2301 = vmatmul.mubr.bf16.gmra.mrb[0].mxu0 %v410
    %v2302 = vpop.f32.mrb[0].mxu0
    %v2303 = vadd.f32 %v2262, %v2302
    %v2304 = vpop.f32.mrb[0].mxu0
    %v2305 = vadd.f32 %v2264, %v2304
    %v2306 = vpop.f32.mrb[0].mxu0
    %v2307 = vpop.f32.mrb[0].mxu0
    %2308 = vdwg.mxu0
    %2309 = vmatprep.subr.bf16.mxu0 %v1622
    %2310 = vmatpush1.bf16.msra.mxu0 %v1621
    %2311 = vmatprep.subr.bf16.mxu0 %v1624
    %2312 = vmatpush1.bf16.msra.mxu0 %v1623
    %2313 = vmatprep.subr.bf16.mxu0 %v1626
    %2314 = vmatpush1.bf16.msra.mxu0 %v1625
    %2315 = vmatprep.subr.bf16.mxu0 %v1628
    %2316 = vmatpush1.bf16.msra.mxu0 %v1627
    %2317 = vmatprep.subr.bf16.mxu0 %v1630
    %2318 = vmatpush1.bf16.msra.mxu0 %v1629
    %2319 = vmatprep.subr.bf16.mxu0 %v1632
    %2320 = vmatpush1.bf16.msra.mxu0 %v1631
    %2321 = vmatprep.subr.bf16.mxu0 %v1634
    %2322 = vmatpush1.bf16.msra.mxu0 %v1633
    %2323 = vmatprep.subr.bf16.mxu0 %v1636
    %2324 = vmatpush1.bf16.msra.mxu0 %v1635
    %2325 = vmatprep.subr.bf16.mxu0 %v1638
    %2326 = vmatpush1.bf16.msra.mxu0 %v1637
    %2327 = vmatprep.subr.bf16.mxu0 %v1640
    %2328 = vmatpush1.bf16.msra.mxu0 %v1639
    %2329 = vmatprep.subr.bf16.mxu0 %v1642
    %2330 = vmatpush1.bf16.msra.mxu0 %v1641
    %2331 = vmatprep.subr.bf16.mxu0 %v1644
    %2332 = vmatpush1.bf16.msra.mxu0 %v1643
    %2333 = vmatprep.subr.bf16.mxu0 %v1646
    %2334 = vmatpush1.bf16.msra.mxu0 %v1645
    %2335 = vmatprep.subr.bf16.mxu0 %v1648
    %2336 = vmatpush1.bf16.msra.mxu0 %v1647
    %2337 = vmatprep.subr.bf16.mxu0 %v1650
    %2338 = vmatpush1.bf16.msra.mxu0 %v1649
    %2339 = vmatprep.subr.bf16.mxu0 %v1652
    %2340 = vmatpush1.bf16.msra.mxu0 %v1651
    %2341 = vmatprep.mubr.bf16.mxu0 %v450
    %2342 = vmatmul.mubr.bf16.gmra.mrb[0].mxu0 %v436
    %v2343 = vpop.f32.mrb[0].mxu0
    %v2344 = vadd.f32 %v2303, %v2343
    %v2345 = vpop.f32.mrb[0].mxu0
    %v2346 = vadd.f32 %v2305, %v2345
    %v2347 = vpop.f32.mrb[0].mxu0
    %v2348 = vpop.f32.mrb[0].mxu0
    %2349 = vdwg.mxu0
    %2350 = vmatprep.subr.bf16.mxu0 %v1654
    %2351 = vmatpush1.bf16.msra.mxu0 %v1653
    %2352 = vmatprep.subr.bf16.mxu0 %v1656
    %2353 = vmatpush1.bf16.msra.mxu0 %v1655
    %2354 = vmatprep.subr.bf16.mxu0 %v1658
    %2355 = vmatpush1.bf16.msra.mxu0 %v1657
    %2356 = vmatprep.subr.bf16.mxu0 %v1660
    %2357 = vmatpush1.bf16.msra.mxu0 %v1659
    %2358 = vmatprep.subr.bf16.mxu0 %v1662
    %2359 = vmatpush1.bf16.msra.mxu0 %v1661
    %2360 = vmatprep.subr.bf16.mxu0 %v1664
    %2361 = vmatpush1.bf16.msra.mxu0 %v1663
    %2362 = vmatprep.subr.bf16.mxu0 %v1666
    %2363 = vmatpush1.bf16.msra.mxu0 %v1665
    %2364 = vmatprep.subr.bf16.mxu0 %v1668
    %2365 = vmatpush1.bf16.msra.mxu0 %v1667
    %2366 = vmatprep.subr.bf16.mxu0 %v1670
    %2367 = vmatpush1.bf16.msra.mxu0 %v1669
    %2368 = vmatprep.subr.bf16.mxu0 %v1672
    %2369 = vmatpush1.bf16.msra.mxu0 %v1671
    %2370 = vmatprep.subr.bf16.mxu0 %v1674
    %2371 = vmatpush1.bf16.msra.mxu0 %v1673
    %2372 = vmatprep.subr.bf16.mxu0 %v1676
    %2373 = vmatpush1.bf16.msra.mxu0 %v1675
    %2374 = vmatprep.subr.bf16.mxu0 %v1678
    %2375 = vmatpush1.bf16.msra.mxu0 %v1677
    %2376 = vmatprep.subr.bf16.mxu0 %v1680
    %2377 = vmatpush1.bf16.msra.mxu0 %v1679
    %2378 = vmatprep.subr.bf16.mxu0 %v1682
    %2379 = vmatpush1.bf16.msra.mxu0 %v1681
    %2380 = vmatprep.subr.bf16.mxu0 %v1684
    %2381 = vmatpush1.bf16.msra.mxu0 %v1683
    %2382 = vmatprep.mubr.bf16.mxu0 %v460
    %2383 = vmatmul.mubr.bf16.gmra.mrb[0].mxu0 %v458
    %v2384 = vpop.f32.mrb[0].mxu0
    %v2385 = vadd.f32 %v2344, %v2384
    %v2386 = vpop.f32.mrb[0].mxu0
    %v2387 = vadd.f32 %v2346, %v2386
    %v2388 = vpop.f32.mrb[0].mxu0
    %v2389 = vpop.f32.mrb[0].mxu0
    %2390 = vdwg.mxu0
    %2391 = vmatprep.subr.bf16.mxu0 %v1686
    %2392 = vmatpush1.bf16.msra.mxu0 %v1685
    %2393 = vmatprep.subr.bf16.mxu0 %v1688
    %2394 = vmatpush1.bf16.msra.mxu0 %v1687
    %2395 = vmatprep.subr.bf16.mxu0 %v1690
    %2396 = vmatpush1.bf16.msra.mxu0 %v1689
    %2397 = vmatprep.subr.bf16.mxu0 %v1692
    %2398 = vmatpush1.bf16.msra.mxu0 %v1691
    %2399 = vmatprep.subr.bf16.mxu0 %v1694
    %2400 = vmatpush1.bf16.msra.mxu0 %v1693
    %2401 = vmatprep.subr.bf16.mxu0 %v1696
    %2402 = vmatpush1.bf16.msra.mxu0 %v1695
    %2403 = vmatprep.subr.bf16.mxu0 %v1698
    %2404 = vmatpush1.bf16.msra.mxu0 %v1697
    %2405 = vmatprep.subr.bf16.mxu0 %v1700
    %2406 = vmatpush1.bf16.msra.mxu0 %v1699
    %2407 = vmatprep.subr.bf16.mxu0 %v1702
    %2408 = vmatpush1.bf16.msra.mxu0 %v1701
    %2409 = vmatprep.subr.bf16.mxu0 %v1704
    %2410 = vmatpush1.bf16.msra.mxu0 %v1703
    %2411 = vmatprep.subr.bf16.mxu0 %v1706
    %2412 = vmatpush1.bf16.msra.mxu0 %v1705
    %2413 = vmatprep.subr.bf16.mxu0 %v1708
    %2414 = vmatpush1.bf16.msra.mxu0 %v1707
    %2415 = vmatprep.subr.bf16.mxu0 %v1710
    %2416 = vmatpush1.bf16.msra.mxu0 %v1709
    %2417 = vmatprep.subr.bf16.mxu0 %v1712
    %2418 = vmatpush1.bf16.msra.mxu0 %v1711
    %2419 = vmatprep.subr.bf16.mxu0 %v1714
    %2420 = vmatpush1.bf16.msra.mxu0 %v1713
    %2421 = vmatprep.subr.bf16.mxu0 %v1716
    %2422 = vmatpush1.bf16.msra.mxu0 %v1715
    %2423 = vmatprep.mubr.bf16.mxu0 %v457
    %2424 = vmatmul.mubr.bf16.gmra.mrb[0].mxu0 %v443
    %v2425 = vpop.f32.mrb[0].mxu0
    %v2426 = vadd.f32 %v2385, %v2425
    %v2427 = vpop.f32.mrb[0].mxu0
    %v2428 = vadd.f32 %v2387, %v2427
    %v2429 = vpop.f32.mrb[0].mxu0
    %v2430 = vpop.f32.mrb[0].mxu0
    %2431 = vdwg.mxu0
    %2432 = vmatprep.subr.bf16.mxu0 %v1718
    %2433 = vmatpush1.bf16.msra.mxu0 %v1717
    %2434 = vmatprep.subr.bf16.mxu0 %v1720
    %2435 = vmatpush1.bf16.msra.mxu0 %v1719
    %2436 = vmatprep.subr.bf16.mxu0 %v1722
    %2437 = vmatpush1.bf16.msra.mxu0 %v1721
    %2438 = vmatprep.subr.bf16.mxu0 %v1724
    %2439 = vmatpush1.bf16.msra.mxu0 %v1723
    %2440 = vmatprep.subr.bf16.mxu0 %v1726
    %2441 = vmatpush1.bf16.msra.mxu0 %v1725
    %2442 = vmatprep.subr.bf16.mxu0 %v1728
    %2443 = vmatpush1.bf16.msra.mxu0 %v1727
    %2444 = vmatprep.subr.bf16.mxu0 %v1730
    %2445 = vmatpush1.bf16.msra.mxu0 %v1729
    %2446 = vmatprep.subr.bf16.mxu0 %v1732
    %2447 = vmatpush1.bf16.msra.mxu0 %v1731
    %2448 = vmatprep.subr.bf16.mxu0 %v1734
    %2449 = vmatpush1.bf16.msra.mxu0 %v1733
    %2450 = vmatprep.subr.bf16.mxu0 %v1736
    %2451 = vmatpush1.bf16.msra.mxu0 %v1735
    %2452 = vmatprep.subr.bf16.mxu0 %v1738
    %2453 = vmatpush1.bf16.msra.mxu0 %v1737
    %2454 = vmatprep.subr.bf16.mxu0 %v1740
    %2455 = vmatpush1.bf16.msra.mxu0 %v1739
    %2456 = vmatprep.subr.bf16.mxu0 %v1742
    %2457 = vmatpush1.bf16.msra.mxu0 %v1741
    %2458 = vmatprep.subr.bf16.mxu0 %v1744
    %2459 = vmatpush1.bf16.msra.mxu0 %v1743
    %2460 = vmatprep.subr.bf16.mxu0 %v1746
    %2461 = vmatpush1.bf16.msra.mxu0 %v1745
    %2462 = vmatprep.subr.bf16.mxu0 %v1748
    %2463 = vmatpush1.bf16.msra.mxu0 %v1747
    %2464 = vmatprep.mubr.bf16.mxu0 %v461
    %2465 = vmatmul.mubr.bf16.gmra.mrb[0].mxu0 %v459
    %v2466 = vpop.f32.mrb[0].mxu0
    %v2467 = vadd.f32 %v2426, %v2466
    %v2468 = vpop.f32.mrb[0].mxu0
    %v2469 = vadd.f32 %v2428, %v2468
    %v2470 = vpop.f32.mrb[0].mxu0
    %v2471 = vpop.f32.mrb[0].mxu0
    %2472 = vdwg.mxu0
    %2473 = vmatprep.subr.bf16.mxu0 %v1750
    %2474 = vmatpush1.bf16.msra.mxu0 %v1749
    %2475 = vmatprep.subr.bf16.mxu0 %v1752
    %2476 = vmatpush1.bf16.msra.mxu0 %v1751
    %2477 = vmatprep.subr.bf16.mxu0 %v1754
    %2478 = vmatpush1.bf16.msra.mxu0 %v1753
    %2479 = vmatprep.subr.bf16.mxu0 %v1756
    %2480 = vmatpush1.bf16.msra.mxu0 %v1755
    %2481 = vmatprep.subr.bf16.mxu0 %v1758
    %2482 = vmatpush1.bf16.msra.mxu0 %v1757
    %2483 = vmatprep.subr.bf16.mxu0 %v1760
    %2484 = vmatpush1.bf16.msra.mxu0 %v1759
    %2485 = vmatprep.subr.bf16.mxu0 %v1762
    %2486 = vmatpush1.bf16.msra.mxu0 %v1761
    %2487 = vmatprep.subr.bf16.mxu0 %v1764
    %2488 = vmatpush1.bf16.msra.mxu0 %v1763
    %2489 = vmatprep.subr.bf16.mxu0 %v1766
    %2490 = vmatpush1.bf16.msra.mxu0 %v1765
    %2491 = vmatprep.subr.bf16.mxu0 %v1768
    %2492 = vmatpush1.bf16.msra.mxu0 %v1767
    %2493 = vmatprep.subr.bf16.mxu0 %v1770
    %2494 = vmatpush1.bf16.msra.mxu0 %v1769
    %2495 = vmatprep.subr.bf16.mxu0 %v1772
    %2496 = vmatpush1.bf16.msra.mxu0 %v1771
    %2497 = vmatprep.subr.bf16.mxu0 %v1774
    %2498 = vmatpush1.bf16.msra.mxu0 %v1773
    %2499 = vmatprep.subr.bf16.mxu0 %v1776
    %2500 = vmatpush1.bf16.msra.mxu0 %v1775
    %2501 = vmatprep.subr.bf16.mxu0 %v1778
    %2502 = vmatpush1.bf16.msra.mxu0 %v1777
    %2503 = vmatprep.subr.bf16.mxu0 %v1780
    %2504 = vmatpush1.bf16.msra.mxu0 %v1779
    %2505 = vmatprep.mubr.bf16.mxu0 %v498
    %2506 = vmatmul.mubr.bf16.gmra.mrb[0].mxu0 %v484
    %v2507 = vpop.f32.mrb[0].mxu0
    %v2508 = vadd.f32 %v2467, %v2507
    %v2509 = vpop.f32.mrb[0].mxu0
    %v2510 = vadd.f32 %v2469, %v2509
    %v2511 = vpop.f32.mrb[0].mxu0
    %v2512 = vpop.f32.mrb[0].mxu0
    %2513 = vdwg.mxu0
    %2514 = vmatprep.subr.bf16.mxu0 %v1782
    %2515 = vmatpush1.bf16.msra.mxu0 %v1781
    %2516 = vmatprep.subr.bf16.mxu0 %v1784
    %2517 = vmatpush1.bf16.msra.mxu0 %v1783
    %2518 = vmatprep.subr.bf16.mxu0 %v1786
    %2519 = vmatpush1.bf16.msra.mxu0 %v1785
    %2520 = vmatprep.subr.bf16.mxu0 %v1788
    %2521 = vmatpush1.bf16.msra.mxu0 %v1787
    %2522 = vmatprep.subr.bf16.mxu0 %v1790
    %2523 = vmatpush1.bf16.msra.mxu0 %v1789
    %2524 = vmatprep.subr.bf16.mxu0 %v1792
    %2525 = vmatpush1.bf16.msra.mxu0 %v1791
    %2526 = vmatprep.subr.bf16.mxu0 %v1794
    %2527 = vmatpush1.bf16.msra.mxu0 %v1793
    %2528 = vmatprep.subr.bf16.mxu0 %v1796
    %2529 = vmatpush1.bf16.msra.mxu0 %v1795
    %2530 = vmatprep.subr.bf16.mxu0 %v1798
    %2531 = vmatpush1.bf16.msra.mxu0 %v1797
    %2532 = vmatprep.subr.bf16.mxu0 %v1800
    %2533 = vmatpush1.bf16.msra.mxu0 %v1799
    %2534 = vmatprep.subr.bf16.mxu0 %v1802
    %2535 = vmatpush1.bf16.msra.mxu0 %v1801
    %2536 = vmatprep.subr.bf16.mxu0 %v1804
    %2537 = vmatpush1.bf16.msra.mxu0 %v1803
    %2538 = vmatprep.subr.bf16.mxu0 %v1806
    %2539 = vmatpush1.bf16.msra.mxu0 %v1805
    %2540 = vmatprep.subr.bf16.mxu0 %v1808
    %2541 = vmatpush1.bf16.msra.mxu0 %v1807
    %2542 = vmatprep.subr.bf16.mxu0 %v1810
    %2543 = vmatpush1.bf16.msra.mxu0 %v1809
    %2544 = vmatprep.subr.bf16.mxu0 %v1812
    %2545 = vmatpush1.bf16.msra.mxu0 %v1811
    %2546 = vmatprep.mubr.bf16.mxu0 %v500
    %2547 = vmatmul.mubr.bf16.gmra.mrb[0].mxu0 %v499
    %v2548 = vpop.f32.mrb[0].mxu0
    %v2549 = vadd.f32 %v2508, %v2548
    %v2550 = vpop.f32.mrb[0].mxu0
    %v2551 = vadd.f32 %v2510, %v2550
    %v2552 = vpop.f32.mrb[0].mxu0
    %v2553 = vpop.f32.mrb[0].mxu0
    %2554 = vdwg.mxu0
    %2555 = vmatprep.subr.bf16.mxu0 %v1814
    %2556 = vmatpush1.bf16.msra.mxu0 %v1813
    %2557 = vmatprep.subr.bf16.mxu0 %v1816
    %2558 = vmatpush1.bf16.msra.mxu0 %v1815
    %2559 = vmatprep.subr.bf16.mxu0 0
    %2560 = vmatpush1.bf16.msra.mxu0 0
    %2561 = vmatprep.subr.bf16.mxu0 0
    %2562 = vmatpush1.bf16.msra.mxu0 0
    %2563 = vmatprep.subr.bf16.mxu0 0
    %2564 = vmatpush1.bf16.msra.mxu0 0
    %2565 = vmatprep.subr.bf16.mxu0 0
    %2566 = vmatpush1.bf16.msra.mxu0 0
    %2567 = vmatprep.subr.bf16.mxu0 0
    %2568 = vmatpush1.bf16.msra.mxu0 0
    %2569 = vmatprep.subr.bf16.mxu0 0
    %2570 = vmatpush1.bf16.msra.mxu0 0
    %2571 = vmatprep.subr.bf16.mxu0 0
    %2572 = vmatpush1.bf16.msra.mxu0 0
    %2573 = vmatprep.subr.bf16.mxu0 0
    %2574 = vmatpush1.bf16.msra.mxu0 0
    %2575 = vmatprep.subr.bf16.mxu0 0
    %2576 = vmatpush1.bf16.msra.mxu0 0
    %2577 = vmatprep.subr.bf16.mxu0 0
    %2578 = vmatpush1.bf16.msra.mxu0 0
    %2579 = vmatprep.subr.bf16.mxu0 0
    %2580 = vmatpush1.bf16.msra.mxu0 0
    %2581 = vmatprep.subr.bf16.mxu0 0
    %2582 = vmatpush1.bf16.msra.mxu0 0
    %2583 = vmatprep.subr.bf16.mxu0 0
    %2584 = vmatpush1.bf16.msra.mxu0 0
    %2585 = vmatprep.subr.bf16.mxu0 0
    %2586 = vmatpush1.bf16.msra.mxu0 0
    %2587 = vmatprep.mubr.bf16.mxu0 0
    %2588 = vmatmul.mubr.bf16.gmra.mrb[0].mxu0 %v2143
    %v2589 = vpop.f32.mrb[0].mxu0
    %v2590 = vadd.f32 %v2549, %v2589
    %v2591 = vpop.f32.mrb[0].mxu0
    %v2592 = vadd.f32 %v2551, %v2591
    %v2593 = vpop.f32.mrb[0].mxu0
    %v2594 = vpop.f32.mrb[0].mxu0
    %2595 = vdwg.mxu0
    %v2596 = vmax.f32 %v2590, 0.0
    %v2597 = vmax.f32 %v2592, 0.0
    %v2598 = vpack.c.bf16 %v2596, %v2596
    %v2599 = vpack.c.bf16 %v2597, %v2597
    %v2600 = vld [vmem:[%s3] sm:$0xf]
    %v2601 = vld [vmem:[%s3 + $0x4] sm:$0xf]
    %v2602 = vld [vmem:[%s3 + $0x8] sm:$0xf]
    %v2603 = vld [vmem:[%s3 + $0xc] sm:$0xf]
    %v2604 = vld [vmem:[%s3 + $0x10] sm:$0xf]
    %v2605 = vld [vmem:[%s3 + $0x14] sm:$0xf]
    %v2606 = vld [vmem:[%s3 + $0x18] sm:$0xf]
    %v2607 = vld [vmem:[%s3 + $0x1c] sm:$0xf]
    %v2608 = vld [vmem:[%s3 + $0x20] sm:$0xf]
    %v2609 = vld [vmem:[%s3 + $0x24] sm:$0xf]
    %v2610 = vld [vmem:[%s3 + $0x28] sm:$0xf]
    %v2611 = vld [vmem:[%s3 + $0x2c] sm:$0xf]
    %v2612 = vld [vmem:[%s3 + $0x30] sm:$0xf]
    %v2613 = vld [vmem:[%s3 + $0x34] sm:$0xf]
    %v2614 = vld [vmem:[%s3 + $0x38] sm:$0xf]
    %v2615 = vld [vmem:[%s3 + $0x3c] sm:$0xf]
    %v2616 = vld [vmem:[%s3 + $0x40] sm:$0xf]
    %v2617 = vld [vmem:[%s3 + $0x44] sm:$0xf]
    %v2618 = vld [vmem:[%s3 + $0x48] sm:$0xf]
    %v2619 = vld [vmem:[%s3 + $0x4c] sm:$0xf]
    %v2620 = vld [vmem:[%s3 + $0x50] sm:$0xf]
    %v2621 = vld [vmem:[%s3 + $0x54] sm:$0xf]
    %v2622 = vld [vmem:[%s3 + $0x58] sm:$0xf]
    %v2623 = vld [vmem:[%s3 + $0x5c] sm:$0xf]
    %v2624 = vld [vmem:[%s3 + $0x60] sm:$0xf]
    %v2625 = vld [vmem:[%s3 + $0x64] sm:$0xf]
    %v2626 = vld [vmem:[%s3 + $0x68] sm:$0xf]
    %v2627 = vld [vmem:[%s3 + $0x6c] sm:$0xf]
    %v2628 = vld [vmem:[%s3 + $0x70] sm:$0xf]
    %v2629 = vld [vmem:[%s3 + $0x74] sm:$0xf]
    %v2630 = vld [vmem:[%s3 + $0x78] sm:$0xf]
    %v2631 = vld [vmem:[%s3 + $0x7c] sm:$0xf]
    %v2632 = vld [vmem:[%s4] sm:$0x1]
    %v2634 = vlaneseq
    %v2635 = vshrl.u32 %v2634, 7
    %v2636 = vsub.s32 0, %v2635
    %v2637 = vrot.slane %v2632, %v2636
    %v2671 = vunpack.c.l.b16 %v2600
    %v2672 = vunpack.c.l.b16 %v2601
    %v2673 = vunpack.c.l.b16 %v2602
    %v2674 = vunpack.c.l.b16 %v2603
    %v2675 = vunpack.c.l.b16 %v2604
    %v2676 = vunpack.c.l.b16 %v2605
    %v2677 = vunpack.c.l.b16 %v2606
    %v2678 = vunpack.c.l.b16 %v2607
    %v2679 = vunpack.c.l.b16 %v2608
    %v2680 = vunpack.c.l.b16 %v2609
    %v2681 = vunpack.c.l.b16 %v2610
    %v2682 = vunpack.c.l.b16 %v2611
    %v2683 = vunpack.c.l.b16 %v2612
    %v2684 = vunpack.c.l.b16 %v2613
    %v2685 = vunpack.c.l.b16 %v2614
    %v2686 = vunpack.c.l.b16 %v2615
    %v2687 = vunpack.c.l.b16 %v2616
    %v2688 = vunpack.c.l.b16 %v2617
    %v2689 = vunpack.c.l.b16 %v2618
    %v2690 = vunpack.c.l.b16 %v2619
    %v2691 = vunpack.c.l.b16 %v2620
    %v2692 = vunpack.c.l.b16 %v2621
    %v2693 = vunpack.c.l.b16 %v2622
    %v2694 = vunpack.c.l.b16 %v2623
    %v2695 = vunpack.c.l.b16 %v2624
    %v2696 = vunpack.c.l.b16 %v2625
    %v2697 = vunpack.c.l.b16 %v2626
    %v2698 = vunpack.c.l.b16 %v2627
    %v2699 = vunpack.c.l.b16 %v2628
    %v2700 = vunpack.c.l.b16 %v2629
    %v2701 = vunpack.c.l.b16 %v2630
    %v2702 = vunpack.c.l.b16 %v2631
    %v2703 = vpack.c.b16 %v2672, %v2671
    %v2704 = vpack.c.b16 %v2674, %v2673
    %v2705 = vpack.c.b16 %v2676, %v2675
    %v2706 = vpack.c.b16 %v2678, %v2677
    %v2707 = vpack.c.b16 %v2680, %v2679
    %v2708 = vpack.c.b16 %v2682, %v2681
    %v2709 = vpack.c.b16 %v2684, %v2683
    %v2710 = vpack.c.b16 %v2686, %v2685
    %v2711 = vpack.c.b16 %v2688, %v2687
    %v2712 = vpack.c.b16 %v2690, %v2689
    %v2713 = vpack.c.b16 %v2692, %v2691
    %v2714 = vpack.c.b16 %v2694, %v2693
    %v2715 = vpack.c.b16 %v2696, %v2695
    %v2716 = vpack.c.b16 %v2698, %v2697
    %v2717 = vpack.c.b16 %v2700, %v2699
    %v2718 = vpack.c.b16 %v2702, %v2701
    %2735 = vmatprep.subr.bf16.mxu0 0
    %2736 = vmatpush1.bf16.msra.mxu0 %v2703
    %2737 = vmatprep.subr.bf16.mxu0 0
    %2738 = vmatpush1.bf16.msra.mxu0 %v2704
    %2739 = vmatprep.subr.bf16.mxu0 0
    %2740 = vmatpush1.bf16.msra.mxu0 %v2705
    %2741 = vmatprep.subr.bf16.mxu0 0
    %2742 = vmatpush1.bf16.msra.mxu0 %v2706
    %2743 = vmatprep.subr.bf16.mxu0 0
    %2744 = vmatpush1.bf16.msra.mxu0 %v2707
    %2745 = vmatprep.subr.bf16.mxu0 0
    %2746 = vmatpush1.bf16.msra.mxu0 %v2708
    %2747 = vmatprep.subr.bf16.mxu0 0
    %2748 = vmatpush1.bf16.msra.mxu0 %v2709
    %2749 = vmatprep.subr.bf16.mxu0 0
    %2750 = vmatpush1.bf16.msra.mxu0 %v2710
    %2751 = vmatprep.subr.bf16.mxu0 0
    %2752 = vmatpush1.bf16.msra.mxu0 %v2711
    %2753 = vmatprep.subr.bf16.mxu0 0
    %2754 = vmatpush1.bf16.msra.mxu0 %v2712
    %2755 = vmatprep.subr.bf16.mxu0 0
    %2756 = vmatpush1.bf16.msra.mxu0 %v2713
    %2757 = vmatprep.subr.bf16.mxu0 0
    %2758 = vmatpush1.bf16.msra.mxu0 %v2714
    %2759 = vmatprep.subr.bf16.mxu0 0
    %2760 = vmatpush1.bf16.msra.mxu0 %v2715
    %2761 = vmatprep.subr.bf16.mxu0 0
    %2762 = vmatpush1.bf16.msra.mxu0 %v2716
    %2763 = vmatprep.subr.bf16.mxu0 0
    %2764 = vmatpush1.bf16.msra.mxu0 %v2717
    %2765 = vmatprep.subr.bf16.mxu0 0
    %2766 = vmatpush1.bf16.msra.mxu0 %v2718
    %2767 = vmatprep.mubr.bf16.mxu0 %v2599
    %2768 = vmatmul.mubr.bf16.gmra.mrb[0].mxu0 %v2598
    %v2769 = vpop.f32.mrb[0].mxu0
    %v2770 = vadd.f32 %v2637, %v2769
    %v2771 = vpop.f32.mrb[0].mxu0
    %v2772 = vpop.f32.mrb[0].mxu0
    %v2773 = vpop.f32.mrb[0].mxu0
    %2774 = vdwg.mxu0
    %2775 = vst [vmem:[#allocation2] sm:$0x3] %v2770
    // Predicated region
    $region22: #{qcn_forward.5} parent=1 // pred_check
      _
    $region23: #{qcn_forward.5} parent=1 // pred_check_branch
      %2777 = sbr.rel (0) target = $region25
    $region24: #{qcn_forward.5} parent=1 // pred_region
      %s2779 = ssub.s32 32, 32
      %2780 = vsyncadd [#allocation3], %s2779
      %s2782 = sshll.u32 [#allocation2], 4
      %s2783 = int_to_ptr.vmem [resolvable:$true] %s2782
      %2785 = dma.vmem_to_hbm [thread:$0]  %s2783, 32, %s5, [#allocation3]
    $region25: #{qcn_forward.5} parent=1 // pred_fallthru
      _
    // Predicated region
    $region26: #{qcn_forward.5} parent=1 // pred_check
      _
    $region27: #{qcn_forward.5} parent=1 // pred_check_branch
      %2787 = sbr.rel (0) target = $region29
    $region28: #{qcn_forward.5} parent=1 // pred_region
      %2788 = dma.done [#allocation3], 32
    $region29: #{qcn_forward.5} parent=1 // pred_fallthru
      _
    %2789 = vsyncpa [#allocation3], 1

</llo_original>
